<compile_context>
chip_gen: v6e
topology: v6e:2x2x1
jax: 0.10.0
libtpu: 0.0.40
codegen_flags: <defaults>
</compile_context>

<pallas_src>
import functools

import jax
import jax.numpy as jnp
from jax.experimental import pallas as pl
from jax.experimental.pallas import tpu as pltpu


def _round_up(x, m):
    return (x + m - 1) // m * m


def _split_even(dim, cap, align):
    """Near-equal tiling: split `dim` into n blocks of ~<=cap, `align`-aligned.

    Returns (tile, padded_dim) with padded_dim == n * tile >= dim.  Avoids
    padding an awkward final block all the way up to the cap.
    """
    n = max(1, -(-dim // cap))
    t = _round_up(-(-dim // n), align)
    return t, n * t


# --------------------------- tiled GEMM (MXU) -------------------------------

def _gemm_kernel(a_ref, b_ref, bias_ref, o_ref, acc_ref, *, pre_act, post_act):
    @pl.when(pl.program_id(2) == 0)
    def _():
        acc_ref[...] = jnp.zeros_like(acc_ref)

    a = a_ref[...]
    # Fused pre-activation on the A (patch) tile, computed directly in bf16
    # (bf16 VALUs on v6e/v7x; Mosaic inserts the casts it needs on v5e).
    # relu(0) == lrelu(0) == 0, so this commutes with the zero padding used
    # for both the spatial conv padding and the K/M tile padding.
    if pre_act == "lrelu":
        a = jnp.where(a > 0, a, a * 0.2)
    elif pre_act == "relu":
        a = jnp.maximum(a, 0)
    elif pre_act is not None:
        raise ValueError(pre_act)

    acc_ref[...] += jnp.dot(a, b_ref[...], preferred_element_type=jnp.float32)

    @pl.when(pl.program_id(2) == pl.num_programs(2) - 1)
    def _():
        r = acc_ref[...] + bias_ref[...]          # f32 bias add
        if post_act == "tanh":
            r = jnp.tanh(r)                       # EUP
        o_ref[...] = r.astype(o_ref.dtype)


def gemm_bias(a, b, bias, pre_act=None, post_act=None, out_dtype=jnp.bfloat16):
    """post_act(pre_act(a) @ b + bias) as a tiled Pallas GEMM.

    Operands are cast to bf16 for the MXU; accumulation stays f32.  M/K/N are
    zero-padded to a near-equal tile grid (N to a multiple of 128 for
    lane-dense stores; when Np <= 512 the whole N fits one tile so there is no
    j axis and the A tile is fetched exactly once per (i, k)).
    """
    M, K = a.shape
    K2, N = b.shape
    assert K == K2
    tm, Mp = _split_even(M, 512, 16)    # 16-aligned: native bf16 sublane tile
    tk, Kp = _split_even(K, 512, 128)
    tn, Np = _split_even(N, 512, 128)

    a_p = jnp.pad(a.astype(jnp.bfloat16), ((0, Mp - M), (0, Kp - K)))
    b_p = jnp.pad(b.astype(jnp.bfloat16), ((0, Kp - K), (0, Np - N)))
    bias_p = jnp.pad(bias.astype(jnp.float32), (0, Np - N)).reshape(1, Np)

    out = pl.pallas_call(
        functools.partial(_gemm_kernel, pre_act=pre_act, post_act=post_act),
        out_shape=jax.ShapeDtypeStruct((Mp, Np), out_dtype),
        grid_spec=pltpu.PrefetchScalarGridSpec(
            num_scalar_prefetch=0,
            grid=(Mp // tm, Np // tn, Kp // tk),
            in_specs=[pl.BlockSpec((tm, tk), lambda i, j, k: (i, k)),
                      pl.BlockSpec((tk, tn), lambda i, j, k: (k, j)),
                      pl.BlockSpec((1, tn), lambda i, j, k: (0, j))],
            out_specs=pl.BlockSpec((tm, tn), lambda i, j, k: (i, j)),
            scratch_shapes=[pltpu.VMEM((tm, tn), jnp.float32)]),
        compiler_params=pltpu.CompilerParams(
            dimension_semantics=("parallel", "parallel", "arbitrary")),
    )(a_p, b_p, bias_p)
    return out[:M, :N]


# ------------------------------ BatchNorm2d ---------------------------------

def _bn_stats_kernel(x_ref, sum_ref, sq_ref, s_acc, q_acc):
    @pl.when(pl.program_id(0) == 0)
    def _():
        s_acc[...] = jnp.zeros_like(s_acc)
        q_acc[...] = jnp.zeros_like(q_acc)

    x = x_ref[...].astype(jnp.float32)                 # (tr, lane) bf16 -> f32
    x3 = x.reshape(x.shape[0] // 8, 8, x.shape[1])     # group whole vregs
    s_acc[...] += jnp.sum(x3, axis=0)                  # pure VALU adds
    q_acc[...] += jnp.sum(x3 * x3, axis=0)

    @pl.when(pl.program_id(0) == pl.num_programs(0) - 1)
    def _():
        # Single cross-sublane (XLU) reduce for the whole pass.
        sum_ref[...] = jnp.sum(s_acc[...], axis=0, keepdims=True)
        sq_ref[...] = jnp.sum(q_acc[...], axis=0, keepdims=True)


def _scale_shift_kernel(x_ref, sc_ref, sh_ref, o_ref):
    o_ref[...] = (x_ref[...].astype(jnp.float32) * sc_ref[...]
                  + sh_ref[...]).astype(o_ref.dtype)


def batchnorm_nhwc(x, gamma, beta, eps=1e-5):
    """BatchNorm2d with training-mode (biased) batch statistics.

    The bf16 activation is viewed lane-dense: when C divides 128 the (M, C)
    matrix is reshaped to rows of g = 128 // C pixels so every load/store uses
    full 128-lane vregs (full vst) instead of masked sub-128 accesses.  All
    statistics accumulate in f32 in VMEM; HBM traffic stays bf16.
    """
    N, H, W, C = x.shape
    M = N * H * W
    if C % 128 == 0:
        lane, g = C, 1
    elif 128 % C == 0:
        lane, g = 128, 128 // C
    else:                       # fallback: correct, just not lane-dense
        lane, g = C, 1

    flat = x.astype(jnp.bfloat16).reshape(-1)          # free reshape (row-major)
    rows = -(-(M * C) // lane)
    tr, rows_p = _split_even(rows, 2048, 16)
    flat = jnp.pad(flat, (0, rows_p * lane - M * C))   # zero pad: no stat bias
    x2 = flat.reshape(rows_p, lane)

    grid = (rows_p // tr,)
    row_spec = pl.BlockSpec((tr, lane), lambda i: (i, 0))
    vec_spec = pl.BlockSpec((1, lane), lambda i: (0, 0))

    s, ss = pl.pallas_call(
        _bn_stats_kernel,
        out_shape=(jax.ShapeDtypeStruct((1, lane), jnp.float32),
                   jax.ShapeDtypeStruct((1, lane), jnp.float32)),
        grid_spec=pltpu.PrefetchScalarGridSpec(
            num_scalar_prefetch=0, grid=grid,
            in_specs=[row_spec],
            out_specs=[vec_spec, vec_spec],
            scratch_shapes=[pltpu.VMEM((8, lane), jnp.float32),
                            pltpu.VMEM((8, lane), jnp.float32)]),
        compiler_params=pltpu.CompilerParams(dimension_semantics=("arbitrary",)),
    )(x2)

    # Tiny per-channel scalar math stays in XLA glue; divide by the TRUE count.
    s = s.reshape(g, C).sum(axis=0)
    ss = ss.reshape(g, C).sum(axis=0)
    mean = s / M
    var = ss / M - mean * mean                        # biased, matches PyTorch
    scale = gamma.astype(jnp.float32) * jax.lax.rsqrt(var + eps)     # (C,)
    shift = beta.astype(jnp.float32) - mean * scale
    scale_l = jnp.tile(scale, g).reshape(1, lane)
    shift_l = jnp.tile(shift, g).reshape(1, lane)

    y = pl.pallas_call(
        _scale_shift_kernel,
        out_shape=jax.ShapeDtypeStruct((rows_p, lane), jnp.bfloat16),
        grid_spec=pltpu.PrefetchScalarGridSpec(
            num_scalar_prefetch=0, grid=grid,
            in_specs=[row_spec, vec_spec, vec_spec],
            out_specs=row_spec),
        compiler_params=pltpu.CompilerParams(dimension_semantics=("parallel",)),
    )(x2, scale_l, shift_l)
    return y.reshape(-1)[:M * C].reshape(N, H, W, C)


# ------------------------ conv helpers (im2col glue) ------------------------

def _im2col(x, kh, kw, stride, pad):
    """x: NHWC -> patches (N*Ho*Wo, kh*kw*C), tap ordering (kh, kw, C)."""
    N, H, W, C = x.shape
    xp = jnp.pad(x, ((0, 0), (pad, pad), (pad, pad), (0, 0)))
    Ho = (H + 2 * pad - kh) // stride + 1
    Wo = (W + 2 * pad - kw) // stride + 1
    cols = []
    for i in range(kh):
        for j in range(kw):
            cols.append(xp[:, i:i + stride * (Ho - 1) + 1:stride,
                              j:j + stride * (Wo - 1) + 1:stride, :])
    patches = jnp.stack(cols, axis=3)          # (N, Ho, Wo, kh*kw, C)
    return patches.reshape(N * Ho * Wo, kh * kw * C), (N, Ho, Wo)


def conv2d_nhwc(x, w_oihw, b, stride, pad, pre_act=None,
                out_dtype=jnp.bfloat16):
    """PyTorch-style Conv2d(pre_act(x)). w_oihw: (Cout, Cin, KH, KW)."""
    Cout, Cin, KH, KW = w_oihw.shape
    w_mat = jnp.transpose(w_oihw, (2, 3, 1, 0)).reshape(KH * KW * Cin, Cout)
    patches, (N, Ho, Wo) = _im2col(x.astype(jnp.bfloat16), KH, KW, stride, pad)
    y = gemm_bias(patches, w_mat, b, pre_act=pre_act, out_dtype=out_dtype)
    return y.reshape(N, Ho, Wo, Cout)


def conv_transpose2d_nhwc(x, w_iohw, b, pre_act=None, post_act=None,
                          out_dtype=jnp.bfloat16):
    """PyTorch ConvTranspose2d(pre_act(x)) with k=4, stride=2, pad=1.

    Sub-pixel decomposition fused into a SINGLE GEMM: output pixel
    (2i+ry, 2j+rx) only receives kernel taps kh = 3+ry-2*dy, kw = 3+rx-2*dx
    over the 3x3 input neighbourhood (dy, dx) of pixel (i, j).  So one shared
    3x3 stride-1 im2col (pad=1) of the UN-dilated input is multiplied against
    a packed (9*Cin, 4*Cout) weight whose unused taps are zero, producing all
    four sub-pixels at once; a depth-to-space reshuffle in glue finishes.
    """
    Cin, Cout, KH, KW = w_iohw.shape
    assert KH == 4 and KW == 4
    N, H, W, _ = x.shape

    patches, _ = _im2col(x.astype(jnp.bfloat16), 3, 3, 1, 1)   # (N*H*W, 9*Cin)

    wb = jnp.transpose(w_iohw, (2, 3, 0, 1))                   # (4, 4, Cin, Cout)
    zero = jnp.zeros((Cin, Cout), wb.dtype)
    tap_blocks = []
    for dy in range(3):
        for dx in range(3):
            subs = []
            for ry in range(2):
                for rx in range(2):
                    kh = 3 + ry - 2 * dy
                    kw = 3 + rx - 2 * dx
                    subs.append(wb[kh, kw] if (0 <= kh <= 3 and 0 <= kw <= 3)
                                else zero)
            tap_blocks.append(jnp.concatenate(subs, axis=1))   # (Cin, 4*Cout)
    w_mat = jnp.stack(tap_blocks, axis=0).reshape(9 * Cin, 4 * Cout)
    bias4 = jnp.tile(b, 4)                                     # (4*Cout,)

    y = gemm_bias(patches, w_mat, bias4, pre_act=pre_act, post_act=post_act,
                  out_dtype=out_dtype)                         # (N*H*W, 4*Cout)
    y = y.reshape(N, H, W, 2, 2, Cout)                         # (.., ry, rx, c)
    y = jnp.transpose(y, (0, 1, 3, 2, 4, 5))                   # (N,H,ry,W,rx,c)
    return y.reshape(N, 2 * H, 2 * W, Cout)


def linear(x, w_torch, b):
    """nn.Linear: x @ w.T + b.  Tiny problems skip the Pallas launch."""
    M, K = x.shape
    Nout = w_torch.shape[0]
    if M * K * Nout < (1 << 20):    # mostly-padded GEMM: plain XLA dot is faster
        return jnp.dot(x.astype(jnp.float32), w_torch.astype(jnp.float32).T) + b
    return gemm_bias(x, w_torch.T, b, out_dtype=jnp.float32)


# ------------------------------- parameters --------------------------------

def init_params(key, d, feat_dim, fc_in):
    names_shapes = {
        "conv1_w": (d, 3, 4, 4),            "conv1_b": (d,),
        "conv2_w": (2 * d, d, 4, 4),        "conv2_b": (2 * d,),
        "conv3_w": (4 * d, 2 * d, 4, 4),    "conv3_b": (4 * d,),
        "conv4_w": (8 * d, 4 * d, 4, 4),    "conv4_b": (8 * d,),
        "fc1_w": (feat_dim, fc_in),         "fc1_b": (feat_dim,),
        "deconv5_w": (8 * d, 4 * d, 4, 4),  "deconv5_b": (4 * d,),
        "deconv6_w": (8 * d, 2 * d, 4, 4),  "deconv6_b": (2 * d,),
        "deconv7_w": (4 * d, d, 4, 4),      "deconv7_b": (d,),
        "deconv8_w": (2 * d, 3, 4, 4),      "deconv8_b": (3,),
    }
    params = {}
    keys = jax.random.split(key, len(names_shapes))
    for k, (name, shape) in zip(keys, sorted(names_shapes.items())):
        params[name] = 0.05 * jax.random.normal(k, shape, dtype=jnp.float32)
    # BatchNorm affine params (PyTorch default init: gamma=1, beta=0).
    for name, c in [("conv2_bn", 2 * d), ("conv3_bn", 4 * d), ("conv4_bn", 8 * d),
                    ("deconv5_bn", 4 * d), ("deconv6_bn", 2 * d), ("deconv7_bn", d)]:
        params[name + "_g"] = jnp.ones((c,), jnp.float32)
        params[name + "_b"] = jnp.zeros((c,), jnp.float32)
    return params


# -------------------------------- forward ----------------------------------

def unet_v5_forward(params, x_nchw):
    p = params
    bs = x_nchw.shape[0]
    x = jnp.transpose(x_nchw, (0, 2, 3, 1))                 # NCHW -> NHWC

    # Encoder.  The leaky_relu feeding each conv is fused into that conv's
    # GEMM as a pre-activation (e1/e2/e3/e4 must stay un-activated: they feed
    # the skip concats / the fc1 bottleneck raw).  All activations live in
    # HBM as bf16.
    e1 = conv2d_nhwc(x, p["conv1_w"], p["conv1_b"], 2, 1)
    e2 = batchnorm_nhwc(
        conv2d_nhwc(e1, p["conv2_w"], p["conv2_b"], 2, 1, pre_act="lrelu"),
        p["conv2_bn_g"], p["conv2_bn_b"])
    e3 = batchnorm_nhwc(
        conv2d_nhwc(e2, p["conv3_w"], p["conv3_b"], 2, 1, pre_act="lrelu"),
        p["conv3_bn_g"], p["conv3_bn_b"])
    e4 = batchnorm_nhwc(
        conv2d_nhwc(e3, p["conv4_w"], p["conv4_b"], 2, 1, pre_act="lrelu"),
        p["conv4_bn_g"], p["conv4_bn_b"])

    # bottleneck: torch's .view(bs, -1) flattens in (C, H, W) order.
    e4_nchw = jnp.transpose(e4, (0, 3, 1, 2))
    bottleneck = linear(e4_nchw.reshape(bs, -1), p["fc1_w"], p["fc1_b"])

    # Decoder.  relu(concat) == concat(relu, relu), so every relu is fused as
    # a pre-activation into the consuming deconv GEMM; the final tanh is fused
    # into deconv8's epilogue.
    d5 = batchnorm_nhwc(
        conv_transpose2d_nhwc(e4, p["deconv5_w"], p["deconv5_b"], pre_act="relu"),
        p["deconv5_bn_g"], p["deconv5_bn_b"])
    d5 = jnp.concatenate([d5, e3], axis=-1)
    d6 = batchnorm_nhwc(
        conv_transpose2d_nhwc(d5, p["deconv6_w"], p["deconv6_b"], pre_act="relu"),
        p["deconv6_bn_g"], p["deconv6_bn_b"])
    d6 = jnp.concatenate([d6, e2], axis=-1)
    d7 = batchnorm_nhwc(
        conv_transpose2d_nhwc(d6, p["deconv7_w"], p["deconv7_b"], pre_act="relu"),
        p["deconv7_bn_g"], p["deconv7_bn_b"])
    d7 = jnp.concatenate([d7, e1], axis=-1)
    o = conv_transpose2d_nhwc(d7, p["deconv8_w"], p["deconv8_b"],
                              pre_act="relu", post_act="tanh",
                              out_dtype=jnp.float32)

    return jnp.transpose(o, (0, 3, 1, 2)), bottleneck        # back to NCHW


# ---------------------------------- main ------------------------------------

if __name__ == "__main__":
    # Small shapes consistent with the module structure:
    #   d=4, input 16x16 -> e4 is (bs, 8d, 1, 1) -> fc1 in_features = 8*d = 32.
    d = 4
    feat_dim = 32
    bs, H, W = 2, 16, 16
    fc_in = 8 * d * (H // 16) * (W // 16)

    key = jax.random.PRNGKey(0)
    pkey, xkey = jax.random.split(key)
    params = init_params(pkey, d, feat_dim, fc_in)
    x = jax.random.normal(xkey, (bs, 3, H, W), dtype=jnp.float32)

    o, bottleneck = jax.jit(unet_v5_forward)(params, x)
    o, bottleneck = jax.block_until_ready((o, bottleneck))

    assert o.shape == (bs, 3, H, W), o.shape
    assert bottleneck.shape == (bs, feat_dim), bottleneck.shape
    assert bool(jnp.all(jnp.isfinite(o))) and bool(jnp.all(jnp.isfinite(bottleneck)))
    print("KERNEL_OK")
</pallas_src>

<mosaic_0001>
module attributes {stable_mosaic.version = 11 : i64} {
  func.func @_gemm_kernel(%arg0: i32, %arg1: i32, %arg2: i32, %arg3: memref<128x128xbf16, #tpu.memory_space<vmem>>, %arg4: memref<128x128xbf16, #tpu.memory_space<vmem>>, %arg5: memref<1x128xf32, #tpu.memory_space<vmem>>, %arg6: memref<128x128xbf16, #tpu.memory_space<vmem>>, %arg7: memref<128x128xf32, #tpu.memory_space<vmem>>) attributes {dimension_semantics = [#tpu.dimension_semantics<parallel>, #tpu.dimension_semantics<parallel>, #tpu.dimension_semantics<arbitrary>], iteration_bounds = array<i64: 1, 1, 1>, scalar_prefetch = 0 : i64, scratch_operands = 1 : i64, tpu.core_type = #tpu.core_type<tc>, window_params = [{transform_indices = @transform_0, window_bounds = array<i64: 128, 128>}, {transform_indices = @transform_1, window_bounds = array<i64: 128, 128>}, {transform_indices = @transform_2, window_bounds = array<i64: 1, 128>}, {transform_indices = @transform_3, window_bounds = array<i64: 128, 128>}]} {
    %c0_i32 = arith.constant 0 : i32
    %0 = arith.cmpi eq, %arg2, %c0_i32 : i32
    %1 = arith.extui %0 : i1 to i32
    %c0_i32_0 = arith.constant 0 : i32
    %2 = arith.cmpi ne, %1, %c0_i32_0 : i32
    scf.if %2 {
      %cst_10 = arith.constant 0.000000e+00 : f32
      %12 = vector.broadcast %cst_10 : f32 to vector<128x128xf32>
      %c0_11 = arith.constant 0 : index
      %c0_12 = arith.constant 0 : index
      %13 = vector.load %arg7[%c0_11, %c0_12] : memref<128x128xf32, #tpu.memory_space<vmem>>, vector<128x128xf32>
      tpu.vector_store %arg7[%c0_11, %c0_12], %12 {strides = array<i32>} : memref<128x128xf32, #tpu.memory_space<vmem>>, vector<128x128xf32>,
    } else {
    }
    %c0 = arith.constant 0 : index
    %c0_1 = arith.constant 0 : index
    %3 = vector.load %arg3[%c0, %c0_1] : memref<128x128xbf16, #tpu.memory_space<vmem>>, vector<128x128xbf16>
    %c0_2 = arith.constant 0 : index
    %c0_3 = arith.constant 0 : index
    %4 = vector.load %arg7[%c0_2, %c0_3] : memref<128x128xf32, #tpu.memory_space<vmem>>, vector<128x128xf32>
    %c0_4 = arith.constant 0 : index
    %c0_5 = arith.constant 0 : index
    %5 = vector.load %arg4[%c0_4, %c0_5] : memref<128x128xbf16, #tpu.memory_space<vmem>>, vector<128x128xbf16>
    %cst = arith.constant dense<0.000000e+00> : vector<128x128xf32>
    %6 = tpu.matmul %3, %5, %cst {dimension_numbers = #tpu.dot_dimension_numbers<[1], [0], [0], [1], [0, 0, 1, 1], [], []>} : vector<128x128xbf16>, vector<128x128xbf16>, vector<128x128xf32> -> vector<128x128xf32>
    %7 = arith.addf %4, %6 : vector<128x128xf32>
    %c0_6 = arith.constant 0 : index
    %c0_7 = arith.constant 0 : index
    %8 = vector.load %arg7[%c0_6, %c0_7] : memref<128x128xf32, #tpu.memory_space<vmem>>, vector<128x128xf32>
    tpu.vector_store %arg7[%c0_6, %c0_7], %7 {strides = array<i32>} : memref<128x128xf32, #tpu.memory_space<vmem>>, vector<128x128xf32>,
    %c0_i32_8 = arith.constant 0 : i32
    %9 = arith.cmpi eq, %arg2, %c0_i32_8 : i32
    %10 = arith.extui %9 : i1 to i32
    %c0_i32_9 = arith.constant 0 : i32
    %11 = arith.cmpi ne, %10, %c0_i32_9 : i32
    scf.if %11 {
      %c0_10 = arith.constant 0 : index
      %c0_11 = arith.constant 0 : index
      %12 = vector.load %arg7[%c0_10, %c0_11] : memref<128x128xf32, #tpu.memory_space<vmem>>, vector<128x128xf32>
      %c0_12 = arith.constant 0 : index
      %c0_13 = arith.constant 0 : index
      %13 = vector.load %arg5[%c0_12, %c0_13] : memref<1x128xf32, #tpu.memory_space<vmem>>, vector<1x128xf32>
      %14 = vector.broadcast %13 : vector<1x128xf32> to vector<128x128xf32>
      %15 = arith.addf %12, %14 : vector<128x128xf32>
      %16 = arith.truncf %15 : vector<128x128xf32> to vector<128x128xbf16>
      %c0_14 = arith.constant 0 : index
      %c0_15 = arith.constant 0 : index
      %17 = vector.load %arg6[%c0_14, %c0_15] : memref<128x128xbf16, #tpu.memory_space<vmem>>, vector<128x128xbf16>
      tpu.vector_store %arg6[%c0_14, %c0_15], %16 {strides = array<i32>} : memref<128x128xbf16, #tpu.memory_space<vmem>>, vector<128x128xbf16>,
    } else {
    }
    return
  }
  func.func @transform_0(%arg0: i32, %arg1: i32, %arg2: i32) -> (i32, i32) {
    %c0_i32 = arith.constant 0 : i32
    return %arg0, %arg2 : i32, i32
  }
  func.func @transform_1(%arg0: i32, %arg1: i32, %arg2: i32) -> (i32, i32) {
    %c0_i32 = arith.constant 0 : i32
    return %arg2, %arg1 : i32, i32
  }
  func.func @transform_2(%arg0: i32, %arg1: i32, %arg2: i32) -> (i32, i32) {
    %c0_i32 = arith.constant 0 : i32
    %c0_i32_0 = arith.constant 0 : i32
    return %c0_i32, %arg1 : i32, i32
  }
  func.func @transform_3(%arg0: i32, %arg1: i32, %arg2: i32) -> (i32, i32) {
    %c0_i32 = arith.constant 0 : i32
    return %arg0, %arg1 : i32, i32
  }
}

module attributes {stable_mosaic.version = 11 : i64} {
  func.func @_gemm_kernel(%arg0: i32, %arg1: i32, %arg2: i32, %arg3: memref<32x128xbf16, #tpu.memory_space<vmem>>, %arg4: memref<128x128xbf16, #tpu.memory_space<vmem>>, %arg5: memref<1x128xf32, #tpu.memory_space<vmem>>, %arg6: memref<32x128xbf16, #tpu.memory_space<vmem>>, %arg7: memref<32x128xf32, #tpu.memory_space<vmem>>) attributes {dimension_semantics = [#tpu.dimension_semantics<parallel>, #tpu.dimension_semantics<parallel>, #tpu.dimension_semantics<arbitrary>], iteration_bounds = array<i64: 1, 1, 1>, scalar_prefetch = 0 : i64, scratch_operands = 1 : i64, tpu.core_type = #tpu.core_type<tc>, window_params = [{transform_indices = @transform_0, window_bounds = array<i64: 32, 128>}, {transform_indices = @transform_1, window_bounds = array<i64: 128, 128>}, {transform_indices = @transform_2, window_bounds = array<i64: 1, 128>}, {transform_indices = @transform_3, window_bounds = array<i64: 32, 128>}]} {
    %c0_i32 = arith.constant 0 : i32
    %0 = arith.cmpi eq, %arg2, %c0_i32 : i32
    %1 = arith.extui %0 : i1 to i32
    %c0_i32_0 = arith.constant 0 : i32
    %2 = arith.cmpi ne, %1, %c0_i32_0 : i32
    scf.if %2 {
      %cst_12 = arith.constant 0.000000e+00 : f32
      %17 = vector.broadcast %cst_12 : f32 to vector<32x128xf32>
      %c0_13 = arith.constant 0 : index
      %c0_14 = arith.constant 0 : index
      %18 = vector.load %arg7[%c0_13, %c0_14] : memref<32x128xf32, #tpu.memory_space<vmem>>, vector<32x128xf32>
      tpu.vector_store %arg7[%c0_13, %c0_14], %17 {strides = array<i32>} : memref<32x128xf32, #tpu.memory_space<vmem>>, vector<32x128xf32>,
    } else {
    }
    %c0 = arith.constant 0 : index
    %c0_1 = arith.constant 0 : index
    %3 = vector.load %arg3[%c0, %c0_1] : memref<32x128xbf16, #tpu.memory_space<vmem>>, vector<32x128xbf16>
    %cst = arith.constant 0.000000e+00 : bf16
    %4 = vector.broadcast %cst : bf16 to vector<32x128xbf16>
    %5 = arith.cmpf ogt, %3, %4 : vector<32x128xbf16>
    %cst_2 = arith.constant 2.001950e-01 : bf16
    %6 = vector.broadcast %cst_2 : bf16 to vector<32x128xbf16>
    %7 = arith.mulf %3, %6 : vector<32x128xbf16>
    %8 = arith.select %5, %3, %7 : vector<32x128xi1>, vector<32x128xbf16>
    %c0_3 = arith.constant 0 : index
    %c0_4 = arith.constant 0 : index
    %9 = vector.load %arg7[%c0_3, %c0_4] : memref<32x128xf32, #tpu.memory_space<vmem>>, vector<32x128xf32>
    %c0_5 = arith.constant 0 : index
    %c0_6 = arith.constant 0 : index
    %10 = vector.load %arg4[%c0_5, %c0_6] : memref<128x128xbf16, #tpu.memory_space<vmem>>, vector<128x128xbf16>
    %cst_7 = arith.constant dense<0.000000e+00> : vector<32x128xf32>
    %11 = tpu.matmul %8, %10, %cst_7 {dimension_numbers = #tpu.dot_dimension_numbers<[1], [0], [0], [1], [0, 0, 1, 1], [], []>} : vector<32x128xbf16>, vector<128x128xbf16>, vector<32x128xf32> -> vector<32x128xf32>
    %12 = arith.addf %9, %11 : vector<32x128xf32>
    %c0_8 = arith.constant 0 : index
    %c0_9 = arith.constant 0 : index
    %13 = vector.load %arg7[%c0_8, %c0_9] : memref<32x128xf32, #tpu.memory_space<vmem>>, vector<32x128xf32>
    tpu.vector_store %arg7[%c0_8, %c0_9], %12 {strides = array<i32>} : memref<32x128xf32, #tpu.memory_space<vmem>>, vector<32x128xf32>,
    %c0_i32_10 = arith.constant 0 : i32
    %14 = arith.cmpi eq, %arg2, %c0_i32_10 : i32
    %15 = arith.extui %14 : i1 to i32
    %c0_i32_11 = arith.constant 0 : i32
    %16 = arith.cmpi ne, %15, %c0_i32_11 : i32
    scf.if %16 {
      %c0_12 = arith.constant 0 : index
      %c0_13 = arith.constant 0 : index
      %17 = vector.load %arg7[%c0_12, %c0_13] : memref<32x128xf32, #tpu.memory_space<vmem>>, vector<32x128xf32>
      %c0_14 = arith.constant 0 : index
      %c0_15 = arith.constant 0 : index
      %18 = vector.load %arg5[%c0_14, %c0_15] : memref<1x128xf32, #tpu.memory_space<vmem>>, vector<1x128xf32>
      %19 = vector.broadcast %18 : vector<1x128xf32> to vector<32x128xf32>
      %20 = arith.addf %17, %19 : vector<32x128xf32>
      %21 = arith.truncf %20 : vector<32x128xf32> to vector<32x128xbf16>
      %c0_16 = arith.constant 0 : index
      %c0_17 = arith.constant 0 : index
      %22 = vector.load %arg6[%c0_16, %c0_17] : memref<32x128xbf16, #tpu.memory_space<vmem>>, vector<32x128xbf16>
      tpu.vector_store %arg6[%c0_16, %c0_17], %21 {strides = array<i32>} : memref<32x128xbf16, #tpu.memory_space<vmem>>, vector<32x128xbf16>,
    } else {
    }
    return
  }
  func.func @transform_0(%arg0: i32, %arg1: i32, %arg2: i32) -> (i32, i32) {
    %c0_i32 = arith.constant 0 : i32
    return %arg0, %arg2 : i32, i32
  }
  func.func @transform_1(%arg0: i32, %arg1: i32, %arg2: i32) -> (i32, i32) {
    %c0_i32 = arith.constant 0 : i32
    return %arg2, %arg1 : i32, i32
  }
  func.func @transform_2(%arg0: i32, %arg1: i32, %arg2: i32) -> (i32, i32) {
    %c0_i32 = arith.constant 0 : i32
    %c0_i32_0 = arith.constant 0 : i32
    return %c0_i32, %arg1 : i32, i32
  }
  func.func @transform_3(%arg0: i32, %arg1: i32, %arg2: i32) -> (i32, i32) {
    %c0_i32 = arith.constant 0 : i32
    return %arg0, %arg1 : i32, i32
  }
}

module attributes {stable_mosaic.version = 11 : i64} {
  func.func @_bn_stats_kernel(%arg0: i32, %arg1: memref<16x128xbf16, #tpu.memory_space<vmem>>, %arg2: memref<1x128xf32, #tpu.memory_space<vmem>>, %arg3: memref<1x128xf32, #tpu.memory_space<vmem>>, %arg4: memref<8x128xf32, #tpu.memory_space<vmem>>, %arg5: memref<8x128xf32, #tpu.memory_space<vmem>>) attributes {dimension_semantics = [#tpu.dimension_semantics<arbitrary>], iteration_bounds = array<i64: 1>, scalar_prefetch = 0 : i64, scratch_operands = 2 : i64, tpu.core_type = #tpu.core_type<tc>, window_params = [{transform_indices = @transform_0, window_bounds = array<i64: 16, 128>}, {pipeline_mode = #tpu.pipeline_mode<synchronous>, transform_indices = @transform_1, window_bounds = array<i64: 1, 128>}, {pipeline_mode = #tpu.pipeline_mode<synchronous>, transform_indices = @transform_2, window_bounds = array<i64: 1, 128>}]} {
    %c0_i32 = arith.constant 0 : i32
    %0 = arith.cmpi eq, %arg0, %c0_i32 : i32
    %1 = arith.extui %0 : i1 to i32
    %c0_i32_0 = arith.constant 0 : i32
    %2 = arith.cmpi ne, %1, %c0_i32_0 : i32
    scf.if %2 {
      %cst_13 = arith.constant 0.000000e+00 : f32
      %18 = vector.broadcast %cst_13 : f32 to vector<8x128xf32>
      %c0_14 = arith.constant 0 : index
      %c0_15 = arith.constant 0 : index
      %19 = vector.load %arg4[%c0_14, %c0_15] : memref<8x128xf32, #tpu.memory_space<vmem>>, vector<8x128xf32>
      tpu.vector_store %arg4[%c0_14, %c0_15], %18 {strides = array<i32>} : memref<8x128xf32, #tpu.memory_space<vmem>>, vector<8x128xf32>,
      %cst_16 = arith.constant 0.000000e+00 : f32
      %20 = vector.broadcast %cst_16 : f32 to vector<8x128xf32>
      %c0_17 = arith.constant 0 : index
      %c0_18 = arith.constant 0 : index
      %21 = vector.load %arg5[%c0_17, %c0_18] : memref<8x128xf32, #tpu.memory_space<vmem>>, vector<8x128xf32>
      tpu.vector_store %arg5[%c0_17, %c0_18], %20 {strides = array<i32>} : memref<8x128xf32, #tpu.memory_space<vmem>>, vector<8x128xf32>,
    } else {
    }
    %c0 = arith.constant 0 : index
    %c0_1 = arith.constant 0 : index
    %3 = vector.load %arg1[%c0, %c0_1] : memref<16x128xbf16, #tpu.memory_space<vmem>>, vector<16x128xbf16>
    %4 = arith.extf %3 : vector<16x128xbf16> to vector<16x128xf32>
    %5 = vector.shape_cast %4 : vector<16x128xf32> to vector<2x8x128xf32>
    %c0_2 = arith.constant 0 : index
    %c0_3 = arith.constant 0 : index
    %6 = vector.load %arg4[%c0_2, %c0_3] : memref<8x128xf32, #tpu.memory_space<vmem>>, vector<8x128xf32>
    %cst = arith.constant dense<0.000000e+00> : vector<8x128xf32>
    %7 = vector.multi_reduction <add>, %5, %cst [0] : vector<2x8x128xf32> to vector<8x128xf32>
    %8 = arith.addf %6, %7 : vector<8x128xf32>
    %c0_4 = arith.constant 0 : index
    %c0_5 = arith.constant 0 : index
    %9 = vector.load %arg4[%c0_4, %c0_5] : memref<8x128xf32, #tpu.memory_space<vmem>>, vector<8x128xf32>
    tpu.vector_store %arg4[%c0_4, %c0_5], %8 {strides = array<i32>} : memref<8x128xf32, #tpu.memory_space<vmem>>, vector<8x128xf32>,
    %c0_6 = arith.constant 0 : index
    %c0_7 = arith.constant 0 : index
    %10 = vector.load %arg5[%c0_6, %c0_7] : memref<8x128xf32, #tpu.memory_space<vmem>>, vector<8x128xf32>
    %11 = arith.mulf %5, %5 : vector<2x8x128xf32>
    %cst_8 = arith.constant dense<0.000000e+00> : vector<8x128xf32>
    %12 = vector.multi_reduction <add>, %11, %cst_8 [0] : vector<2x8x128xf32> to vector<8x128xf32>
    %13 = arith.addf %10, %12 : vector<8x128xf32>
    %c0_9 = arith.constant 0 : index
    %c0_10 = arith.constant 0 : index
    %14 = vector.load %arg5[%c0_9, %c0_10] : memref<8x128xf32, #tpu.memory_space<vmem>>, vector<8x128xf32>
    tpu.vector_store %arg5[%c0_9, %c0_10], %13 {strides = array<i32>} : memref<8x128xf32, #tpu.memory_space<vmem>>, vector<8x128xf32>,
    %c0_i32_11 = arith.constant 0 : i32
    %15 = arith.cmpi eq, %arg0, %c0_i32_11 : i32
    %16 = arith.extui %15 : i1 to i32
    %c0_i32_12 = arith.constant 0 : i32
    %17 = arith.cmpi ne, %16, %c0_i32_12 : i32
    scf.if %17 {
      %c0_13 = arith.constant 0 : index
      %c0_14 = arith.constant 0 : index
      %18 = vector.load %arg4[%c0_13, %c0_14] : memref<8x128xf32, #tpu.memory_space<vmem>>, vector<8x128xf32>
      %cst_15 = arith.constant dense<0.000000e+00> : vector<128xf32>
      %19 = vector.multi_reduction <add>, %18, %cst_15 [0] : vector<8x128xf32> to vector<128xf32>
      %20 = vector.shape_cast %19 : vector<128xf32> to vector<1x128xf32>
      %c0_16 = arith.constant 0 : index
      %c0_17 = arith.constant 0 : index
      %21 = vector.load %arg2[%c0_16, %c0_17] : memref<1x128xf32, #tpu.memory_space<vmem>>, vector<1x128xf32>
      tpu.vector_store %arg2[%c0_16, %c0_17], %20 {strides = array<i32>} : memref<1x128xf32, #tpu.memory_space<vmem>>, vector<1x128xf32>,
      %c0_18 = arith.constant 0 : index
      %c0_19 = arith.constant 0 : index
      %22 = vector.load %arg5[%c0_18, %c0_19] : memref<8x128xf32, #tpu.memory_space<vmem>>, vector<8x128xf32>
      %cst_20 = arith.constant dense<0.000000e+00> : vector<128xf32>
      %23 = vector.multi_reduction <add>, %22, %cst_20 [0] : vector<8x128xf32> to vector<128xf32>
      %24 = vector.shape_cast %23 : vector<128xf32> to vector<1x128xf32>
      %c0_21 = arith.constant 0 : index
      %c0_22 = arith.constant 0 : index
      %25 = vector.load %arg3[%c0_21, %c0_22] : memref<1x128xf32, #tpu.memory_space<vmem>>, vector<1x128xf32>
      tpu.vector_store %arg3[%c0_21, %c0_22], %24 {strides = array<i32>} : memref<1x128xf32, #tpu.memory_space<vmem>>, vector<1x128xf32>,
    } else {
    }
    return
  }
  func.func @transform_0(%arg0: i32) -> (i32, i32) {
    %c0_i32 = arith.constant 0 : i32
    %c0_i32_0 = arith.constant 0 : i32
    return %arg0, %c0_i32 : i32, i32
  }
  func.func @transform_1(%arg0: i32) -> (i32, i32) {
    %c0_i32 = arith.constant 0 : i32
    %c0_i32_0 = arith.constant 0 : i32
    %c0_i32_1 = arith.constant 0 : i32
    return %c0_i32, %c0_i32_0 : i32, i32
  }
  func.func @transform_2(%arg0: i32) -> (i32, i32) {
    %c0_i32 = arith.constant 0 : i32
    %c0_i32_0 = arith.constant 0 : i32
    %c0_i32_1 = arith.constant 0 : i32
    return %c0_i32, %c0_i32_0 : i32, i32
  }
}

module attributes {stable_mosaic.version = 11 : i64} {
  func.func @_scale_shift_kernel(%arg0: i32, %arg1: memref<16x128xbf16, #tpu.memory_space<vmem>>, %arg2: memref<1x128xf32, #tpu.memory_space<vmem>>, %arg3: memref<1x128xf32, #tpu.memory_space<vmem>>, %arg4: memref<16x128xbf16, #tpu.memory_space<vmem>>) attributes {dimension_semantics = [#tpu.dimension_semantics<parallel>], iteration_bounds = array<i64: 1>, scalar_prefetch = 0 : i64, scratch_operands = 0 : i64, tpu.core_type = #tpu.core_type<tc>, window_params = [{transform_indices = @transform_0, window_bounds = array<i64: 16, 128>}, {pipeline_mode = #tpu.pipeline_mode<synchronous>, transform_indices = @transform_1, window_bounds = array<i64: 1, 128>}, {pipeline_mode = #tpu.pipeline_mode<synchronous>, transform_indices = @transform_2, window_bounds = array<i64: 1, 128>}, {transform_indices = @transform_3, window_bounds = array<i64: 16, 128>}]} {
    %c0 = arith.constant 0 : index
    %c0_0 = arith.constant 0 : index
    %0 = vector.load %arg1[%c0, %c0_0] : memref<16x128xbf16, #tpu.memory_space<vmem>>, vector<16x128xbf16>
    %1 = arith.extf %0 : vector<16x128xbf16> to vector<16x128xf32>
    %c0_1 = arith.constant 0 : index
    %c0_2 = arith.constant 0 : index
    %2 = vector.load %arg2[%c0_1, %c0_2] : memref<1x128xf32, #tpu.memory_space<vmem>>, vector<1x128xf32>
    %3 = vector.broadcast %2 : vector<1x128xf32> to vector<16x128xf32>
    %4 = arith.mulf %1, %3 : vector<16x128xf32>
    %c0_3 = arith.constant 0 : index
    %c0_4 = arith.constant 0 : index
    %5 = vector.load %arg3[%c0_3, %c0_4] : memref<1x128xf32, #tpu.memory_space<vmem>>, vector<1x128xf32>
    %6 = vector.broadcast %5 : vector<1x128xf32> to vector<16x128xf32>
    %7 = arith.addf %4, %6 : vector<16x128xf32>
    %8 = arith.truncf %7 : vector<16x128xf32> to vector<16x128xbf16>
    %c0_5 = arith.constant 0 : index
    %c0_6 = arith.constant 0 : index
    %9 = vector.load %arg4[%c0_5, %c0_6] : memref<16x128xbf16, #tpu.memory_space<vmem>>, vector<16x128xbf16>
    tpu.vector_store %arg4[%c0_5, %c0_6], %8 {strides = array<i32>} : memref<16x128xbf16, #tpu.memory_space<vmem>>, vector<16x128xbf16>,
    return
  }
  func.func @transform_0(%arg0: i32) -> (i32, i32) {
    %c0_i32 = arith.constant 0 : i32
    %c0_i32_0 = arith.constant 0 : i32
    return %arg0, %c0_i32 : i32, i32
  }
  func.func @transform_1(%arg0: i32) -> (i32, i32) {
    %c0_i32 = arith.constant 0 : i32
    %c0_i32_0 = arith.constant 0 : i32
    %c0_i32_1 = arith.constant 0 : i32
    return %c0_i32, %c0_i32_0 : i32, i32
  }
  func.func @transform_2(%arg0: i32) -> (i32, i32) {
    %c0_i32 = arith.constant 0 : i32
    %c0_i32_0 = arith.constant 0 : i32
    %c0_i32_1 = arith.constant 0 : i32
    return %c0_i32, %c0_i32_0 : i32, i32
  }
  func.func @transform_3(%arg0: i32) -> (i32, i32) {
    %c0_i32 = arith.constant 0 : i32
    %c0_i32_0 = arith.constant 0 : i32
    return %arg0, %c0_i32 : i32, i32
  }
}

module attributes {stable_mosaic.version = 11 : i64} {
  func.func @_gemm_kernel(%arg0: i32, %arg1: i32, %arg2: i32, %arg3: memref<16x128xbf16, #tpu.memory_space<vmem>>, %arg4: memref<128x128xbf16, #tpu.memory_space<vmem>>, %arg5: memref<1x128xf32, #tpu.memory_space<vmem>>, %arg6: memref<16x128xbf16, #tpu.memory_space<vmem>>, %arg7: memref<16x128xf32, #tpu.memory_space<vmem>>) attributes {dimension_semantics = [#tpu.dimension_semantics<parallel>, #tpu.dimension_semantics<parallel>, #tpu.dimension_semantics<arbitrary>], iteration_bounds = array<i64: 1, 1, 1>, scalar_prefetch = 0 : i64, scratch_operands = 1 : i64, tpu.core_type = #tpu.core_type<tc>, window_params = [{transform_indices = @transform_0, window_bounds = array<i64: 16, 128>}, {transform_indices = @transform_1, window_bounds = array<i64: 128, 128>}, {transform_indices = @transform_2, window_bounds = array<i64: 1, 128>}, {transform_indices = @transform_3, window_bounds = array<i64: 16, 128>}]} {
    %c0_i32 = arith.constant 0 : i32
    %0 = arith.cmpi eq, %arg2, %c0_i32 : i32
    %1 = arith.extui %0 : i1 to i32
    %c0_i32_0 = arith.constant 0 : i32
    %2 = arith.cmpi ne, %1, %c0_i32_0 : i32
    scf.if %2 {
      %cst_12 = arith.constant 0.000000e+00 : f32
      %17 = vector.broadcast %cst_12 : f32 to vector<16x128xf32>
      %c0_13 = arith.constant 0 : index
      %c0_14 = arith.constant 0 : index
      %18 = vector.load %arg7[%c0_13, %c0_14] : memref<16x128xf32, #tpu.memory_space<vmem>>, vector<16x128xf32>
      tpu.vector_store %arg7[%c0_13, %c0_14], %17 {strides = array<i32>} : memref<16x128xf32, #tpu.memory_space<vmem>>, vector<16x128xf32>,
    } else {
    }
    %c0 = arith.constant 0 : index
    %c0_1 = arith.constant 0 : index
    %3 = vector.load %arg3[%c0, %c0_1] : memref<16x128xbf16, #tpu.memory_space<vmem>>, vector<16x128xbf16>
    %cst = arith.constant 0.000000e+00 : bf16
    %4 = vector.broadcast %cst : bf16 to vector<16x128xbf16>
    %5 = arith.cmpf ogt, %3, %4 : vector<16x128xbf16>
    %cst_2 = arith.constant 2.001950e-01 : bf16
    %6 = vector.broadcast %cst_2 : bf16 to vector<16x128xbf16>
    %7 = arith.mulf %3, %6 : vector<16x128xbf16>
    %8 = arith.select %5, %3, %7 : vector<16x128xi1>, vector<16x128xbf16>
    %c0_3 = arith.constant 0 : index
    %c0_4 = arith.constant 0 : index
    %9 = vector.load %arg7[%c0_3, %c0_4] : memref<16x128xf32, #tpu.memory_space<vmem>>, vector<16x128xf32>
    %c0_5 = arith.constant 0 : index
    %c0_6 = arith.constant 0 : index
    %10 = vector.load %arg4[%c0_5, %c0_6] : memref<128x128xbf16, #tpu.memory_space<vmem>>, vector<128x128xbf16>
    %cst_7 = arith.constant dense<0.000000e+00> : vector<16x128xf32>
    %11 = tpu.matmul %8, %10, %cst_7 {dimension_numbers = #tpu.dot_dimension_numbers<[1], [0], [0], [1], [0, 0, 1, 1], [], []>} : vector<16x128xbf16>, vector<128x128xbf16>, vector<16x128xf32> -> vector<16x128xf32>
    %12 = arith.addf %9, %11 : vector<16x128xf32>
    %c0_8 = arith.constant 0 : index
    %c0_9 = arith.constant 0 : index
    %13 = vector.load %arg7[%c0_8, %c0_9] : memref<16x128xf32, #tpu.memory_space<vmem>>, vector<16x128xf32>
    tpu.vector_store %arg7[%c0_8, %c0_9], %12 {strides = array<i32>} : memref<16x128xf32, #tpu.memory_space<vmem>>, vector<16x128xf32>,
    %c0_i32_10 = arith.constant 0 : i32
    %14 = arith.cmpi eq, %arg2, %c0_i32_10 : i32
    %15 = arith.extui %14 : i1 to i32
    %c0_i32_11 = arith.constant 0 : i32
    %16 = arith.cmpi ne, %15, %c0_i32_11 : i32
    scf.if %16 {
      %c0_12 = arith.constant 0 : index
      %c0_13 = arith.constant 0 : index
      %17 = vector.load %arg7[%c0_12, %c0_13] : memref<16x128xf32, #tpu.memory_space<vmem>>, vector<16x128xf32>
      %c0_14 = arith.constant 0 : index
      %c0_15 = arith.constant 0 : index
      %18 = vector.load %arg5[%c0_14, %c0_15] : memref<1x128xf32, #tpu.memory_space<vmem>>, vector<1x128xf32>
      %19 = vector.broadcast %18 : vector<1x128xf32> to vector<16x128xf32>
      %20 = arith.addf %17, %19 : vector<16x128xf32>
      %21 = arith.truncf %20 : vector<16x128xf32> to vector<16x128xbf16>
      %c0_16 = arith.constant 0 : index
      %c0_17 = arith.constant 0 : index
      %22 = vector.load %arg6[%c0_16, %c0_17] : memref<16x128xbf16, #tpu.memory_space<vmem>>, vector<16x128xbf16>
      tpu.vector_store %arg6[%c0_16, %c0_17], %21 {strides = array<i32>} : memref<16x128xbf16, #tpu.memory_space<vmem>>, vector<16x128xbf16>,
    } else {
    }
    return
  }
  func.func @transform_0(%arg0: i32, %arg1: i32, %arg2: i32) -> (i32, i32) {
    %c0_i32 = arith.constant 0 : i32
    return %arg0, %arg2 : i32, i32
  }
  func.func @transform_1(%arg0: i32, %arg1: i32, %arg2: i32) -> (i32, i32) {
    %c0_i32 = arith.constant 0 : i32
    return %arg2, %arg1 : i32, i32
  }
  func.func @transform_2(%arg0: i32, %arg1: i32, %arg2: i32) -> (i32, i32) {
    %c0_i32 = arith.constant 0 : i32
    %c0_i32_0 = arith.constant 0 : i32
    return %c0_i32, %arg1 : i32, i32
  }
  func.func @transform_3(%arg0: i32, %arg1: i32, %arg2: i32) -> (i32, i32) {
    %c0_i32 = arith.constant 0 : i32
    return %arg0, %arg1 : i32, i32
  }
}

module attributes {stable_mosaic.version = 11 : i64} {
  func.func @_gemm_kernel(%arg0: i32, %arg1: i32, %arg2: i32, %arg3: memref<16x256xbf16, #tpu.memory_space<vmem>>, %arg4: memref<256x128xbf16, #tpu.memory_space<vmem>>, %arg5: memref<1x128xf32, #tpu.memory_space<vmem>>, %arg6: memref<16x128xbf16, #tpu.memory_space<vmem>>, %arg7: memref<16x128xf32, #tpu.memory_space<vmem>>) attributes {dimension_semantics = [#tpu.dimension_semantics<parallel>, #tpu.dimension_semantics<parallel>, #tpu.dimension_semantics<arbitrary>], iteration_bounds = array<i64: 1, 1, 1>, scalar_prefetch = 0 : i64, scratch_operands = 1 : i64, tpu.core_type = #tpu.core_type<tc>, window_params = [{transform_indices = @transform_0, window_bounds = array<i64: 16, 256>}, {transform_indices = @transform_1, window_bounds = array<i64: 256, 128>}, {transform_indices = @transform_2, window_bounds = array<i64: 1, 128>}, {transform_indices = @transform_3, window_bounds = array<i64: 16, 128>}]} {
    %c0_i32 = arith.constant 0 : i32
    %0 = arith.cmpi eq, %arg2, %c0_i32 : i32
    %1 = arith.extui %0 : i1 to i32
    %c0_i32_0 = arith.constant 0 : i32
    %2 = arith.cmpi ne, %1, %c0_i32_0 : i32
    scf.if %2 {
      %cst_12 = arith.constant 0.000000e+00 : f32
      %17 = vector.broadcast %cst_12 : f32 to vector<16x128xf32>
      %c0_13 = arith.constant 0 : index
      %c0_14 = arith.constant 0 : index
      %18 = vector.load %arg7[%c0_13, %c0_14] : memref<16x128xf32, #tpu.memory_space<vmem>>, vector<16x128xf32>
      tpu.vector_store %arg7[%c0_13, %c0_14], %17 {strides = array<i32>} : memref<16x128xf32, #tpu.memory_space<vmem>>, vector<16x128xf32>,
    } else {
    }
    %c0 = arith.constant 0 : index
    %c0_1 = arith.constant 0 : index
    %3 = vector.load %arg3[%c0, %c0_1] : memref<16x256xbf16, #tpu.memory_space<vmem>>, vector<16x256xbf16>
    %cst = arith.constant 0.000000e+00 : bf16
    %4 = vector.broadcast %cst : bf16 to vector<16x256xbf16>
    %5 = arith.cmpf ogt, %3, %4 : vector<16x256xbf16>
    %cst_2 = arith.constant 2.001950e-01 : bf16
    %6 = vector.broadcast %cst_2 : bf16 to vector<16x256xbf16>
    %7 = arith.mulf %3, %6 : vector<16x256xbf16>
    %8 = arith.select %5, %3, %7 : vector<16x256xi1>, vector<16x256xbf16>
    %c0_3 = arith.constant 0 : index
    %c0_4 = arith.constant 0 : index
    %9 = vector.load %arg7[%c0_3, %c0_4] : memref<16x128xf32, #tpu.memory_space<vmem>>, vector<16x128xf32>
    %c0_5 = arith.constant 0 : index
    %c0_6 = arith.constant 0 : index
    %10 = vector.load %arg4[%c0_5, %c0_6] : memref<256x128xbf16, #tpu.memory_space<vmem>>, vector<256x128xbf16>
    %cst_7 = arith.constant dense<0.000000e+00> : vector<16x128xf32>
    %11 = tpu.matmul %8, %10, %cst_7 {dimension_numbers = #tpu.dot_dimension_numbers<[1], [0], [0], [1], [0, 0, 1, 1], [], []>} : vector<16x256xbf16>, vector<256x128xbf16>, vector<16x128xf32> -> vector<16x128xf32>
    %12 = arith.addf %9, %11 : vector<16x128xf32>
    %c0_8 = arith.constant 0 : index
    %c0_9 = arith.constant 0 : index
    %13 = vector.load %arg7[%c0_8, %c0_9] : memref<16x128xf32, #tpu.memory_space<vmem>>, vector<16x128xf32>
    tpu.vector_store %arg7[%c0_8, %c0_9], %12 {strides = array<i32>} : memref<16x128xf32, #tpu.memory_space<vmem>>, vector<16x128xf32>,
    %c0_i32_10 = arith.constant 0 : i32
    %14 = arith.cmpi eq, %arg2, %c0_i32_10 : i32
    %15 = arith.extui %14 : i1 to i32
    %c0_i32_11 = arith.constant 0 : i32
    %16 = arith.cmpi ne, %15, %c0_i32_11 : i32
    scf.if %16 {
      %c0_12 = arith.constant 0 : index
      %c0_13 = arith.constant 0 : index
      %17 = vector.load %arg7[%c0_12, %c0_13] : memref<16x128xf32, #tpu.memory_space<vmem>>, vector<16x128xf32>
      %c0_14 = arith.constant 0 : index
      %c0_15 = arith.constant 0 : index
      %18 = vector.load %arg5[%c0_14, %c0_15] : memref<1x128xf32, #tpu.memory_space<vmem>>, vector<1x128xf32>
      %19 = vector.broadcast %18 : vector<1x128xf32> to vector<16x128xf32>
      %20 = arith.addf %17, %19 : vector<16x128xf32>
      %21 = arith.truncf %20 : vector<16x128xf32> to vector<16x128xbf16>
      %c0_16 = arith.constant 0 : index
      %c0_17 = arith.constant 0 : index
      %22 = vector.load %arg6[%c0_16, %c0_17] : memref<16x128xbf16, #tpu.memory_space<vmem>>, vector<16x128xbf16>
      tpu.vector_store %arg6[%c0_16, %c0_17], %21 {strides = array<i32>} : memref<16x128xbf16, #tpu.memory_space<vmem>>, vector<16x128xbf16>,
    } else {
    }
    return
  }
  func.func @transform_0(%arg0: i32, %arg1: i32, %arg2: i32) -> (i32, i32) {
    %c0_i32 = arith.constant 0 : i32
    return %arg0, %arg2 : i32, i32
  }
  func.func @transform_1(%arg0: i32, %arg1: i32, %arg2: i32) -> (i32, i32) {
    %c0_i32 = arith.constant 0 : i32
    return %arg2, %arg1 : i32, i32
  }
  func.func @transform_2(%arg0: i32, %arg1: i32, %arg2: i32) -> (i32, i32) {
    %c0_i32 = arith.constant 0 : i32
    %c0_i32_0 = arith.constant 0 : i32
    return %c0_i32, %arg1 : i32, i32
  }
  func.func @transform_3(%arg0: i32, %arg1: i32, %arg2: i32) -> (i32, i32) {
    %c0_i32 = arith.constant 0 : i32
    return %arg0, %arg1 : i32, i32
  }
}

module attributes {stable_mosaic.version = 11 : i64} {
  func.func @_gemm_kernel(%arg0: i32, %arg1: i32, %arg2: i32, %arg3: memref<16x384xbf16, #tpu.memory_space<vmem>>, %arg4: memref<384x128xbf16, #tpu.memory_space<vmem>>, %arg5: memref<1x128xf32, #tpu.memory_space<vmem>>, %arg6: memref<16x128xbf16, #tpu.memory_space<vmem>>, %arg7: memref<16x128xf32, #tpu.memory_space<vmem>>) attributes {dimension_semantics = [#tpu.dimension_semantics<parallel>, #tpu.dimension_semantics<parallel>, #tpu.dimension_semantics<arbitrary>], iteration_bounds = array<i64: 1, 1, 1>, scalar_prefetch = 0 : i64, scratch_operands = 1 : i64, tpu.core_type = #tpu.core_type<tc>, window_params = [{transform_indices = @transform_0, window_bounds = array<i64: 16, 384>}, {transform_indices = @transform_1, window_bounds = array<i64: 384, 128>}, {transform_indices = @transform_2, window_bounds = array<i64: 1, 128>}, {transform_indices = @transform_3, window_bounds = array<i64: 16, 128>}]} {
    %c0_i32 = arith.constant 0 : i32
    %0 = arith.cmpi eq, %arg2, %c0_i32 : i32
    %1 = arith.extui %0 : i1 to i32
    %c0_i32_0 = arith.constant 0 : i32
    %2 = arith.cmpi ne, %1, %c0_i32_0 : i32
    scf.if %2 {
      %cst_11 = arith.constant 0.000000e+00 : f32
      %14 = vector.broadcast %cst_11 : f32 to vector<16x128xf32>
      %c0_12 = arith.constant 0 : index
      %c0_13 = arith.constant 0 : index
      %15 = vector.load %arg7[%c0_12, %c0_13] : memref<16x128xf32, #tpu.memory_space<vmem>>, vector<16x128xf32>
      tpu.vector_store %arg7[%c0_12, %c0_13], %14 {strides = array<i32>} : memref<16x128xf32, #tpu.memory_space<vmem>>, vector<16x128xf32>,
    } else {
    }
    %c0 = arith.constant 0 : index
    %c0_1 = arith.constant 0 : index
    %3 = vector.load %arg3[%c0, %c0_1] : memref<16x384xbf16, #tpu.memory_space<vmem>>, vector<16x384xbf16>
    %cst = arith.constant 0.000000e+00 : bf16
    %4 = vector.broadcast %cst : bf16 to vector<16x384xbf16>
    %5 = arith.maximumf %3, %4 : vector<16x384xbf16>
    %c0_2 = arith.constant 0 : index
    %c0_3 = arith.constant 0 : index
    %6 = vector.load %arg7[%c0_2, %c0_3] : memref<16x128xf32, #tpu.memory_space<vmem>>, vector<16x128xf32>
    %c0_4 = arith.constant 0 : index
    %c0_5 = arith.constant 0 : index
    %7 = vector.load %arg4[%c0_4, %c0_5] : memref<384x128xbf16, #tpu.memory_space<vmem>>, vector<384x128xbf16>
    %cst_6 = arith.constant dense<0.000000e+00> : vector<16x128xf32>
    %8 = tpu.matmul %5, %7, %cst_6 {dimension_numbers = #tpu.dot_dimension_numbers<[1], [0], [0], [1], [0, 0, 1, 1], [], []>} : vector<16x384xbf16>, vector<384x128xbf16>, vector<16x128xf32> -> vector<16x128xf32>
    %9 = arith.addf %6, %8 : vector<16x128xf32>
    %c0_7 = arith.constant 0 : index
    %c0_8 = arith.constant 0 : index
    %10 = vector.load %arg7[%c0_7, %c0_8] : memref<16x128xf32, #tpu.memory_space<vmem>>, vector<16x128xf32>
    tpu.vector_store %arg7[%c0_7, %c0_8], %9 {strides = array<i32>} : memref<16x128xf32, #tpu.memory_space<vmem>>, vector<16x128xf32>,
    %c0_i32_9 = arith.constant 0 : i32
    %11 = arith.cmpi eq, %arg2, %c0_i32_9 : i32
    %12 = arith.extui %11 : i1 to i32
    %c0_i32_10 = arith.constant 0 : i32
    %13 = arith.cmpi ne, %12, %c0_i32_10 : i32
    scf.if %13 {
      %c0_11 = arith.constant 0 : index
      %c0_12 = arith.constant 0 : index
      %14 = vector.load %arg7[%c0_11, %c0_12] : memref<16x128xf32, #tpu.memory_space<vmem>>, vector<16x128xf32>
      %c0_13 = arith.constant 0 : index
      %c0_14 = arith.constant 0 : index
      %15 = vector.load %arg5[%c0_13, %c0_14] : memref<1x128xf32, #tpu.memory_space<vmem>>, vector<1x128xf32>
      %16 = vector.broadcast %15 : vector<1x128xf32> to vector<16x128xf32>
      %17 = arith.addf %14, %16 : vector<16x128xf32>
      %18 = arith.truncf %17 : vector<16x128xf32> to vector<16x128xbf16>
      %c0_15 = arith.constant 0 : index
      %c0_16 = arith.constant 0 : index
      %19 = vector.load %arg6[%c0_15, %c0_16] : memref<16x128xbf16, #tpu.memory_space<vmem>>, vector<16x128xbf16>
      tpu.vector_store %arg6[%c0_15, %c0_16], %18 {strides = array<i32>} : memref<16x128xbf16, #tpu.memory_space<vmem>>, vector<16x128xbf16>,
    } else {
    }
    return
  }
  func.func @transform_0(%arg0: i32, %arg1: i32, %arg2: i32) -> (i32, i32) {
    %c0_i32 = arith.constant 0 : i32
    return %arg0, %arg2 : i32, i32
  }
  func.func @transform_1(%arg0: i32, %arg1: i32, %arg2: i32) -> (i32, i32) {
    %c0_i32 = arith.constant 0 : i32
    return %arg2, %arg1 : i32, i32
  }
  func.func @transform_2(%arg0: i32, %arg1: i32, %arg2: i32) -> (i32, i32) {
    %c0_i32 = arith.constant 0 : i32
    %c0_i32_0 = arith.constant 0 : i32
    return %c0_i32, %arg1 : i32, i32
  }
  func.func @transform_3(%arg0: i32, %arg1: i32, %arg2: i32) -> (i32, i32) {
    %c0_i32 = arith.constant 0 : i32
    return %arg0, %arg1 : i32, i32
  }
}

module attributes {stable_mosaic.version = 11 : i64} {
  func.func @_gemm_kernel(%arg0: i32, %arg1: i32, %arg2: i32, %arg3: memref<32x256xbf16, #tpu.memory_space<vmem>>, %arg4: memref<256x128xbf16, #tpu.memory_space<vmem>>, %arg5: memref<1x128xf32, #tpu.memory_space<vmem>>, %arg6: memref<32x128xbf16, #tpu.memory_space<vmem>>, %arg7: memref<32x128xf32, #tpu.memory_space<vmem>>) attributes {dimension_semantics = [#tpu.dimension_semantics<parallel>, #tpu.dimension_semantics<parallel>, #tpu.dimension_semantics<arbitrary>], iteration_bounds = array<i64: 1, 1, 1>, scalar_prefetch = 0 : i64, scratch_operands = 1 : i64, tpu.core_type = #tpu.core_type<tc>, window_params = [{transform_indices = @transform_0, window_bounds = array<i64: 32, 256>}, {transform_indices = @transform_1, window_bounds = array<i64: 256, 128>}, {transform_indices = @transform_2, window_bounds = array<i64: 1, 128>}, {transform_indices = @transform_3, window_bounds = array<i64: 32, 128>}]} {
    %c0_i32 = arith.constant 0 : i32
    %0 = arith.cmpi eq, %arg2, %c0_i32 : i32
    %1 = arith.extui %0 : i1 to i32
    %c0_i32_0 = arith.constant 0 : i32
    %2 = arith.cmpi ne, %1, %c0_i32_0 : i32
    scf.if %2 {
      %cst_11 = arith.constant 0.000000e+00 : f32
      %14 = vector.broadcast %cst_11 : f32 to vector<32x128xf32>
      %c0_12 = arith.constant 0 : index
      %c0_13 = arith.constant 0 : index
      %15 = vector.load %arg7[%c0_12, %c0_13] : memref<32x128xf32, #tpu.memory_space<vmem>>, vector<32x128xf32>
      tpu.vector_store %arg7[%c0_12, %c0_13], %14 {strides = array<i32>} : memref<32x128xf32, #tpu.memory_space<vmem>>, vector<32x128xf32>,
    } else {
    }
    %c0 = arith.constant 0 : index
    %c0_1 = arith.constant 0 : index
    %3 = vector.load %arg3[%c0, %c0_1] : memref<32x256xbf16, #tpu.memory_space<vmem>>, vector<32x256xbf16>
    %cst = arith.constant 0.000000e+00 : bf16
    %4 = vector.broadcast %cst : bf16 to vector<32x256xbf16>
    %5 = arith.maximumf %3, %4 : vector<32x256xbf16>
    %c0_2 = arith.constant 0 : index
    %c0_3 = arith.constant 0 : index
    %6 = vector.load %arg7[%c0_2, %c0_3] : memref<32x128xf32, #tpu.memory_space<vmem>>, vector<32x128xf32>
    %c0_4 = arith.constant 0 : index
    %c0_5 = arith.constant 0 : index
    %7 = vector.load %arg4[%c0_4, %c0_5] : memref<256x128xbf16, #tpu.memory_space<vmem>>, vector<256x128xbf16>
    %cst_6 = arith.constant dense<0.000000e+00> : vector<32x128xf32>
    %8 = tpu.matmul %5, %7, %cst_6 {dimension_numbers = #tpu.dot_dimension_numbers<[1], [0], [0], [1], [0, 0, 1, 1], [], []>} : vector<32x256xbf16>, vector<256x128xbf16>, vector<32x128xf32> -> vector<32x128xf32>
    %9 = arith.addf %6, %8 : vector<32x128xf32>
    %c0_7 = arith.constant 0 : index
    %c0_8 = arith.constant 0 : index
    %10 = vector.load %arg7[%c0_7, %c0_8] : memref<32x128xf32, #tpu.memory_space<vmem>>, vector<32x128xf32>
    tpu.vector_store %arg7[%c0_7, %c0_8], %9 {strides = array<i32>} : memref<32x128xf32, #tpu.memory_space<vmem>>, vector<32x128xf32>,
    %c0_i32_9 = arith.constant 0 : i32
    %11 = arith.cmpi eq, %arg2, %c0_i32_9 : i32
    %12 = arith.extui %11 : i1 to i32
    %c0_i32_10 = arith.constant 0 : i32
    %13 = arith.cmpi ne, %12, %c0_i32_10 : i32
    scf.if %13 {
      %c0_11 = arith.constant 0 : index
      %c0_12 = arith.constant 0 : index
      %14 = vector.load %arg7[%c0_11, %c0_12] : memref<32x128xf32, #tpu.memory_space<vmem>>, vector<32x128xf32>
      %c0_13 = arith.constant 0 : index
      %c0_14 = arith.constant 0 : index
      %15 = vector.load %arg5[%c0_13, %c0_14] : memref<1x128xf32, #tpu.memory_space<vmem>>, vector<1x128xf32>
      %16 = vector.broadcast %15 : vector<1x128xf32> to vector<32x128xf32>
      %17 = arith.addf %14, %16 : vector<32x128xf32>
      %18 = arith.truncf %17 : vector<32x128xf32> to vector<32x128xbf16>
      %c0_15 = arith.constant 0 : index
      %c0_16 = arith.constant 0 : index
      %19 = vector.load %arg6[%c0_15, %c0_16] : memref<32x128xbf16, #tpu.memory_space<vmem>>, vector<32x128xbf16>
      tpu.vector_store %arg6[%c0_15, %c0_16], %18 {strides = array<i32>} : memref<32x128xbf16, #tpu.memory_space<vmem>>, vector<32x128xbf16>,
    } else {
    }
    return
  }
  func.func @transform_0(%arg0: i32, %arg1: i32, %arg2: i32) -> (i32, i32) {
    %c0_i32 = arith.constant 0 : i32
    return %arg0, %arg2 : i32, i32
  }
  func.func @transform_1(%arg0: i32, %arg1: i32, %arg2: i32) -> (i32, i32) {
    %c0_i32 = arith.constant 0 : i32
    return %arg2, %arg1 : i32, i32
  }
  func.func @transform_2(%arg0: i32, %arg1: i32, %arg2: i32) -> (i32, i32) {
    %c0_i32 = arith.constant 0 : i32
    %c0_i32_0 = arith.constant 0 : i32
    return %c0_i32, %arg1 : i32, i32
  }
  func.func @transform_3(%arg0: i32, %arg1: i32, %arg2: i32) -> (i32, i32) {
    %c0_i32 = arith.constant 0 : i32
    return %arg0, %arg1 : i32, i32
  }
}

module attributes {stable_mosaic.version = 11 : i64} {
  func.func @_gemm_kernel(%arg0: i32, %arg1: i32, %arg2: i32, %arg3: memref<128x128xbf16, #tpu.memory_space<vmem>>, %arg4: memref<128x128xbf16, #tpu.memory_space<vmem>>, %arg5: memref<1x128xf32, #tpu.memory_space<vmem>>, %arg6: memref<128x128xf32, #tpu.memory_space<vmem>>, %arg7: memref<128x128xf32, #tpu.memory_space<vmem>>) attributes {dimension_semantics = [#tpu.dimension_semantics<parallel>, #tpu.dimension_semantics<parallel>, #tpu.dimension_semantics<arbitrary>], iteration_bounds = array<i64: 1, 1, 1>, scalar_prefetch = 0 : i64, scratch_operands = 1 : i64, tpu.core_type = #tpu.core_type<tc>, window_params = [{transform_indices = @transform_0, window_bounds = array<i64: 128, 128>}, {transform_indices = @transform_1, window_bounds = array<i64: 128, 128>}, {transform_indices = @transform_2, window_bounds = array<i64: 1, 128>}, {transform_indices = @transform_3, window_bounds = array<i64: 128, 128>}]} {
    %c0_i32 = arith.constant 0 : i32
    %0 = arith.cmpi eq, %arg2, %c0_i32 : i32
    %1 = arith.extui %0 : i1 to i32
    %c0_i32_0 = arith.constant 0 : i32
    %2 = arith.cmpi ne, %1, %c0_i32_0 : i32
    scf.if %2 {
      %cst_11 = arith.constant 0.000000e+00 : f32
      %14 = vector.broadcast %cst_11 : f32 to vector<128x128xf32>
      %c0_12 = arith.constant 0 : index
      %c0_13 = arith.constant 0 : index
      %15 = vector.load %arg7[%c0_12, %c0_13] : memref<128x128xf32, #tpu.memory_space<vmem>>, vector<128x128xf32>
      tpu.vector_store %arg7[%c0_12, %c0_13], %14 {strides = array<i32>} : memref<128x128xf32, #tpu.memory_space<vmem>>, vector<128x128xf32>,
    } else {
    }
    %c0 = arith.constant 0 : index
    %c0_1 = arith.constant 0 : index
    %3 = vector.load %arg3[%c0, %c0_1] : memref<128x128xbf16, #tpu.memory_space<vmem>>, vector<128x128xbf16>
    %cst = arith.constant 0.000000e+00 : bf16
    %4 = vector.broadcast %cst : bf16 to vector<128x128xbf16>
    %5 = arith.maximumf %3, %4 : vector<128x128xbf16>
    %c0_2 = arith.constant 0 : index
    %c0_3 = arith.constant 0 : index
    %6 = vector.load %arg7[%c0_2, %c0_3] : memref<128x128xf32, #tpu.memory_space<vmem>>, vector<128x128xf32>
    %c0_4 = arith.constant 0 : index
    %c0_5 = arith.constant 0 : index
    %7 = vector.load %arg4[%c0_4, %c0_5] : memref<128x128xbf16, #tpu.memory_space<vmem>>, vector<128x128xbf16>
    %cst_6 = arith.constant dense<0.000000e+00> : vector<128x128xf32>
    %8 = tpu.matmul %5, %7, %cst_6 {dimension_numbers = #tpu.dot_dimension_numbers<[1], [0], [0], [1], [0, 0, 1, 1], [], []>} : vector<128x128xbf16>, vector<128x128xbf16>, vector<128x128xf32> -> vector<128x128xf32>
    %9 = arith.addf %6, %8 : vector<128x128xf32>
    %c0_7 = arith.constant 0 : index
    %c0_8 = arith.constant 0 : index
    %10 = vector.load %arg7[%c0_7, %c0_8] : memref<128x128xf32, #tpu.memory_space<vmem>>, vector<128x128xf32>
    tpu.vector_store %arg7[%c0_7, %c0_8], %9 {strides = array<i32>} : memref<128x128xf32, #tpu.memory_space<vmem>>, vector<128x128xf32>,
    %c0_i32_9 = arith.constant 0 : i32
    %11 = arith.cmpi eq, %arg2, %c0_i32_9 : i32
    %12 = arith.extui %11 : i1 to i32
    %c0_i32_10 = arith.constant 0 : i32
    %13 = arith.cmpi ne, %12, %c0_i32_10 : i32
    scf.if %13 {
      %c0_11 = arith.constant 0 : index
      %c0_12 = arith.constant 0 : index
      %14 = vector.load %arg7[%c0_11, %c0_12] : memref<128x128xf32, #tpu.memory_space<vmem>>, vector<128x128xf32>
      %c0_13 = arith.constant 0 : index
      %c0_14 = arith.constant 0 : index
      %15 = vector.load %arg5[%c0_13, %c0_14] : memref<1x128xf32, #tpu.memory_space<vmem>>, vector<1x128xf32>
      %16 = vector.broadcast %15 : vector<1x128xf32> to vector<128x128xf32>
      %17 = arith.addf %14, %16 : vector<128x128xf32>
      %18 = math.tanh %17 : vector<128x128xf32>
      %c0_15 = arith.constant 0 : index
      %c0_16 = arith.constant 0 : index
      %19 = vector.load %arg6[%c0_15, %c0_16] : memref<128x128xf32, #tpu.memory_space<vmem>>, vector<128x128xf32>
      tpu.vector_store %arg6[%c0_15, %c0_16], %18 {strides = array<i32>} : memref<128x128xf32, #tpu.memory_space<vmem>>, vector<128x128xf32>,
    } else {
    }
    return
  }
  func.func @transform_0(%arg0: i32, %arg1: i32, %arg2: i32) -> (i32, i32) {
    %c0_i32 = arith.constant 0 : i32
    return %arg0, %arg2 : i32, i32
  }
  func.func @transform_1(%arg0: i32, %arg1: i32, %arg2: i32) -> (i32, i32) {
    %c0_i32 = arith.constant 0 : i32
    return %arg2, %arg1 : i32, i32
  }
  func.func @transform_2(%arg0: i32, %arg1: i32, %arg2: i32) -> (i32, i32) {
    %c0_i32 = arith.constant 0 : i32
    %c0_i32_0 = arith.constant 0 : i32
    return %c0_i32, %arg1 : i32, i32
  }
  func.func @transform_3(%arg0: i32, %arg1: i32, %arg2: i32) -> (i32, i32) {
    %c0_i32 = arith.constant 0 : i32
    return %arg0, %arg1 : i32, i32
  }
}

</mosaic_0001>

<llo_original>
// kernel: unet_v5_forward.20
$region0: #{unet_v5_forward.20}
  #allocation0 [shape = 'u32[]', space=smem, size = 0x4, offset = 0x4, fixed_abs, tag = 'smem constant byte address 0x4 - core index']
  #allocation1 [shape = 'u32[144,128]{1,0:T(1,128)}', space=vmem, size = 0x12000, scoped, tag = 'internal scratch']
  #allocation2 [shape = 'f32[128,128]{1,0:T(8,128)}', space=vmem, size = 0x10000, scoped, tag = 'scratch operand']
  %s0 = inlined_call_operand.vmem [shape: bf16[128,128], index: 0, kind: input, shape index: {}]
  %s1 = inlined_call_operand.vmem [shape: bf16[128,128], index: 1, kind: input, shape index: {}]
  %s2 = inlined_call_operand.vmem [shape: f32[1,128], index: 2, kind: input, shape index: {}]
  %s3 = inlined_call_operand.vmem [shape: bf16[128,128], index: 3, kind: output, shape index: {}]
  %s4 = sld [smem:[#allocation0]]
  $region30: #{unet_v5_forward.20} parent=0
    _
  %s6 = ssub.s32 1, %s4
  %s7 = scalar_select 0, %s6, %s4
  // Predicated region
  $region2: #{unet_v5_forward.20} parent=0 // pred_check
    _
  $region3: #{unet_v5_forward.20} parent=0 // pred_check_branch
    %9 = sbr.rel (0) target = $region5
  $region4: #{unet_v5_forward.20} parent=0 // pred_region
    _
  $region5: #{unet_v5_forward.20} parent=0 // pred_fallthru
    _
  // Predicated region
  $region6: #{unet_v5_forward.20} parent=0 // pred_check
    _
  $region7: #{unet_v5_forward.20} parent=0 // pred_check_branch
    %11 = sbr.rel (0) target = $region9
  $region8: #{unet_v5_forward.20} parent=0 // pred_region
    _
  $region9: #{unet_v5_forward.20} parent=0 // pred_fallthru
    _
  // Predicated region
  $region10: #{unet_v5_forward.20} parent=0 // pred_check
    _
  $region11: #{unet_v5_forward.20} parent=0 // pred_check_branch
    %13 = sbr.rel (0) target = $region13
  $region12: #{unet_v5_forward.20} parent=0 // pred_region
    _
  $region13: #{unet_v5_forward.20} parent=0 // pred_fallthru
    _
  %p15 = scmp.eq.s32.totalorder 0, 0
  // Predicated region
  $region14: #{unet_v5_forward.20} parent=0 // pred_check
    %p16 = pneg %p15
  $region15: #{unet_v5_forward.20} parent=0 // pred_check_branch
    %18 = sbr.rel (%p16) target = $region17
  $region16: #{unet_v5_forward.20} parent=0 // pred_region
    %19 = vst [vmem:[#allocation2] sm:$0xff] 0.0
    %20 = vst [vmem:[#allocation2 + $0x8] sm:$0xff] 0.0
    %21 = vst [vmem:[#allocation2 + $0x10] sm:$0xff] 0.0
    %22 = vst [vmem:[#allocation2 + $0x18] sm:$0xff] 0.0
    %23 = vst [vmem:[#allocation2 + $0x20] sm:$0xff] 0.0
    %24 = vst [vmem:[#allocation2 + $0x28] sm:$0xff] 0.0
    %25 = vst [vmem:[#allocation2 + $0x30] sm:$0xff] 0.0
    %26 = vst [vmem:[#allocation2 + $0x38] sm:$0xff] 0.0
    %27 = vst [vmem:[#allocation2 + $0x40] sm:$0xff] 0.0
    %28 = vst [vmem:[#allocation2 + $0x48] sm:$0xff] 0.0
    %29 = vst [vmem:[#allocation2 + $0x50] sm:$0xff] 0.0
    %30 = vst [vmem:[#allocation2 + $0x58] sm:$0xff] 0.0
    %31 = vst [vmem:[#allocation2 + $0x60] sm:$0xff] 0.0
    %32 = vst [vmem:[#allocation2 + $0x68] sm:$0xff] 0.0
    %33 = vst [vmem:[#allocation2 + $0x70] sm:$0xff] 0.0
    %34 = vst [vmem:[#allocation2 + $0x78] sm:$0xff] 0.0
  $region17: #{unet_v5_forward.20} parent=0 // pred_fallthru
    _
  %v35 = vld [vmem:[%s0] sm:$0xf]
  %v36 = vld [vmem:[%s0 + $0x4] sm:$0xf]
  %v37 = vld [vmem:[%s0 + $0x8] sm:$0xf]
  %v38 = vld [vmem:[%s0 + $0xc] sm:$0xf]
  %v39 = vld [vmem:[%s0 + $0x10] sm:$0xf]
  %v40 = vld [vmem:[%s0 + $0x14] sm:$0xf]
  %v41 = vld [vmem:[%s0 + $0x18] sm:$0xf]
  %v42 = vld [vmem:[%s0 + $0x1c] sm:$0xf]
  %v43 = vld [vmem:[%s0 + $0x20] sm:$0xf]
  %v44 = vld [vmem:[%s0 + $0x24] sm:$0xf]
  %v45 = vld [vmem:[%s0 + $0x28] sm:$0xf]
  %v46 = vld [vmem:[%s0 + $0x2c] sm:$0xf]
  %v47 = vld [vmem:[%s0 + $0x30] sm:$0xf]
  %v48 = vld [vmem:[%s0 + $0x34] sm:$0xf]
  %v49 = vld [vmem:[%s0 + $0x38] sm:$0xf]
  %v50 = vld [vmem:[%s0 + $0x3c] sm:$0xf]
  %v51 = vld [vmem:[#allocation2] sm:$0xff]
  %v52 = vld [vmem:[#allocation2 + $0x8] sm:$0xff]
  %v53 = vld [vmem:[#allocation2 + $0x10] sm:$0xff]
  %v54 = vld [vmem:[#allocation2 + $0x18] sm:$0xff]
  %v55 = vld [vmem:[#allocation2 + $0x20] sm:$0xff]
  %v56 = vld [vmem:[#allocation2 + $0x28] sm:$0xff]
  %v57 = vld [vmem:[#allocation2 + $0x30] sm:$0xff]
  %v58 = vld [vmem:[#allocation2 + $0x38] sm:$0xff]
  %v59 = vld [vmem:[#allocation2 + $0x40] sm:$0xff]
  %v60 = vld [vmem:[#allocation2 + $0x48] sm:$0xff]
  %v61 = vld [vmem:[#allocation2 + $0x50] sm:$0xff]
  %v62 = vld [vmem:[#allocation2 + $0x58] sm:$0xff]
  %v63 = vld [vmem:[#allocation2 + $0x60] sm:$0xff]
  %v64 = vld [vmem:[#allocation2 + $0x68] sm:$0xff]
  %v65 = vld [vmem:[#allocation2 + $0x70] sm:$0xff]
  %v66 = vld [vmem:[#allocation2 + $0x78] sm:$0xff]
  %v67 = vld [vmem:[%s1] sm:$0xf]
  %v68 = vld [vmem:[%s1 + $0x4] sm:$0xf]
  %v69 = vld [vmem:[%s1 + $0x8] sm:$0xf]
  %v70 = vld [vmem:[%s1 + $0xc] sm:$0xf]
  %v71 = vld [vmem:[%s1 + $0x10] sm:$0xf]
  %v72 = vld [vmem:[%s1 + $0x14] sm:$0xf]
  %v73 = vld [vmem:[%s1 + $0x18] sm:$0xf]
  %v74 = vld [vmem:[%s1 + $0x1c] sm:$0xf]
  %v75 = vld [vmem:[%s1 + $0x20] sm:$0xf]
  %v76 = vld [vmem:[%s1 + $0x24] sm:$0xf]
  %v77 = vld [vmem:[%s1 + $0x28] sm:$0xf]
  %v78 = vld [vmem:[%s1 + $0x2c] sm:$0xf]
  %v79 = vld [vmem:[%s1 + $0x30] sm:$0xf]
  %v80 = vld [vmem:[%s1 + $0x34] sm:$0xf]
  %v81 = vld [vmem:[%s1 + $0x38] sm:$0xf]
  %v82 = vld [vmem:[%s1 + $0x3c] sm:$0xf]
  %v99 = vunpack.c.l.b16 %v35
  %v100 = vunpack.c.l.b16 %v36
  %v101 = vunpack.c.l.b16 %v37
  %v102 = vunpack.c.l.b16 %v38
  %v103 = vunpack.c.l.b16 %v39
  %v104 = vunpack.c.l.b16 %v40
  %v105 = vunpack.c.l.b16 %v41
  %v106 = vunpack.c.l.b16 %v42
  %v107 = vunpack.c.l.b16 %v43
  %v108 = vunpack.c.l.b16 %v44
  %v109 = vunpack.c.l.b16 %v45
  %v110 = vunpack.c.l.b16 %v46
  %v111 = vunpack.c.l.b16 %v47
  %v112 = vunpack.c.l.b16 %v48
  %v113 = vunpack.c.l.b16 %v49
  %v114 = vunpack.c.l.b16 %v50
  %v115 = vpack.c.b16 %v100, %v99
  %v116 = vpack.c.b16 %v102, %v101
  %v117 = vpack.c.b16 %v104, %v103
  %v118 = vpack.c.b16 %v106, %v105
  %v119 = vpack.c.b16 %v108, %v107
  %v120 = vpack.c.b16 %v110, %v109
  %v121 = vpack.c.b16 %v112, %v111
  %v122 = vpack.c.b16 %v114, %v113
  %v147 = vunpack.c.l.b16 %v67
  %v148 = vunpack.c.l.b16 %v68
  %v149 = vunpack.c.l.b16 %v69
  %v150 = vunpack.c.l.b16 %v70
  %v151 = vunpack.c.l.b16 %v71
  %v152 = vunpack.c.l.b16 %v72
  %v153 = vunpack.c.l.b16 %v73
  %v154 = vunpack.c.l.b16 %v74
  %v155 = vunpack.c.l.b16 %v75
  %v156 = vunpack.c.l.b16 %v76
  %v157 = vunpack.c.l.b16 %v77
  %v158 = vunpack.c.l.b16 %v78
  %v159 = vunpack.c.l.b16 %v79
  %v160 = vunpack.c.l.b16 %v80
  %v161 = vunpack.c.l.b16 %v81
  %v162 = vunpack.c.l.b16 %v82
  %v163 = vpack.c.b16 %v148, %v147
  %v164 = vpack.c.b16 %v150, %v149
  %v165 = vpack.c.b16 %v152, %v151
  %v166 = vpack.c.b16 %v154, %v153
  %v167 = vpack.c.b16 %v156, %v155
  %v168 = vpack.c.b16 %v158, %v157
  %v169 = vpack.c.b16 %v160, %v159
  %v170 = vpack.c.b16 %v162, %v161
  %179 = vmatprep.subr.bf16.mxu0 0
  %180 = vmatpush1.bf16.msra.mxu0 %v170
  %181 = vmatprep.subr.bf16.mxu0 0
  %182 = vmatpush1.bf16.msra.mxu0 %v169
  %183 = vmatprep.subr.bf16.mxu0 0
  %184 = vmatpush1.bf16.msra.mxu0 %v168
  %185 = vmatprep.subr.bf16.mxu0 0
  %186 = vmatpush1.bf16.msra.mxu0 %v167
  %187 = vmatprep.subr.bf16.mxu0 0
  %188 = vmatpush1.bf16.msra.mxu0 %v166
  %189 = vmatprep.subr.bf16.mxu0 0
  %190 = vmatpush1.bf16.msra.mxu0 %v165
  %191 = vmatprep.subr.bf16.mxu0 0
  %192 = vmatpush1.bf16.msra.mxu0 %v164
  %193 = vmatprep.subr.bf16.mxu0 0
  %194 = vmatpush1.bf16.msra.mxu0 %v163
  %195 = vmatprep.subr.bf16.mxu0 0
  %196 = vmatpush2.bf16.msra.mxu0 0
  %197 = vmatprep.subr.bf16.mxu0 0
  %198 = vmatpush2.bf16.msra.mxu0 0
  %199 = vmatprep.subr.bf16.mxu0 0
  %200 = vmatpush2.bf16.msra.mxu0 0
  %201 = vmatprep.subr.bf16.mxu0 0
  %202 = vmatpush2.bf16.msra.mxu0 0
  %203 = vmatprep.subr.bf16.mxu0 0
  %204 = vmatpush2.bf16.msra.mxu0 0
  %205 = vmatprep.subr.bf16.mxu0 0
  %206 = vmatpush2.bf16.msra.mxu0 0
  %207 = vmatprep.subr.bf16.mxu0 0
  %208 = vmatpush2.bf16.msra.mxu0 0
  %209 = vmatprep.subr.bf16.mxu0 0
  %210 = vmatpush2.bf16.msra.mxu0 0
  %211 = vmatprep.mubr.bf16.mxu0 0
  %212 = vmatmul.mubr.bf16.gmra.mxu0 %v115
  %v213 = vpop.f32.mrf.mxu0
  %v214 = vadd.f32 0.0, %v213
  %v215 = vpop.f32.mrf.mxu0
  %v216 = vpop.f32.mrf.mxu0
  %v217 = vadd.f32 0.0, %v216
  %v218 = vpop.f32.mrf.mxu0
  %219 = vmatprep.mubr.bf16.mxu0 0
  %220 = vmatmul.mubr.bf16.gmra.mxu0 %v116
  %v221 = vpop.f32.mrf.mxu0
  %v222 = vadd.f32 0.0, %v221
  %v223 = vpop.f32.mrf.mxu0
  %v224 = vpop.f32.mrf.mxu0
  %v225 = vadd.f32 0.0, %v224
  %v226 = vpop.f32.mrf.mxu0
  %227 = vmatprep.mubr.bf16.mxu0 0
  %228 = vmatmul.mubr.bf16.gmra.mxu0 %v117
  %v229 = vpop.f32.mrf.mxu0
  %v230 = vadd.f32 0.0, %v229
  %v231 = vpop.f32.mrf.mxu0
  %v232 = vpop.f32.mrf.mxu0
  %v233 = vadd.f32 0.0, %v232
  %v234 = vpop.f32.mrf.mxu0
  %235 = vmatprep.mubr.bf16.mxu0 0
  %236 = vmatmul.mubr.bf16.gmra.mxu0 %v118
  %v237 = vpop.f32.mrf.mxu0
  %v238 = vadd.f32 0.0, %v237
  %v239 = vpop.f32.mrf.mxu0
  %v240 = vpop.f32.mrf.mxu0
  %v241 = vadd.f32 0.0, %v240
  %v242 = vpop.f32.mrf.mxu0
  %243 = vmatprep.mubr.bf16.mxu0 0
  %244 = vmatmul.mubr.bf16.gmra.mxu0 %v119
  %v245 = vpop.f32.mrf.mxu0
  %v246 = vadd.f32 0.0, %v245
  %v247 = vpop.f32.mrf.mxu0
  %v248 = vpop.f32.mrf.mxu0
  %v249 = vadd.f32 0.0, %v248
  %v250 = vpop.f32.mrf.mxu0
  %251 = vmatprep.mubr.bf16.mxu0 0
  %252 = vmatmul.mubr.bf16.gmra.mxu0 %v120
  %v253 = vpop.f32.mrf.mxu0
  %v254 = vadd.f32 0.0, %v253
  %v255 = vpop.f32.mrf.mxu0
  %v256 = vpop.f32.mrf.mxu0
  %v257 = vadd.f32 0.0, %v256
  %v258 = vpop.f32.mrf.mxu0
  %259 = vmatprep.mubr.bf16.mxu0 0
  %260 = vmatmul.mubr.bf16.gmra.mxu0 %v121
  %v261 = vpop.f32.mrf.mxu0
  %v262 = vadd.f32 0.0, %v261
  %v263 = vpop.f32.mrf.mxu0
  %v264 = vpop.f32.mrf.mxu0
  %v265 = vadd.f32 0.0, %v264
  %v266 = vpop.f32.mrf.mxu0
  %267 = vmatprep.mubr.bf16.mxu0 0
  %268 = vmatmul.mubr.bf16.gmra.mxu0 %v122
  %v269 = vpop.f32.mrf.mxu0
  %v270 = vadd.f32 0.0, %v269
  %v271 = vpop.f32.mrf.mxu0
  %v272 = vpop.f32.mrf.mxu0
  %v273 = vadd.f32 0.0, %v272
  %v274 = vpop.f32.mrf.mxu0
  %275 = vdwg.mxu0
  %v276 = vadd.f32 %v51, %v214
  %v277 = vadd.f32 %v52, %v217
  %v278 = vadd.f32 %v53, %v222
  %v279 = vadd.f32 %v54, %v225
  %v280 = vadd.f32 %v55, %v230
  %v281 = vadd.f32 %v56, %v233
  %v282 = vadd.f32 %v57, %v238
  %v283 = vadd.f32 %v58, %v241
  %v284 = vadd.f32 %v59, %v246
  %v285 = vadd.f32 %v60, %v249
  %v286 = vadd.f32 %v61, %v254
  %v287 = vadd.f32 %v62, %v257
  %v288 = vadd.f32 %v63, %v262
  %v289 = vadd.f32 %v64, %v265
  %v290 = vadd.f32 %v65, %v270
  %v291 = vadd.f32 %v66, %v273
  %292 = vst [vmem:[#allocation2] sm:$0xff] %v276
  %293 = vst [vmem:[#allocation2 + $0x8] sm:$0xff] %v277
  %294 = vst [vmem:[#allocation2 + $0x10] sm:$0xff] %v278
  %295 = vst [vmem:[#allocation2 + $0x18] sm:$0xff] %v279
  %296 = vst [vmem:[#allocation2 + $0x20] sm:$0xff] %v280
  %297 = vst [vmem:[#allocation2 + $0x28] sm:$0xff] %v281
  %298 = vst [vmem:[#allocation2 + $0x30] sm:$0xff] %v282
  %299 = vst [vmem:[#allocation2 + $0x38] sm:$0xff] %v283
  %300 = vst [vmem:[#allocation2 + $0x40] sm:$0xff] %v284
  %301 = vst [vmem:[#allocation2 + $0x48] sm:$0xff] %v285
  %302 = vst [vmem:[#allocation2 + $0x50] sm:$0xff] %v286
  %303 = vst [vmem:[#allocation2 + $0x58] sm:$0xff] %v287
  %304 = vst [vmem:[#allocation2 + $0x60] sm:$0xff] %v288
  %305 = vst [vmem:[#allocation2 + $0x68] sm:$0xff] %v289
  %306 = vst [vmem:[#allocation2 + $0x70] sm:$0xff] %v290
  %307 = vst [vmem:[#allocation2 + $0x78] sm:$0xff] %v291
  // Predicated region
  $region18: #{unet_v5_forward.20} parent=0 // pred_check
    %p308 = pneg %p15
  $region19: #{unet_v5_forward.20} parent=0 // pred_check_branch
    %310 = sbr.rel (%p308) target = $region21
  $region20: #{unet_v5_forward.20} parent=0 // pred_region
    %v311 = vld [vmem:[#allocation2] sm:$0xff]
    %v312 = vld [vmem:[#allocation2 + $0x8] sm:$0xff]
    %v313 = vld [vmem:[#allocation2 + $0x10] sm:$0xff]
    %v314 = vld [vmem:[#allocation2 + $0x18] sm:$0xff]
    %v315 = vld [vmem:[#allocation2 + $0x20] sm:$0xff]
    %v316 = vld [vmem:[#allocation2 + $0x28] sm:$0xff]
    %v317 = vld [vmem:[#allocation2 + $0x30] sm:$0xff]
    %v318 = vld [vmem:[#allocation2 + $0x38] sm:$0xff]
    %v319 = vld [vmem:[#allocation2 + $0x40] sm:$0xff]
    %v320 = vld [vmem:[#allocation2 + $0x48] sm:$0xff]
    %v321 = vld [vmem:[#allocation2 + $0x50] sm:$0xff]
    %v322 = vld [vmem:[#allocation2 + $0x58] sm:$0xff]
    %v323 = vld [vmem:[#allocation2 + $0x60] sm:$0xff]
    %v324 = vld [vmem:[#allocation2 + $0x68] sm:$0xff]
    %v325 = vld [vmem:[#allocation2 + $0x70] sm:$0xff]
    %v326 = vld [vmem:[#allocation2 + $0x78] sm:$0xff]
    %v327 = vld [vmem:[%s2] sm:$0x1]
    %v329 = vlaneseq
    %v330 = vshrl.u32 %v329, 7
    %v331 = vsub.s32 0, %v330
    %v332 = vrot.slane %v327, %v331
    %v334 = vadd.f32 %v311, %v332
    %v335 = vadd.f32 %v312, %v332
    %v336 = vadd.f32 %v313, %v332
    %v337 = vadd.f32 %v314, %v332
    %v338 = vadd.f32 %v315, %v332
    %v339 = vadd.f32 %v316, %v332
    %v340 = vadd.f32 %v317, %v332
    %v341 = vadd.f32 %v318, %v332
    %v342 = vadd.f32 %v319, %v332
    %v343 = vadd.f32 %v320, %v332
    %v344 = vadd.f32 %v321, %v332
    %v345 = vadd.f32 %v322, %v332
    %v346 = vadd.f32 %v323, %v332
    %v347 = vadd.f32 %v324, %v332
    %v348 = vadd.f32 %v325, %v332
    %v349 = vadd.f32 %v326, %v332
    %v350 = vpack.c.bf16 %v335, %v334
    %v351 = vpack.c.bf16 %v337, %v336
    %v352 = vpack.c.bf16 %v339, %v338
    %v353 = vpack.c.bf16 %v341, %v340
    %v354 = vpack.c.bf16 %v343, %v342
    %v355 = vpack.c.bf16 %v345, %v344
    %v356 = vpack.c.bf16 %v347, %v346
    %v357 = vpack.c.bf16 %v349, %v348
    %v366 = vunpack.c.l.b16 %v350
    %v367 = vunpack.c.h.b16 %v350
    %v368 = vunpack.c.l.b16 %v351
    %v369 = vunpack.c.h.b16 %v351
    %v370 = vunpack.c.l.b16 %v352
    %v371 = vunpack.c.h.b16 %v352
    %v372 = vunpack.c.l.b16 %v353
    %v373 = vunpack.c.h.b16 %v353
    %v374 = vunpack.c.l.b16 %v354
    %v375 = vunpack.c.h.b16 %v354
    %v376 = vunpack.c.l.b16 %v355
    %v377 = vunpack.c.h.b16 %v355
    %v378 = vunpack.c.l.b16 %v356
    %v379 = vunpack.c.h.b16 %v356
    %v380 = vunpack.c.l.b16 %v357
    %v381 = vunpack.c.h.b16 %v357
    %v382 = vpack.c.b16 %v366, %v366
    %v383 = vpack.c.b16 %v367, %v367
    %v384 = vpack.c.b16 %v368, %v368
    %v385 = vpack.c.b16 %v369, %v369
    %v386 = vpack.c.b16 %v370, %v370
    %v387 = vpack.c.b16 %v371, %v371
    %v388 = vpack.c.b16 %v372, %v372
    %v389 = vpack.c.b16 %v373, %v373
    %v390 = vpack.c.b16 %v374, %v374
    %v391 = vpack.c.b16 %v375, %v375
    %v392 = vpack.c.b16 %v376, %v376
    %v393 = vpack.c.b16 %v377, %v377
    %v394 = vpack.c.b16 %v378, %v378
    %v395 = vpack.c.b16 %v379, %v379
    %v396 = vpack.c.b16 %v380, %v380
    %v397 = vpack.c.b16 %v381, %v381
    %414 = vst [vmem:[%s3] sm:$0xf] %v382
    %415 = vst [vmem:[%s3 + $0x4] sm:$0xf] %v383
    %416 = vst [vmem:[%s3 + $0x8] sm:$0xf] %v384
    %417 = vst [vmem:[%s3 + $0xc] sm:$0xf] %v385
    %418 = vst [vmem:[%s3 + $0x10] sm:$0xf] %v386
    %419 = vst [vmem:[%s3 + $0x14] sm:$0xf] %v387
    %420 = vst [vmem:[%s3 + $0x18] sm:$0xf] %v388
    %421 = vst [vmem:[%s3 + $0x1c] sm:$0xf] %v389
    %422 = vst [vmem:[%s3 + $0x20] sm:$0xf] %v390
    %423 = vst [vmem:[%s3 + $0x24] sm:$0xf] %v391
    %424 = vst [vmem:[%s3 + $0x28] sm:$0xf] %v392
    %425 = vst [vmem:[%s3 + $0x2c] sm:$0xf] %v393
    %426 = vst [vmem:[%s3 + $0x30] sm:$0xf] %v394
    %427 = vst [vmem:[%s3 + $0x34] sm:$0xf] %v395
    %428 = vst [vmem:[%s3 + $0x38] sm:$0xf] %v396
    %429 = vst [vmem:[%s3 + $0x3c] sm:$0xf] %v397
  $region21: #{unet_v5_forward.20} parent=0 // pred_fallthru
    _
  // Predicated region
  $region22: #{unet_v5_forward.20} parent=0 // pred_check
    _
  $region23: #{unet_v5_forward.20} parent=0 // pred_check_branch
    %431 = sbr.rel (0) target = $region25
  $region24: #{unet_v5_forward.20} parent=0 // pred_region
    _
  $region25: #{unet_v5_forward.20} parent=0 // pred_fallthru
    _
  // Predicated region
  $region26: #{unet_v5_forward.20} parent=0 // pred_check
    _
  $region27: #{unet_v5_forward.20} parent=0 // pred_check_branch
    %433 = sbr.rel (0) target = $region29
  $region28: #{unet_v5_forward.20} parent=0 // pred_region
    _
  $region29: #{unet_v5_forward.20} parent=0 // pred_fallthru
    _

// kernel: tile.83
$region0: #{tile.83}
  #allocation0 [shape = 's32[1]{0}', space=sflag, size = 0x4, scoped, tag = 'scoped memory for tile.83']
  %s0 = inlined_call_operand.vmem [shape: f32[8], index: 0, kind: input, shape index: {}]
  %s1 = inlined_call_operand.vmem [shape: f32[16,8], index: 1, kind: output, shape index: {}]
  // Predicated region
  $region2: #{tile.83} parent=0 // pred_check
    _
  $region3: #{tile.83} parent=0 // pred_check_branch
    %3 = sbr.rel (0) target = $region5
  $region4: #{tile.83} parent=0 // pred_region
    _
  $region5: #{tile.83} parent=0 // pred_fallthru
    _
  %v4 = vld [vmem:[%s0] ss:$0 sm:$0xff]
  %5 = vst [vmem:[%s1] sm:$0xff] %v4
  %s6 = scalar_lea.vmem %s1, 8
  %7 = vst [vmem:[%s6] sm:$0xff] %v4

// kernel: tile.84
$region0: #{tile.84}
  %s0 = inlined_call_operand.vmem [shape: f32[16,8], index: 0, kind: input, shape index: {}]
  %s1 = inlined_call_operand.vmem [shape: f32[1,128], index: 1, kind: output, shape index: {}]
  $region1: #{tile.84} parent=0
    #allocation0 [shape = 'u8[4096]{0}', space=vmem, size = 0x1000, scoped, tag = 'scoped mem for output reshape']
    %v2 = vld [vmem:[%s0] sm:$0x1]
    %vm3 = vcmask 64512
    %4 = vst.msk [vmem:[#allocation0] sm:$0x1] %vm3, %v2
    %s5 = scalar_lea.vmem %s0, 15
    %v6 = vld [vmem:[%s5] sm:$0x1]
    %7 = vrot.lane.b32.xlu0 %v6, 120
    %v8 = vpop.permute.xlu0 %7
    %vm9 = vcmask 1048512
    %10 = vst.msk [vmem:[#allocation0] sm:$0x1] %vm9, %v8
    %s11 = scalar_lea.vmem %s0, 14
    %v12 = vld [vmem:[%s11] sm:$0x1]
    %13 = vrot.lane.b32.xlu0 %v12, 112
    %v14 = vpop.permute.xlu0 %13
    %vm15 = vcmask 982912
    %16 = vst.msk [vmem:[#allocation0] sm:$0x1] %vm15, %v14
    %s17 = scalar_lea.vmem %s0, 13
    %v18 = vld [vmem:[%s17] sm:$0x1]
    %19 = vrot.lane.b32.xlu0 %v18, 104
    %v20 = vpop.permute.xlu0 %19
    %vm21 = vcmask 917312
    %22 = vst.msk [vmem:[#allocation0] sm:$0x1] %vm21, %v20
    %s23 = scalar_lea.vmem %s0, 12
    %v24 = vld [vmem:[%s23] sm:$0x1]
    %25 = vrot.lane.b32.xlu0 %v24, 96
    %v26 = vpop.permute.xlu0 %25
    %vm27 = vcmask 851712
    %28 = vst.msk [vmem:[#allocation0] sm:$0x1] %vm27, %v26
    %s29 = scalar_lea.vmem %s0, 11
    %v30 = vld [vmem:[%s29] sm:$0x1]
    %31 = vrot.lane.b32.xlu0 %v30, 88
    %v32 = vpop.permute.xlu0 %31
    %vm33 = vcmask 786112
    %34 = vst.msk [vmem:[#allocation0] sm:$0x1] %vm33, %v32
    %s35 = scalar_lea.vmem %s0, 10
    %v36 = vld [vmem:[%s35] sm:$0x1]
    %37 = vrot.lane.b32.xlu0 %v36, 80
    %v38 = vpop.permute.xlu0 %37
    %vm39 = vcmask 720512
    %40 = vst.msk [vmem:[#allocation0] sm:$0x1] %vm39, %v38
    %s41 = scalar_lea.vmem %s0, 9
    %v42 = vld [vmem:[%s41] sm:$0x1]
    %43 = vrot.lane.b32.xlu0 %v42, 72
    %v44 = vpop.permute.xlu0 %43
    %vm45 = vcmask 654912
    %46 = vst.msk [vmem:[#allocation0] sm:$0x1] %vm45, %v44
    %s47 = scalar_lea.vmem %s0, 8
    %v48 = vld [vmem:[%s47] sm:$0x1]
    %49 = vrot.lane.b32.xlu0 %v48, 64
    %v50 = vpop.permute.xlu0 %49
    %vm51 = vcmask 589312
    %52 = vst.msk [vmem:[#allocation0] sm:$0x1] %vm51, %v50
    %s53 = scalar_lea.vmem %s0, 7
    %v54 = vld [vmem:[%s53] sm:$0x1]
    %55 = vrot.lane.b32.xlu0 %v54, 56
    %v56 = vpop.permute.xlu0 %55
    %vm57 = vcmask 523712
    %58 = vst.msk [vmem:[#allocation0] sm:$0x1] %vm57, %v56
    %s59 = scalar_lea.vmem %s0, 6
    %v60 = vld [vmem:[%s59] sm:$0x1]
    %61 = vrot.lane.b32.xlu0 %v60, 48
    %v62 = vpop.permute.xlu0 %61
    %vm63 = vcmask 458112
    %64 = vst.msk [vmem:[#allocation0] sm:$0x1] %vm63, %v62
    %s65 = scalar_lea.vmem %s0, 5
    %v66 = vld [vmem:[%s65] sm:$0x1]
    %67 = vrot.lane.b32.xlu0 %v66, 40
    %v68 = vpop.permute.xlu0 %67
    %vm69 = vcmask 392512
    %70 = vst.msk [vmem:[#allocation0] sm:$0x1] %vm69, %v68
    %s71 = scalar_lea.vmem %s0, 4
    %v72 = vld [vmem:[%s71] sm:$0x1]
    %73 = vrot.lane.b32.xlu0 %v72, 32
    %v74 = vpop.permute.xlu0 %73
    %vm75 = vcmask 326912
    %76 = vst.msk [vmem:[#allocation0] sm:$0x1] %vm75, %v74
    %s77 = scalar_lea.vmem %s0, 3
    %v78 = vld [vmem:[%s77] sm:$0x1]
    %79 = vrot.lane.b32.xlu0 %v78, 24
    %v80 = vpop.permute.xlu0 %79
    %vm81 = vcmask 261312
    %82 = vst.msk [vmem:[#allocation0] sm:$0x1] %vm81, %v80
    %s83 = scalar_lea.vmem %s0, 2
    %v84 = vld [vmem:[%s83] sm:$0x1]
    %85 = vrot.lane.b32.xlu0 %v84, 16
    %v86 = vpop.permute.xlu0 %85
    %vm87 = vcmask 195712
    %88 = vst.msk [vmem:[#allocation0] sm:$0x1] %vm87, %v86
    %s89 = scalar_lea.vmem %s0, 1
    %v90 = vld [vmem:[%s89] sm:$0x1]
    %91 = vrot.lane.b32.xlu0 %v90, 8
    %v92 = vpop.permute.xlu0 %91
    %vm93 = vcmask 130112
    %94 = vst.msk [vmem:[#allocation0] sm:$0x1] %vm93, %v92
    %s96 = sshll.u32 1, 1
    %s97 = ssub.s32 %s96, 1
    %v99 = vld [vmem:[#allocation0] sm:%s97]
    %s100 = sshll.u32 1, 1
    %s101 = ssub.s32 %s100, 1
    %102 = vst [vmem:[%s1] sm:%s101] %v99

// kernel: unet_v5_forward.21
$region0: #{unet_v5_forward.21}
  #allocation0 [shape = 'u32[]', space=smem, size = 0x4, offset = 0x4, fixed_abs, tag = 'smem constant byte address 0x4 - core index']
  #allocation1 [shape = 'u32[144,128]{1,0:T(1,128)}', space=vmem, size = 0x12000, scoped, tag = 'internal scratch']
  #allocation2 [shape = 'f32[32,128]{1,0:T(8,128)}', space=vmem, size = 0x4000, scoped, tag = 'scratch operand']
  %s0 = inlined_call_operand.vmem [shape: bf16[32,128], index: 0, kind: input, shape index: {}]
  %s1 = inlined_call_operand.vmem [shape: bf16[128,128], index: 1, kind: input, shape index: {}]
  %s2 = inlined_call_operand.vmem [shape: f32[1,128], index: 2, kind: input, shape index: {}]
  %s3 = inlined_call_operand.vmem [shape: bf16[32,128], index: 3, kind: output, shape index: {}]
  %s4 = sld [smem:[#allocation0]]
  $region30: #{unet_v5_forward.21} parent=0
    _
  %s6 = ssub.s32 1, %s4
  %s7 = scalar_select 0, %s6, %s4
  // Predicated region
  $region2: #{unet_v5_forward.21} parent=0 // pred_check
    _
  $region3: #{unet_v5_forward.21} parent=0 // pred_check_branch
    %9 = sbr.rel (0) target = $region5
  $region4: #{unet_v5_forward.21} parent=0 // pred_region
    _
  $region5: #{unet_v5_forward.21} parent=0 // pred_fallthru
    _
  // Predicated region
  $region6: #{unet_v5_forward.21} parent=0 // pred_check
    _
  $region7: #{unet_v5_forward.21} parent=0 // pred_check_branch
    %11 = sbr.rel (0) target = $region9
  $region8: #{unet_v5_forward.21} parent=0 // pred_region
    _
  $region9: #{unet_v5_forward.21} parent=0 // pred_fallthru
    _
  // Predicated region
  $region10: #{unet_v5_forward.21} parent=0 // pred_check
    _
  $region11: #{unet_v5_forward.21} parent=0 // pred_check_branch
    %13 = sbr.rel (0) target = $region13
  $region12: #{unet_v5_forward.21} parent=0 // pred_region
    _
  $region13: #{unet_v5_forward.21} parent=0 // pred_fallthru
    _
  %p16 = scmp.eq.s32.totalorder 0, 0
  // Predicated region
  $region14: #{unet_v5_forward.21} parent=0 // pred_check
    %p17 = pneg %p16
  $region15: #{unet_v5_forward.21} parent=0 // pred_check_branch
    %19 = sbr.rel (%p17) target = $region17
  $region16: #{unet_v5_forward.21} parent=0 // pred_region
    %20 = vst [vmem:[#allocation2] sm:$0xff] 0.0
    %21 = vst [vmem:[#allocation2 + $0x8] sm:$0xff] 0.0
    %22 = vst [vmem:[#allocation2 + $0x10] sm:$0xff] 0.0
    %23 = vst [vmem:[#allocation2 + $0x18] sm:$0xff] 0.0
  $region17: #{unet_v5_forward.21} parent=0 // pred_fallthru
    _
  %v24 = vld [vmem:[%s0] sm:$0xf]
  %v25 = vld [vmem:[%s0 + $0x4] sm:$0xf]
  %v26 = vld [vmem:[%s0 + $0x8] sm:$0xf]
  %v27 = vld [vmem:[%s0 + $0xc] sm:$0xf]
  %vm28 = vcmp.gt.bf16.partialorder %v24, 0
  %vm29 = vcmp.gt.bf16.partialorder %v25, 0
  %vm30 = vcmp.gt.bf16.partialorder %v26, 0
  %vm31 = vcmp.gt.bf16.partialorder %v27, 0
  %v32 = vmul.bf16 %v24, 1045249613
  %v33 = vmul.bf16 %v25, 1045249613
  %v34 = vmul.bf16 %v26, 1045249613
  %v35 = vmul.bf16 %v27, 1045249613
  %v36 = vsel %vm28, %v24, %v32
  %v37 = vsel %vm29, %v25, %v33
  %v38 = vsel %vm30, %v26, %v34
  %v39 = vsel %vm31, %v27, %v35
  %v40 = vld [vmem:[#allocation2] sm:$0xff]
  %v41 = vld [vmem:[#allocation2 + $0x8] sm:$0xff]
  %v42 = vld [vmem:[#allocation2 + $0x10] sm:$0xff]
  %v43 = vld [vmem:[#allocation2 + $0x18] sm:$0xff]
  %v44 = vld [vmem:[%s1] sm:$0xf]
  %v45 = vld [vmem:[%s1 + $0x4] sm:$0xf]
  %v46 = vld [vmem:[%s1 + $0x8] sm:$0xf]
  %v47 = vld [vmem:[%s1 + $0xc] sm:$0xf]
  %v48 = vld [vmem:[%s1 + $0x10] sm:$0xf]
  %v49 = vld [vmem:[%s1 + $0x14] sm:$0xf]
  %v50 = vld [vmem:[%s1 + $0x18] sm:$0xf]
  %v51 = vld [vmem:[%s1 + $0x1c] sm:$0xf]
  %v52 = vld [vmem:[%s1 + $0x20] sm:$0xf]
  %v53 = vld [vmem:[%s1 + $0x24] sm:$0xf]
  %v54 = vld [vmem:[%s1 + $0x28] sm:$0xf]
  %v55 = vld [vmem:[%s1 + $0x2c] sm:$0xf]
  %v56 = vld [vmem:[%s1 + $0x30] sm:$0xf]
  %v57 = vld [vmem:[%s1 + $0x34] sm:$0xf]
  %v58 = vld [vmem:[%s1 + $0x38] sm:$0xf]
  %v59 = vld [vmem:[%s1 + $0x3c] sm:$0xf]
  %v64 = vunpack.c.l.b16 %v36
  %v65 = vunpack.c.l.b16 %v37
  %v66 = vunpack.c.l.b16 %v38
  %v67 = vunpack.c.l.b16 %v39
  %v68 = vpack.c.b16 %v65, %v64
  %v69 = vpack.c.b16 %v67, %v66
  %v88 = vunpack.c.l.b16 %v44
  %v89 = vunpack.c.l.b16 %v45
  %v90 = vunpack.c.l.b16 %v46
  %v91 = vunpack.c.l.b16 %v47
  %v92 = vunpack.c.l.b16 %v48
  %v93 = vunpack.c.l.b16 %v49
  %v94 = vunpack.c.l.b16 %v50
  %v95 = vunpack.c.l.b16 %v51
  %v96 = vunpack.c.l.b16 %v52
  %v97 = vunpack.c.l.b16 %v53
  %v98 = vunpack.c.l.b16 %v54
  %v99 = vunpack.c.l.b16 %v55
  %v100 = vunpack.c.l.b16 %v56
  %v101 = vunpack.c.l.b16 %v57
  %v102 = vunpack.c.l.b16 %v58
  %v103 = vunpack.c.l.b16 %v59
  %v104 = vpack.c.b16 %v89, %v88
  %v105 = vpack.c.b16 %v91, %v90
  %v106 = vpack.c.b16 %v93, %v92
  %v107 = vpack.c.b16 %v95, %v94
  %v108 = vpack.c.b16 %v97, %v96
  %v109 = vpack.c.b16 %v99, %v98
  %v110 = vpack.c.b16 %v101, %v100
  %v111 = vpack.c.b16 %v103, %v102
  %120 = vmatprep.subr.bf16.mxu0 0
  %121 = vmatpush1.bf16.msra.mxu0 %v111
  %122 = vmatprep.subr.bf16.mxu0 0
  %123 = vmatpush1.bf16.msra.mxu0 %v110
  %124 = vmatprep.subr.bf16.mxu0 0
  %125 = vmatpush1.bf16.msra.mxu0 %v109
  %126 = vmatprep.subr.bf16.mxu0 0
  %127 = vmatpush1.bf16.msra.mxu0 %v108
  %128 = vmatprep.subr.bf16.mxu0 0
  %129 = vmatpush1.bf16.msra.mxu0 %v107
  %130 = vmatprep.subr.bf16.mxu0 0
  %131 = vmatpush1.bf16.msra.mxu0 %v106
  %132 = vmatprep.subr.bf16.mxu0 0
  %133 = vmatpush1.bf16.msra.mxu0 %v105
  %134 = vmatprep.subr.bf16.mxu0 0
  %135 = vmatpush1.bf16.msra.mxu0 %v104
  %136 = vmatprep.subr.bf16.mxu0 0
  %137 = vmatpush2.bf16.msra.mxu0 0
  %138 = vmatprep.subr.bf16.mxu0 0
  %139 = vmatpush2.bf16.msra.mxu0 0
  %140 = vmatprep.subr.bf16.mxu0 0
  %141 = vmatpush2.bf16.msra.mxu0 0
  %142 = vmatprep.subr.bf16.mxu0 0
  %143 = vmatpush2.bf16.msra.mxu0 0
  %144 = vmatprep.subr.bf16.mxu0 0
  %145 = vmatpush2.bf16.msra.mxu0 0
  %146 = vmatprep.subr.bf16.mxu0 0
  %147 = vmatpush2.bf16.msra.mxu0 0
  %148 = vmatprep.subr.bf16.mxu0 0
  %149 = vmatpush2.bf16.msra.mxu0 0
  %150 = vmatprep.subr.bf16.mxu0 0
  %151 = vmatpush2.bf16.msra.mxu0 0
  %152 = vmatprep.mubr.bf16.mxu0 0
  %153 = vmatmul.mubr.bf16.gmra.mxu0 %v68
  %v154 = vpop.f32.mrf.mxu0
  %v155 = vadd.f32 0.0, %v154
  %v156 = vpop.f32.mrf.mxu0
  %v157 = vpop.f32.mrf.mxu0
  %v158 = vadd.f32 0.0, %v157
  %v159 = vpop.f32.mrf.mxu0
  %160 = vmatprep.mubr.bf16.mxu0 0
  %161 = vmatmul.mubr.bf16.gmra.mxu0 %v69
  %v162 = vpop.f32.mrf.mxu0
  %v163 = vadd.f32 0.0, %v162
  %v164 = vpop.f32.mrf.mxu0
  %v165 = vpop.f32.mrf.mxu0
  %v166 = vadd.f32 0.0, %v165
  %v167 = vpop.f32.mrf.mxu0
  %168 = vdwg.mxu0
  %v169 = vadd.f32 %v40, %v155
  %v170 = vadd.f32 %v41, %v158
  %v171 = vadd.f32 %v42, %v163
  %v172 = vadd.f32 %v43, %v166
  %173 = vst [vmem:[#allocation2] sm:$0xff] %v169
  %174 = vst [vmem:[#allocation2 + $0x8] sm:$0xff] %v170
  %175 = vst [vmem:[#allocation2 + $0x10] sm:$0xff] %v171
  %176 = vst [vmem:[#allocation2 + $0x18] sm:$0xff] %v172
  // Predicated region
  $region18: #{unet_v5_forward.21} parent=0 // pred_check
    %p177 = pneg %p16
  $region19: #{unet_v5_forward.21} parent=0 // pred_check_branch
    %179 = sbr.rel (%p177) target = $region21
  $region20: #{unet_v5_forward.21} parent=0 // pred_region
    %v180 = vld [vmem:[#allocation2] sm:$0xff]
    %v181 = vld [vmem:[#allocation2 + $0x8] sm:$0xff]
    %v182 = vld [vmem:[#allocation2 + $0x10] sm:$0xff]
    %v183 = vld [vmem:[#allocation2 + $0x18] sm:$0xff]
    %v184 = vld [vmem:[%s2] sm:$0x1]
    %v186 = vlaneseq
    %v187 = vshrl.u32 %v186, 7
    %v188 = vsub.s32 0, %v187
    %v189 = vrot.slane %v184, %v188
    %v191 = vadd.f32 %v180, %v189
    %v192 = vadd.f32 %v181, %v189
    %v193 = vadd.f32 %v182, %v189
    %v194 = vadd.f32 %v183, %v189
    %v195 = vpack.c.bf16 %v192, %v191
    %v196 = vpack.c.bf16 %v194, %v193
    %v199 = vunpack.c.l.b16 %v195
    %v200 = vunpack.c.h.b16 %v195
    %v201 = vunpack.c.l.b16 %v196
    %v202 = vunpack.c.h.b16 %v196
    %v203 = vpack.c.b16 %v199, %v199
    %v204 = vpack.c.b16 %v200, %v200
    %v205 = vpack.c.b16 %v201, %v201
    %v206 = vpack.c.b16 %v202, %v202
    %211 = vst [vmem:[%s3] sm:$0xf] %v203
    %212 = vst [vmem:[%s3 + $0x4] sm:$0xf] %v204
    %213 = vst [vmem:[%s3 + $0x8] sm:$0xf] %v205
    %214 = vst [vmem:[%s3 + $0xc] sm:$0xf] %v206
  $region21: #{unet_v5_forward.21} parent=0 // pred_fallthru
    _
  // Predicated region
  $region22: #{unet_v5_forward.21} parent=0 // pred_check
    _
  $region23: #{unet_v5_forward.21} parent=0 // pred_check_branch
    %216 = sbr.rel (0) target = $region25
  $region24: #{unet_v5_forward.21} parent=0 // pred_region
    _
  $region25: #{unet_v5_forward.21} parent=0 // pred_fallthru
    _
  // Predicated region
  $region26: #{unet_v5_forward.21} parent=0 // pred_check
    _
  $region27: #{unet_v5_forward.21} parent=0 // pred_check_branch
    %218 = sbr.rel (0) target = $region29
  $region28: #{unet_v5_forward.21} parent=0 // pred_region
    _
  $region29: #{unet_v5_forward.21} parent=0 // pred_fallthru
    _

// kernel: unet_v5_forward.22
$region0: #{unet_v5_forward.22}
  #allocation0 [shape = 'u32[]', space=smem, size = 0x4, offset = 0x4, fixed_abs, tag = 'smem constant byte address 0x4 - core index']
  #allocation1 [shape = 'u32[144,128]{1,0:T(1,128)}', space=vmem, size = 0x12000, scoped, tag = 'internal scratch']
  #allocation2 [shape = 'f32[8,128]{1,0:T(8,128)}', space=vmem, size = 0x1000, scoped, tag = 'scratch operand']
  #allocation3 [shape = 'f32[8,128]{1,0:T(8,128)}', space=vmem, size = 0x1000, scoped, tag = 'scratch operand']
  %s0 = inlined_call_operand.vmem [shape: bf16[16,128], index: 0, kind: input, shape index: {}]
  %s1 = inlined_call_operand.vmem [shape: f32[1,128], index: 1, kind: output, shape index: {0}]
  %s2 = inlined_call_operand.vmem [shape: f32[1,128], index: 2, kind: output, shape index: {1}]
  %3 = xla_tuple %s1, %s2
  %s4 = sld [smem:[#allocation0]]
  $region30: #{unet_v5_forward.22} parent=0
    _
  %s6 = ssub.s32 1, %s4
  %s7 = scalar_select 0, %s6, %s4
  // Predicated region
  $region2: #{unet_v5_forward.22} parent=0 // pred_check
    _
  $region3: #{unet_v5_forward.22} parent=0 // pred_check_branch
    %9 = sbr.rel (0) target = $region5
  $region4: #{unet_v5_forward.22} parent=0 // pred_region
    _
  $region5: #{unet_v5_forward.22} parent=0 // pred_fallthru
    _
  %p10 = scmp.eq.s32.totalorder 0, 0
  // Predicated region
  $region6: #{unet_v5_forward.22} parent=0 // pred_check
    %p11 = pneg %p10
  $region7: #{unet_v5_forward.22} parent=0 // pred_check_branch
    %13 = sbr.rel (%p11) target = $region9
  $region8: #{unet_v5_forward.22} parent=0 // pred_region
    %14 = vst [vmem:[#allocation2] sm:$0xff] 0.0
    %15 = vst [vmem:[#allocation3] sm:$0xff] 0.0
  $region9: #{unet_v5_forward.22} parent=0 // pred_fallthru
    _
  %v16 = vld [vmem:[%s0] sm:$0xf]
  %v17 = vld [vmem:[%s0 + $0x4] sm:$0xf]
  %v18 = vunpack.c.l.bf16 %v16
  %v19 = vunpack.c.l.bf16 %v17
  %v20 = vld [vmem:[#allocation2] sm:$0xff]
  %v21 = vadd.f32 %v18, %v19
  %v22 = vadd.f32 %v20, %v21
  %23 = vst [vmem:[#allocation2] sm:$0xff] %v22
  %v24 = vld [vmem:[#allocation3] sm:$0xff]
  %v25 = vmul.f32 %v18, %v18
  %v26 = vmul.f32 %v19, %v19
  %v27 = vadd.f32 %v25, %v26
  %v28 = vadd.f32 %v24, %v27
  %29 = vst [vmem:[#allocation3] sm:$0xff] %v28
  // Predicated region
  $region10: #{unet_v5_forward.22} parent=0 // pred_check
    %p30 = pneg %p10
  $region11: #{unet_v5_forward.22} parent=0 // pred_check_branch
    %32 = sbr.rel (%p30) target = $region13
  $region12: #{unet_v5_forward.22} parent=0 // pred_region
    %v33 = vld [vmem:[#allocation2] sm:$0xff]
    %v34 = vrot.slane %v33, 4
    %v35 = vadd.f32 %v33, %v34
    %v36 = vrot.slane %v35, 2
    %v37 = vadd.f32 %v35, %v36
    %v38 = vrot.slane %v37, 1
    %v39 = vadd.f32 %v37, %v38
    %40 = vst [vmem:[%s1] sm:$0x1] %v39
    %v41 = vld [vmem:[#allocation3] sm:$0xff]
    %v42 = vrot.slane %v41, 4
    %v43 = vadd.f32 %v41, %v42
    %v44 = vrot.slane %v43, 2
    %v45 = vadd.f32 %v43, %v44
    %v46 = vrot.slane %v45, 1
    %v47 = vadd.f32 %v45, %v46
    %48 = vst [vmem:[%s2] sm:$0x1] %v47
  $region13: #{unet_v5_forward.22} parent=0 // pred_fallthru
    _
  // Predicated region
  $region14: #{unet_v5_forward.22} parent=0 // pred_check
    _
  $region15: #{unet_v5_forward.22} parent=0 // pred_check_branch
    %50 = sbr.rel (0) target = $region17
  $region16: #{unet_v5_forward.22} parent=0 // pred_region
    _
  $region17: #{unet_v5_forward.22} parent=0 // pred_fallthru
    _
  // Predicated region
  $region18: #{unet_v5_forward.22} parent=0 // pred_check
    _
  $region19: #{unet_v5_forward.22} parent=0 // pred_check_branch
    %52 = sbr.rel (0) target = $region21
  $region20: #{unet_v5_forward.22} parent=0 // pred_region
    _
  $region21: #{unet_v5_forward.22} parent=0 // pred_fallthru
    _
  // Predicated region
  $region22: #{unet_v5_forward.22} parent=0 // pred_check
    _
  $region23: #{unet_v5_forward.22} parent=0 // pred_check_branch
    %54 = sbr.rel (0) target = $region25
  $region24: #{unet_v5_forward.22} parent=0 // pred_region
    _
  $region25: #{unet_v5_forward.22} parent=0 // pred_fallthru
    _
  // Predicated region
  $region26: #{unet_v5_forward.22} parent=0 // pred_check
    _
  $region27: #{unet_v5_forward.22} parent=0 // pred_check_branch
    %56 = sbr.rel (0) target = $region29
  $region28: #{unet_v5_forward.22} parent=0 // pred_region
    _
  $region29: #{unet_v5_forward.22} parent=0 // pred_fallthru
    _

// kernel: unet_v5_forward.23
$region0: #{unet_v5_forward.23}
  #allocation0 [shape = 'u32[]', space=smem, size = 0x4, offset = 0x4, fixed_abs, tag = 'smem constant byte address 0x4 - core index']
  #allocation1 [shape = 'u32[144,128]{1,0:T(1,128)}', space=vmem, size = 0x12000, scoped, tag = 'internal scratch']
  %s0 = inlined_call_operand.vmem [shape: bf16[16,128], index: 0, kind: input, shape index: {}]
  %s1 = inlined_call_operand.vmem [shape: f32[1,128], index: 1, kind: input, shape index: {}]
  %s2 = inlined_call_operand.vmem [shape: f32[1,128], index: 2, kind: input, shape index: {}]
  %s3 = inlined_call_operand.vmem [shape: bf16[16,128], index: 3, kind: output, shape index: {}]
  %s4 = sld [smem:[#allocation0]]
  $region22: #{unet_v5_forward.23} parent=0
    _
  %s6 = ssub.s32 1, %s4
  %s7 = scalar_select 0, %s6, %s4
  // Predicated region
  $region2: #{unet_v5_forward.23} parent=0 // pred_check
    _
  $region3: #{unet_v5_forward.23} parent=0 // pred_check_branch
    %9 = sbr.rel (0) target = $region5
  $region4: #{unet_v5_forward.23} parent=0 // pred_region
    _
  $region5: #{unet_v5_forward.23} parent=0 // pred_fallthru
    _
  // Predicated region
  $region6: #{unet_v5_forward.23} parent=0 // pred_check
    _
  $region7: #{unet_v5_forward.23} parent=0 // pred_check_branch
    %11 = sbr.rel (0) target = $region9
  $region8: #{unet_v5_forward.23} parent=0 // pred_region
    _
  $region9: #{unet_v5_forward.23} parent=0 // pred_fallthru
    _
  // Predicated region
  $region10: #{unet_v5_forward.23} parent=0 // pred_check
    _
  $region11: #{unet_v5_forward.23} parent=0 // pred_check_branch
    %13 = sbr.rel (0) target = $region13
  $region12: #{unet_v5_forward.23} parent=0 // pred_region
    _
  $region13: #{unet_v5_forward.23} parent=0 // pred_fallthru
    _
  %v14 = vld [vmem:[%s0] sm:$0xf]
  %v15 = vld [vmem:[%s0 + $0x4] sm:$0xf]
  %v16 = vunpack.c.l.bf16 %v14
  %v17 = vunpack.c.l.bf16 %v15
  %v18 = vld [vmem:[%s1] sm:$0x1]
  %v20 = vlaneseq
  %v21 = vshrl.u32 %v20, 7
  %v22 = vsub.s32 0, %v21
  %v23 = vrot.slane %v18, %v22
  %v25 = vmul.f32 %v16, %v23
  %v26 = vmul.f32 %v17, %v23
  %v27 = vld [vmem:[%s2] sm:$0x1]
  %v29 = vlaneseq
  %v30 = vshrl.u32 %v29, 7
  %v31 = vsub.s32 0, %v30
  %v32 = vrot.slane %v27, %v31
  %v34 = vadd.f32 %v25, %v32
  %v35 = vadd.f32 %v26, %v32
  %v36 = vpack.c.bf16 %v35, %v34
  %v38 = vunpack.c.l.b16 %v36
  %v39 = vunpack.c.h.b16 %v36
  %v40 = vpack.c.b16 %v38, %v38
  %v41 = vpack.c.b16 %v39, %v39
  %44 = vst [vmem:[%s3] sm:$0xf] %v40
  %45 = vst [vmem:[%s3 + $0x4] sm:$0xf] %v41
  // Predicated region
  $region14: #{unet_v5_forward.23} parent=0 // pred_check
    _
  $region15: #{unet_v5_forward.23} parent=0 // pred_check_branch
    %47 = sbr.rel (0) target = $region17
  $region16: #{unet_v5_forward.23} parent=0 // pred_region
    _
  $region17: #{unet_v5_forward.23} parent=0 // pred_fallthru
    _
  // Predicated region
  $region18: #{unet_v5_forward.23} parent=0 // pred_check
    _
  $region19: #{unet_v5_forward.23} parent=0 // pred_check_branch
    %49 = sbr.rel (0) target = $region21
  $region20: #{unet_v5_forward.23} parent=0 // pred_region
    _
  $region21: #{unet_v5_forward.23} parent=0 // pred_fallthru
    _

// kernel: tile.93
$region0: #{tile.93}
  #allocation0 [shape = 's32[1]{0}', space=sflag, size = 0x4, scoped, tag = 'scoped memory for tile.93']
  %s0 = inlined_call_operand.vmem [shape: f32[16], index: 0, kind: input, shape index: {}]
  %s1 = inlined_call_operand.vmem [shape: f32[8,16], index: 1, kind: output, shape index: {}]
  // Predicated region
  $region2: #{tile.93} parent=0 // pred_check
    _
  $region3: #{tile.93} parent=0 // pred_check_branch
    %3 = sbr.rel (0) target = $region5
  $region4: #{tile.93} parent=0 // pred_region
    _
  $region5: #{tile.93} parent=0 // pred_fallthru
    _
  %v4 = vld [vmem:[%s0] ss:$0 sm:$0xff]
  %5 = vst [vmem:[%s1] sm:$0xff] %v4

// kernel: tile.94
$region0: #{tile.94}
  %s0 = inlined_call_operand.vmem [shape: f32[8,16], index: 0, kind: input, shape index: {}]
  %s1 = inlined_call_operand.vmem [shape: f32[1,128], index: 1, kind: output, shape index: {}]
  $region1: #{tile.94} parent=0
    #allocation0 [shape = 'u8[4096]{0}', space=vmem, size = 0x1000, scoped, tag = 'scoped mem for output reshape']
    %v2 = vld [vmem:[%s0] sm:$0x1]
    %vm3 = vcmask 130048
    %4 = vst.msk [vmem:[#allocation0] sm:$0x1] %vm3, %v2
    %s5 = scalar_lea.vmem %s0, 7
    %v6 = vld [vmem:[%s5] sm:$0x1]
    %7 = vrot.lane.b32.xlu0 %v6, 112
    %v8 = vpop.permute.xlu0 %7
    %vm9 = vcmask 1048448
    %10 = vst.msk [vmem:[#allocation0] sm:$0x1] %vm9, %v8
    %s11 = scalar_lea.vmem %s0, 6
    %v12 = vld [vmem:[%s11] sm:$0x1]
    %13 = vrot.lane.b32.xlu0 %v12, 96
    %v14 = vpop.permute.xlu0 %13
    %vm15 = vcmask 917248
    %16 = vst.msk [vmem:[#allocation0] sm:$0x1] %vm15, %v14
    %s17 = scalar_lea.vmem %s0, 5
    %v18 = vld [vmem:[%s17] sm:$0x1]
    %19 = vrot.lane.b32.xlu0 %v18, 80
    %v20 = vpop.permute.xlu0 %19
    %vm21 = vcmask 786048
    %22 = vst.msk [vmem:[#allocation0] sm:$0x1] %vm21, %v20
    %s23 = scalar_lea.vmem %s0, 4
    %v24 = vld [vmem:[%s23] sm:$0x1]
    %25 = vrot.lane.b32.xlu0 %v24, 64
    %v26 = vpop.permute.xlu0 %25
    %vm27 = vcmask 654848
    %28 = vst.msk [vmem:[#allocation0] sm:$0x1] %vm27, %v26
    %s29 = scalar_lea.vmem %s0, 3
    %v30 = vld [vmem:[%s29] sm:$0x1]
    %31 = vrot.lane.b32.xlu0 %v30, 48
    %v32 = vpop.permute.xlu0 %31
    %vm33 = vcmask 523648
    %34 = vst.msk [vmem:[#allocation0] sm:$0x1] %vm33, %v32
    %s35 = scalar_lea.vmem %s0, 2
    %v36 = vld [vmem:[%s35] sm:$0x1]
    %37 = vrot.lane.b32.xlu0 %v36, 32
    %v38 = vpop.permute.xlu0 %37
    %vm39 = vcmask 392448
    %40 = vst.msk [vmem:[#allocation0] sm:$0x1] %vm39, %v38
    %s41 = scalar_lea.vmem %s0, 1
    %v42 = vld [vmem:[%s41] sm:$0x1]
    %43 = vrot.lane.b32.xlu0 %v42, 16
    %v44 = vpop.permute.xlu0 %43
    %vm45 = vcmask 261248
    %46 = vst.msk [vmem:[#allocation0] sm:$0x1] %vm45, %v44
    %s48 = sshll.u32 1, 1
    %s49 = ssub.s32 %s48, 1
    %v51 = vld [vmem:[#allocation0] sm:%s49]
    %s52 = sshll.u32 1, 1
    %s53 = ssub.s32 %s52, 1
    %54 = vst [vmem:[%s1] sm:%s53] %v51

// kernel: tile.103
$region0: #{tile.103}
  #allocation0 [shape = 's32[1]{0}', space=sflag, size = 0x4, scoped, tag = 'scoped memory for tile.103']
  %s0 = inlined_call_operand.vmem [shape: f32[32], index: 0, kind: input, shape index: {}]
  %s1 = inlined_call_operand.vmem [shape: f32[4,32], index: 1, kind: output, shape index: {}]
  // Predicated region
  $region2: #{tile.103} parent=0 // pred_check
    _
  $region3: #{tile.103} parent=0 // pred_check_branch
    %3 = sbr.rel (0) target = $region5
  $region4: #{tile.103} parent=0 // pred_region
    _
  $region5: #{tile.103} parent=0 // pred_fallthru
    _
  %v4 = vld [vmem:[%s0] ss:$0 sm:$0xff]
  %5 = vst [vmem:[%s1] sm:$0xf] %v4

// kernel: tile.104
$region0: #{tile.104}
  %s0 = inlined_call_operand.vmem [shape: f32[4,32], index: 0, kind: input, shape index: {}]
  %s1 = inlined_call_operand.vmem [shape: f32[1,128], index: 1, kind: output, shape index: {}]
  $region1: #{tile.104} parent=0
    #allocation0 [shape = 'u8[4096]{0}', space=vmem, size = 0x1000, scoped, tag = 'scoped mem for output reshape']
    #allocation1 [shape = 'u8[4096]{0}', space=vmem, size = 0x1000, scoped, tag = 'scoped mem for input reshape']
    %s3 = sshll.u32 1, 4
    %s4 = ssub.s32 %s3, 1
    %v5 = vld [vmem:[%s0] sm:%s4]
    %6 = vst [vmem:[#allocation1] sm:%s4] %v5
    %v7 = vld [vmem:[#allocation1] sm:$0x1]
    %vm8 = vcmask 261120
    %9 = vst.msk [vmem:[#allocation0] sm:$0x1] %vm8, %v7
    %s10 = scalar_lea.vmem [#allocation1], 3
    %v11 = vld [vmem:[%s10] sm:$0x1]
    %12 = vrot.lane.b32.xlu0 %v11, 96
    %v13 = vpop.permute.xlu0 %12
    %vm14 = vcmask 1048320
    %15 = vst.msk [vmem:[#allocation0] sm:$0x1] %vm14, %v13
    %s16 = scalar_lea.vmem [#allocation1], 2
    %v17 = vld [vmem:[%s16] sm:$0x1]
    %18 = vrot.lane.b32.xlu0 %v17, 64
    %v19 = vpop.permute.xlu0 %18
    %vm20 = vcmask 785920
    %21 = vst.msk [vmem:[#allocation0] sm:$0x1] %vm20, %v19
    %s22 = scalar_lea.vmem [#allocation1], 1
    %v23 = vld [vmem:[%s22] sm:$0x1]
    %24 = vrot.lane.b32.xlu0 %v23, 32
    %v25 = vpop.permute.xlu0 %24
    %vm26 = vcmask 523520
    %27 = vst.msk [vmem:[#allocation0] sm:$0x1] %vm26, %v25
    %s29 = sshll.u32 1, 1
    %s30 = ssub.s32 %s29, 1
    %v32 = vld [vmem:[#allocation0] sm:%s30]
    %s33 = sshll.u32 1, 1
    %s34 = ssub.s32 %s33, 1
    %35 = vst [vmem:[%s1] sm:%s34] %v32

// kernel: unet_v5_forward.24
$region0: #{unet_v5_forward.24}
  #allocation0 [shape = 'u32[]', space=smem, size = 0x4, offset = 0x4, fixed_abs, tag = 'smem constant byte address 0x4 - core index']
  #allocation1 [shape = 'u32[144,128]{1,0:T(1,128)}', space=vmem, size = 0x12000, scoped, tag = 'internal scratch']
  #allocation2 [shape = 'f32[16,128]{1,0:T(8,128)}', space=vmem, size = 0x2000, scoped, tag = 'scratch operand']
  %s0 = inlined_call_operand.vmem [shape: bf16[16,128], index: 0, kind: input, shape index: {}]
  %s1 = inlined_call_operand.vmem [shape: bf16[128,128], index: 1, kind: input, shape index: {}]
  %s2 = inlined_call_operand.vmem [shape: f32[1,128], index: 2, kind: input, shape index: {}]
  %s3 = inlined_call_operand.vmem [shape: bf16[16,128], index: 3, kind: output, shape index: {}]
  %s4 = sld [smem:[#allocation0]]
  $region30: #{unet_v5_forward.24} parent=0
    _
  %s6 = ssub.s32 1, %s4
  %s7 = scalar_select 0, %s6, %s4
  // Predicated region
  $region2: #{unet_v5_forward.24} parent=0 // pred_check
    _
  $region3: #{unet_v5_forward.24} parent=0 // pred_check_branch
    %9 = sbr.rel (0) target = $region5
  $region4: #{unet_v5_forward.24} parent=0 // pred_region
    _
  $region5: #{unet_v5_forward.24} parent=0 // pred_fallthru
    _
  // Predicated region
  $region6: #{unet_v5_forward.24} parent=0 // pred_check
    _
  $region7: #{unet_v5_forward.24} parent=0 // pred_check_branch
    %11 = sbr.rel (0) target = $region9
  $region8: #{unet_v5_forward.24} parent=0 // pred_region
    _
  $region9: #{unet_v5_forward.24} parent=0 // pred_fallthru
    _
  // Predicated region
  $region10: #{unet_v5_forward.24} parent=0 // pred_check
    _
  $region11: #{unet_v5_forward.24} parent=0 // pred_check_branch
    %13 = sbr.rel (0) target = $region13
  $region12: #{unet_v5_forward.24} parent=0 // pred_region
    _
  $region13: #{unet_v5_forward.24} parent=0 // pred_fallthru
    _
  %p16 = scmp.eq.s32.totalorder 0, 0
  // Predicated region
  $region14: #{unet_v5_forward.24} parent=0 // pred_check
    %p17 = pneg %p16
  $region15: #{unet_v5_forward.24} parent=0 // pred_check_branch
    %19 = sbr.rel (%p17) target = $region17
  $region16: #{unet_v5_forward.24} parent=0 // pred_region
    %20 = vst [vmem:[#allocation2] sm:$0xff] 0.0
    %21 = vst [vmem:[#allocation2 + $0x8] sm:$0xff] 0.0
  $region17: #{unet_v5_forward.24} parent=0 // pred_fallthru
    _
  %v22 = vld [vmem:[%s0] sm:$0xf]
  %v23 = vld [vmem:[%s0 + $0x4] sm:$0xf]
  %vm24 = vcmp.gt.bf16.partialorder %v22, 0
  %vm25 = vcmp.gt.bf16.partialorder %v23, 0
  %v26 = vmul.bf16 %v22, 1045249613
  %v27 = vmul.bf16 %v23, 1045249613
  %v28 = vsel %vm24, %v22, %v26
  %v29 = vsel %vm25, %v23, %v27
  %v30 = vld [vmem:[#allocation2] sm:$0xff]
  %v31 = vld [vmem:[#allocation2 + $0x8] sm:$0xff]
  %v32 = vld [vmem:[%s1] sm:$0xf]
  %v33 = vld [vmem:[%s1 + $0x4] sm:$0xf]
  %v34 = vld [vmem:[%s1 + $0x8] sm:$0xf]
  %v35 = vld [vmem:[%s1 + $0xc] sm:$0xf]
  %v36 = vld [vmem:[%s1 + $0x10] sm:$0xf]
  %v37 = vld [vmem:[%s1 + $0x14] sm:$0xf]
  %v38 = vld [vmem:[%s1 + $0x18] sm:$0xf]
  %v39 = vld [vmem:[%s1 + $0x1c] sm:$0xf]
  %v40 = vld [vmem:[%s1 + $0x20] sm:$0xf]
  %v41 = vld [vmem:[%s1 + $0x24] sm:$0xf]
  %v42 = vld [vmem:[%s1 + $0x28] sm:$0xf]
  %v43 = vld [vmem:[%s1 + $0x2c] sm:$0xf]
  %v44 = vld [vmem:[%s1 + $0x30] sm:$0xf]
  %v45 = vld [vmem:[%s1 + $0x34] sm:$0xf]
  %v46 = vld [vmem:[%s1 + $0x38] sm:$0xf]
  %v47 = vld [vmem:[%s1 + $0x3c] sm:$0xf]
  %v50 = vunpack.c.l.b16 %v28
  %v51 = vunpack.c.l.b16 %v29
  %v52 = vpack.c.b16 %v51, %v50
  %v70 = vunpack.c.l.b16 %v32
  %v71 = vunpack.c.l.b16 %v33
  %v72 = vunpack.c.l.b16 %v34
  %v73 = vunpack.c.l.b16 %v35
  %v74 = vunpack.c.l.b16 %v36
  %v75 = vunpack.c.l.b16 %v37
  %v76 = vunpack.c.l.b16 %v38
  %v77 = vunpack.c.l.b16 %v39
  %v78 = vunpack.c.l.b16 %v40
  %v79 = vunpack.c.l.b16 %v41
  %v80 = vunpack.c.l.b16 %v42
  %v81 = vunpack.c.l.b16 %v43
  %v82 = vunpack.c.l.b16 %v44
  %v83 = vunpack.c.l.b16 %v45
  %v84 = vunpack.c.l.b16 %v46
  %v85 = vunpack.c.l.b16 %v47
  %v86 = vpack.c.b16 %v71, %v70
  %v87 = vpack.c.b16 %v73, %v72
  %v88 = vpack.c.b16 %v75, %v74
  %v89 = vpack.c.b16 %v77, %v76
  %v90 = vpack.c.b16 %v79, %v78
  %v91 = vpack.c.b16 %v81, %v80
  %v92 = vpack.c.b16 %v83, %v82
  %v93 = vpack.c.b16 %v85, %v84
  %102 = vmatprep.subr.bf16.mxu0 0
  %103 = vmatpush1.bf16.msra.mxu0 %v93
  %104 = vmatprep.subr.bf16.mxu0 0
  %105 = vmatpush1.bf16.msra.mxu0 %v92
  %106 = vmatprep.subr.bf16.mxu0 0
  %107 = vmatpush1.bf16.msra.mxu0 %v91
  %108 = vmatprep.subr.bf16.mxu0 0
  %109 = vmatpush1.bf16.msra.mxu0 %v90
  %110 = vmatprep.subr.bf16.mxu0 0
  %111 = vmatpush1.bf16.msra.mxu0 %v89
  %112 = vmatprep.subr.bf16.mxu0 0
  %113 = vmatpush1.bf16.msra.mxu0 %v88
  %114 = vmatprep.subr.bf16.mxu0 0
  %115 = vmatpush1.bf16.msra.mxu0 %v87
  %116 = vmatprep.subr.bf16.mxu0 0
  %117 = vmatpush1.bf16.msra.mxu0 %v86
  %118 = vmatprep.subr.bf16.mxu0 0
  %119 = vmatpush2.bf16.msra.mxu0 0
  %120 = vmatprep.subr.bf16.mxu0 0
  %121 = vmatpush2.bf16.msra.mxu0 0
  %122 = vmatprep.subr.bf16.mxu0 0
  %123 = vmatpush2.bf16.msra.mxu0 0
  %124 = vmatprep.subr.bf16.mxu0 0
  %125 = vmatpush2.bf16.msra.mxu0 0
  %126 = vmatprep.subr.bf16.mxu0 0
  %127 = vmatpush2.bf16.msra.mxu0 0
  %128 = vmatprep.subr.bf16.mxu0 0
  %129 = vmatpush2.bf16.msra.mxu0 0
  %130 = vmatprep.subr.bf16.mxu0 0
  %131 = vmatpush2.bf16.msra.mxu0 0
  %132 = vmatprep.subr.bf16.mxu0 0
  %133 = vmatpush2.bf16.msra.mxu0 0
  %134 = vmatprep.mubr.bf16.mxu0 0
  %135 = vmatmul.mubr.bf16.gmra.mxu0 %v52
  %v136 = vpop.f32.mrf.mxu0
  %v137 = vadd.f32 0.0, %v136
  %v138 = vpop.f32.mrf.mxu0
  %v139 = vpop.f32.mrf.mxu0
  %v140 = vadd.f32 0.0, %v139
  %v141 = vpop.f32.mrf.mxu0
  %142 = vdwg.mxu0
  %v143 = vadd.f32 %v30, %v137
  %v144 = vadd.f32 %v31, %v140
  %145 = vst [vmem:[#allocation2] sm:$0xff] %v143
  %146 = vst [vmem:[#allocation2 + $0x8] sm:$0xff] %v144
  // Predicated region
  $region18: #{unet_v5_forward.24} parent=0 // pred_check
    %p147 = pneg %p16
  $region19: #{unet_v5_forward.24} parent=0 // pred_check_branch
    %149 = sbr.rel (%p147) target = $region21
  $region20: #{unet_v5_forward.24} parent=0 // pred_region
    %v150 = vld [vmem:[#allocation2] sm:$0xff]
    %v151 = vld [vmem:[#allocation2 + $0x8] sm:$0xff]
    %v152 = vld [vmem:[%s2] sm:$0x1]
    %v154 = vlaneseq
    %v155 = vshrl.u32 %v154, 7
    %v156 = vsub.s32 0, %v155
    %v157 = vrot.slane %v152, %v156
    %v159 = vadd.f32 %v150, %v157
    %v160 = vadd.f32 %v151, %v157
    %v161 = vpack.c.bf16 %v160, %v159
    %v163 = vunpack.c.l.b16 %v161
    %v164 = vunpack.c.h.b16 %v161
    %v165 = vpack.c.b16 %v163, %v163
    %v166 = vpack.c.b16 %v164, %v164
    %169 = vst [vmem:[%s3] sm:$0xf] %v165
    %170 = vst [vmem:[%s3 + $0x4] sm:$0xf] %v166
  $region21: #{unet_v5_forward.24} parent=0 // pred_fallthru
    _
  // Predicated region
  $region22: #{unet_v5_forward.24} parent=0 // pred_check
    _
  $region23: #{unet_v5_forward.24} parent=0 // pred_check_branch
    %172 = sbr.rel (0) target = $region25
  $region24: #{unet_v5_forward.24} parent=0 // pred_region
    _
  $region25: #{unet_v5_forward.24} parent=0 // pred_fallthru
    _
  // Predicated region
  $region26: #{unet_v5_forward.24} parent=0 // pred_check
    _
  $region27: #{unet_v5_forward.24} parent=0 // pred_check_branch
    %174 = sbr.rel (0) target = $region29
  $region28: #{unet_v5_forward.24} parent=0 // pred_region
    _
  $region29: #{unet_v5_forward.24} parent=0 // pred_fallthru
    _

// kernel: tile.113
$region0: #{tile.113}
  #allocation0 [shape = 's32[1]{0}', space=sflag, size = 0x4, scoped, tag = 'scoped memory for tile.113']
  %s0 = inlined_call_operand.vmem [shape: f32[16], index: 0, kind: input, shape index: {}]
  %s1 = inlined_call_operand.vmem [shape: f32[4,16], index: 1, kind: output, shape index: {}]
  // Predicated region
  $region2: #{tile.113} parent=0 // pred_check
    _
  $region3: #{tile.113} parent=0 // pred_check_branch
    %3 = sbr.rel (0) target = $region5
  $region4: #{tile.113} parent=0 // pred_region
    _
  $region5: #{tile.113} parent=0 // pred_fallthru
    _
  %v4 = vld [vmem:[%s0] ss:$0 sm:$0xff]
  %5 = vst [vmem:[%s1] sm:$0xf] %v4

// kernel: tile.114
$region0: #{tile.114}
  %s0 = inlined_call_operand.vmem [shape: f32[4,16], index: 0, kind: input, shape index: {}]
  %s1 = inlined_call_operand.vmem [shape: f32[64], index: 1, kind: output, shape index: {}]
  $region1: #{tile.114} parent=0
    #allocation0 [shape = 'u8[4096]{0}', space=vmem, size = 0x1000, scoped, tag = 'scoped mem for output reshape']
    #allocation1 [shape = 'u8[4096]{0}', space=vmem, size = 0x1000, scoped, tag = 'scoped mem for input reshape']
    %s3 = sshll.u32 1, 4
    %s4 = ssub.s32 %s3, 1
    %v5 = vld [vmem:[%s0] sm:%s4]
    %6 = vst [vmem:[#allocation1] sm:%s4] %v5
    %v7 = vld [vmem:[#allocation1] sm:$0x1]
    %vm8 = vcmask 130048
    %9 = vst.msk [vmem:[#allocation0] sm:$0x1] %vm8, %v7
    %s10 = scalar_lea.vmem [#allocation1], 3
    %v11 = vld [vmem:[%s10] sm:$0x1]
    %12 = vrot.lane.b32.xlu0 %v11, 48
    %v13 = vpop.permute.xlu0 %12
    %vm14 = vcmask 523648
    %15 = vst.msk [vmem:[#allocation0] sm:$0x1] %vm14, %v13
    %s16 = scalar_lea.vmem [#allocation1], 2
    %v17 = vld [vmem:[%s16] sm:$0x1]
    %18 = vrot.lane.b32.xlu0 %v17, 32
    %v19 = vpop.permute.xlu0 %18
    %vm20 = vcmask 392448
    %21 = vst.msk [vmem:[#allocation0] sm:$0x1] %vm20, %v19
    %s22 = scalar_lea.vmem [#allocation1], 1
    %v23 = vld [vmem:[%s22] sm:$0x1]
    %24 = vrot.lane.b32.xlu0 %v23, 16
    %v25 = vpop.permute.xlu0 %24
    %vm26 = vcmask 261248
    %27 = vst.msk [vmem:[#allocation0] sm:$0x1] %vm26, %v25
    %s29 = sshll.u32 1, 1
    %s30 = ssub.s32 %s29, 1
    %v32 = vld [vmem:[#allocation0] sm:%s30]
    %s33 = sshll.u32 1, 1
    %s34 = ssub.s32 %s33, 1
    %35 = vst [vmem:[%s1] sm:%s34] %v32

// kernel: unet_v5_forward.27
$region0: #{unet_v5_forward.27}
  #allocation0 [shape = 'u32[]', space=smem, size = 0x4, offset = 0x4, fixed_abs, tag = 'smem constant byte address 0x4 - core index']
  #allocation1 [shape = 'u32[144,128]{1,0:T(1,128)}', space=vmem, size = 0x12000, scoped, tag = 'internal scratch']
  #allocation2 [shape = 'f32[16,128]{1,0:T(8,128)}', space=vmem, size = 0x2000, scoped, tag = 'scratch operand']
  %s0 = inlined_call_operand.vmem [shape: bf16[16,256], index: 0, kind: input, shape index: {}]
  %s1 = inlined_call_operand.vmem [shape: bf16[256,128], index: 1, kind: input, shape index: {}]
  %s2 = inlined_call_operand.vmem [shape: f32[1,128], index: 2, kind: input, shape index: {}]
  %s3 = inlined_call_operand.vmem [shape: bf16[16,128], index: 3, kind: output, shape index: {}]
  %s4 = sld [smem:[#allocation0]]
  $region30: #{unet_v5_forward.27} parent=0
    _
  %s6 = ssub.s32 1, %s4
  %s7 = scalar_select 0, %s6, %s4
  // Predicated region
  $region2: #{unet_v5_forward.27} parent=0 // pred_check
    _
  $region3: #{unet_v5_forward.27} parent=0 // pred_check_branch
    %9 = sbr.rel (0) target = $region5
  $region4: #{unet_v5_forward.27} parent=0 // pred_region
    _
  $region5: #{unet_v5_forward.27} parent=0 // pred_fallthru
    _
  // Predicated region
  $region6: #{unet_v5_forward.27} parent=0 // pred_check
    _
  $region7: #{unet_v5_forward.27} parent=0 // pred_check_branch
    %11 = sbr.rel (0) target = $region9
  $region8: #{unet_v5_forward.27} parent=0 // pred_region
    _
  $region9: #{unet_v5_forward.27} parent=0 // pred_fallthru
    _
  // Predicated region
  $region10: #{unet_v5_forward.27} parent=0 // pred_check
    _
  $region11: #{unet_v5_forward.27} parent=0 // pred_check_branch
    %13 = sbr.rel (0) target = $region13
  $region12: #{unet_v5_forward.27} parent=0 // pred_region
    _
  $region13: #{unet_v5_forward.27} parent=0 // pred_fallthru
    _
  %p16 = scmp.eq.s32.totalorder 0, 0
  // Predicated region
  $region14: #{unet_v5_forward.27} parent=0 // pred_check
    %p17 = pneg %p16
  $region15: #{unet_v5_forward.27} parent=0 // pred_check_branch
    %19 = sbr.rel (%p17) target = $region17
  $region16: #{unet_v5_forward.27} parent=0 // pred_region
    %20 = vst [vmem:[#allocation2] sm:$0xff] 0.0
    %21 = vst [vmem:[#allocation2 + $0x8] sm:$0xff] 0.0
  $region17: #{unet_v5_forward.27} parent=0 // pred_fallthru
    _
  %v22 = vld [vmem:[%s0] sm:$0xff]
  %v23 = vld [vmem:[%s0 + $0x8] sm:$0xff]
  %vm24 = vcmp.gt.bf16.partialorder %v22, 0
  %vm25 = vcmp.gt.bf16.partialorder %v23, 0
  %v26 = vmul.bf16 %v22, 1045249613
  %v27 = vmul.bf16 %v23, 1045249613
  %v28 = vsel %vm24, %v22, %v26
  %v29 = vsel %vm25, %v23, %v27
  %v30 = vld [vmem:[#allocation2] sm:$0xff]
  %v31 = vld [vmem:[#allocation2 + $0x8] sm:$0xff]
  %v32 = vld [vmem:[%s1] sm:$0xf]
  %v33 = vld [vmem:[%s1 + $0x4] sm:$0xf]
  %v34 = vld [vmem:[%s1 + $0x8] sm:$0xf]
  %v35 = vld [vmem:[%s1 + $0xc] sm:$0xf]
  %v36 = vld [vmem:[%s1 + $0x10] sm:$0xf]
  %v37 = vld [vmem:[%s1 + $0x14] sm:$0xf]
  %v38 = vld [vmem:[%s1 + $0x18] sm:$0xf]
  %v39 = vld [vmem:[%s1 + $0x1c] sm:$0xf]
  %v40 = vld [vmem:[%s1 + $0x20] sm:$0xf]
  %v41 = vld [vmem:[%s1 + $0x24] sm:$0xf]
  %v42 = vld [vmem:[%s1 + $0x28] sm:$0xf]
  %v43 = vld [vmem:[%s1 + $0x2c] sm:$0xf]
  %v44 = vld [vmem:[%s1 + $0x30] sm:$0xf]
  %v45 = vld [vmem:[%s1 + $0x34] sm:$0xf]
  %v46 = vld [vmem:[%s1 + $0x38] sm:$0xf]
  %v47 = vld [vmem:[%s1 + $0x3c] sm:$0xf]
  %v48 = vld [vmem:[%s1 + $0x40] sm:$0xf]
  %v49 = vld [vmem:[%s1 + $0x44] sm:$0xf]
  %v50 = vld [vmem:[%s1 + $0x48] sm:$0xf]
  %v51 = vld [vmem:[%s1 + $0x4c] sm:$0xf]
  %v52 = vld [vmem:[%s1 + $0x50] sm:$0xf]
  %v53 = vld [vmem:[%s1 + $0x54] sm:$0xf]
  %v54 = vld [vmem:[%s1 + $0x58] sm:$0xf]
  %v55 = vld [vmem:[%s1 + $0x5c] sm:$0xf]
  %v56 = vld [vmem:[%s1 + $0x60] sm:$0xf]
  %v57 = vld [vmem:[%s1 + $0x64] sm:$0xf]
  %v58 = vld [vmem:[%s1 + $0x68] sm:$0xf]
  %v59 = vld [vmem:[%s1 + $0x6c] sm:$0xf]
  %v60 = vld [vmem:[%s1 + $0x70] sm:$0xf]
  %v61 = vld [vmem:[%s1 + $0x74] sm:$0xf]
  %v62 = vld [vmem:[%s1 + $0x78] sm:$0xf]
  %v63 = vld [vmem:[%s1 + $0x7c] sm:$0xf]
  %v66 = vunpack.c.l.b16 %v28
  %v67 = vunpack.c.h.b16 %v28
  %v68 = vunpack.c.l.b16 %v29
  %v69 = vunpack.c.h.b16 %v29
  %v70 = vpack.c.b16 %v68, %v66
  %v71 = vpack.c.b16 %v69, %v67
  %v106 = vunpack.c.l.b16 %v32
  %v107 = vunpack.c.l.b16 %v33
  %v108 = vunpack.c.l.b16 %v34
  %v109 = vunpack.c.l.b16 %v35
  %v110 = vunpack.c.l.b16 %v36
  %v111 = vunpack.c.l.b16 %v37
  %v112 = vunpack.c.l.b16 %v38
  %v113 = vunpack.c.l.b16 %v39
  %v114 = vunpack.c.l.b16 %v40
  %v115 = vunpack.c.l.b16 %v41
  %v116 = vunpack.c.l.b16 %v42
  %v117 = vunpack.c.l.b16 %v43
  %v118 = vunpack.c.l.b16 %v44
  %v119 = vunpack.c.l.b16 %v45
  %v120 = vunpack.c.l.b16 %v46
  %v121 = vunpack.c.l.b16 %v47
  %v122 = vunpack.c.l.b16 %v48
  %v123 = vunpack.c.l.b16 %v49
  %v124 = vunpack.c.l.b16 %v50
  %v125 = vunpack.c.l.b16 %v51
  %v126 = vunpack.c.l.b16 %v52
  %v127 = vunpack.c.l.b16 %v53
  %v128 = vunpack.c.l.b16 %v54
  %v129 = vunpack.c.l.b16 %v55
  %v130 = vunpack.c.l.b16 %v56
  %v131 = vunpack.c.l.b16 %v57
  %v132 = vunpack.c.l.b16 %v58
  %v133 = vunpack.c.l.b16 %v59
  %v134 = vunpack.c.l.b16 %v60
  %v135 = vunpack.c.l.b16 %v61
  %v136 = vunpack.c.l.b16 %v62
  %v137 = vunpack.c.l.b16 %v63
  %v138 = vpack.c.b16 %v107, %v106
  %v139 = vpack.c.b16 %v109, %v108
  %v140 = vpack.c.b16 %v111, %v110
  %v141 = vpack.c.b16 %v113, %v112
  %v142 = vpack.c.b16 %v115, %v114
  %v143 = vpack.c.b16 %v117, %v116
  %v144 = vpack.c.b16 %v119, %v118
  %v145 = vpack.c.b16 %v121, %v120
  %v146 = vpack.c.b16 %v123, %v122
  %v147 = vpack.c.b16 %v125, %v124
  %v148 = vpack.c.b16 %v127, %v126
  %v149 = vpack.c.b16 %v129, %v128
  %v150 = vpack.c.b16 %v131, %v130
  %v151 = vpack.c.b16 %v133, %v132
  %v152 = vpack.c.b16 %v135, %v134
  %v153 = vpack.c.b16 %v137, %v136
  %170 = vmatprep.subr.bf16.mxu0 0
  %171 = vmatpush1.bf16.msra.mxu0 %v145
  %172 = vmatprep.subr.bf16.mxu0 0
  %173 = vmatpush1.bf16.msra.mxu0 %v144
  %174 = vmatprep.subr.bf16.mxu0 0
  %175 = vmatpush1.bf16.msra.mxu0 %v143
  %176 = vmatprep.subr.bf16.mxu0 0
  %177 = vmatpush1.bf16.msra.mxu0 %v142
  %178 = vmatprep.subr.bf16.mxu0 0
  %179 = vmatpush1.bf16.msra.mxu0 %v141
  %180 = vmatprep.subr.bf16.mxu0 0
  %181 = vmatpush1.bf16.msra.mxu0 %v140
  %182 = vmatprep.subr.bf16.mxu0 0
  %183 = vmatpush1.bf16.msra.mxu0 %v139
  %184 = vmatprep.subr.bf16.mxu0 0
  %185 = vmatpush1.bf16.msra.mxu0 %v138
  %186 = vmatprep.subr.bf16.mxu0 0
  %187 = vmatpush2.bf16.msra.mxu0 %v153
  %188 = vmatprep.subr.bf16.mxu0 0
  %189 = vmatpush2.bf16.msra.mxu0 %v152
  %190 = vmatprep.subr.bf16.mxu0 0
  %191 = vmatpush2.bf16.msra.mxu0 %v151
  %192 = vmatprep.subr.bf16.mxu0 0
  %193 = vmatpush2.bf16.msra.mxu0 %v150
  %194 = vmatprep.subr.bf16.mxu0 0
  %195 = vmatpush2.bf16.msra.mxu0 %v149
  %196 = vmatprep.subr.bf16.mxu0 0
  %197 = vmatpush2.bf16.msra.mxu0 %v148
  %198 = vmatprep.subr.bf16.mxu0 0
  %199 = vmatpush2.bf16.msra.mxu0 %v147
  %200 = vmatprep.subr.bf16.mxu0 0
  %201 = vmatpush2.bf16.msra.mxu0 %v146
  %202 = vmatprep.mubr.bf16.mxu0 %v71
  %203 = vmatmul.mubr.bf16.gmra.mxu0 %v70
  %v204 = vpop.f32.mrf.mxu0
  %v205 = vadd.f32 0.0, %v204
  %v206 = vpop.f32.mrf.mxu0
  %v207 = vpop.f32.mrf.mxu0
  %v208 = vadd.f32 0.0, %v207
  %v209 = vpop.f32.mrf.mxu0
  %210 = vdwg.mxu0
  %v211 = vadd.f32 %v30, %v205
  %v212 = vadd.f32 %v31, %v208
  %213 = vst [vmem:[#allocation2] sm:$0xff] %v211
  %214 = vst [vmem:[#allocation2 + $0x8] sm:$0xff] %v212
  // Predicated region
  $region18: #{unet_v5_forward.27} parent=0 // pred_check
    %p215 = pneg %p16
  $region19: #{unet_v5_forward.27} parent=0 // pred_check_branch
    %217 = sbr.rel (%p215) target = $region21
  $region20: #{unet_v5_forward.27} parent=0 // pred_region
    %v218 = vld [vmem:[#allocation2] sm:$0xff]
    %v219 = vld [vmem:[#allocation2 + $0x8] sm:$0xff]
    %v220 = vld [vmem:[%s2] sm:$0x1]
    %v222 = vlaneseq
    %v223 = vshrl.u32 %v222, 7
    %v224 = vsub.s32 0, %v223
    %v225 = vrot.slane %v220, %v224
    %v227 = vadd.f32 %v218, %v225
    %v228 = vadd.f32 %v219, %v225
    %v229 = vpack.c.bf16 %v228, %v227
    %v231 = vunpack.c.l.b16 %v229
    %v232 = vunpack.c.h.b16 %v229
    %v233 = vpack.c.b16 %v231, %v231
    %v234 = vpack.c.b16 %v232, %v232
    %237 = vst [vmem:[%s3] sm:$0xf] %v233
    %238 = vst [vmem:[%s3 + $0x4] sm:$0xf] %v234
  $region21: #{unet_v5_forward.27} parent=0 // pred_fallthru
    _
  // Predicated region
  $region22: #{unet_v5_forward.27} parent=0 // pred_check
    _
  $region23: #{unet_v5_forward.27} parent=0 // pred_check_branch
    %240 = sbr.rel (0) target = $region25
  $region24: #{unet_v5_forward.27} parent=0 // pred_region
    _
  $region25: #{unet_v5_forward.27} parent=0 // pred_fallthru
    _
  // Predicated region
  $region26: #{unet_v5_forward.27} parent=0 // pred_check
    _
  $region27: #{unet_v5_forward.27} parent=0 // pred_check_branch
    %242 = sbr.rel (0) target = $region29
  $region28: #{unet_v5_forward.27} parent=0 // pred_region
    _
  $region29: #{unet_v5_forward.27} parent=0 // pred_fallthru
    _

// kernel: tile.128
$region0: #{tile.128}
  #allocation0 [shape = 's32[1]{0}', space=sflag, size = 0x4, scoped, tag = 'scoped memory for tile.128']
  %s0 = inlined_call_operand.vmem [shape: f32[8], index: 0, kind: input, shape index: {}]
  %s1 = inlined_call_operand.vmem [shape: f32[4,8], index: 1, kind: output, shape index: {}]
  // Predicated region
  $region2: #{tile.128} parent=0 // pred_check
    _
  $region3: #{tile.128} parent=0 // pred_check_branch
    %3 = sbr.rel (0) target = $region5
  $region4: #{tile.128} parent=0 // pred_region
    _
  $region5: #{tile.128} parent=0 // pred_fallthru
    _
  %v4 = vld [vmem:[%s0] ss:$0 sm:$0xff]
  %5 = vst [vmem:[%s1] sm:$0xf] %v4

// kernel: tile.129
$region0: #{tile.129}
  %s0 = inlined_call_operand.vmem [shape: f32[4,8], index: 0, kind: input, shape index: {}]
  %s1 = inlined_call_operand.vmem [shape: f32[32], index: 1, kind: output, shape index: {}]
  $region1: #{tile.129} parent=0
    #allocation0 [shape = 'u8[4096]{0}', space=vmem, size = 0x1000, scoped, tag = 'scoped mem for output reshape']
    #allocation1 [shape = 'u8[4096]{0}', space=vmem, size = 0x1000, scoped, tag = 'scoped mem for input reshape']
    %s3 = sshll.u32 1, 4
    %s4 = ssub.s32 %s3, 1
    %v5 = vld [vmem:[%s0] sm:%s4]
    %6 = vst [vmem:[#allocation1] sm:%s4] %v5
    %v7 = vld [vmem:[#allocation1] sm:$0x1]
    %vm8 = vcmask 64512
    %9 = vst.msk [vmem:[#allocation0] sm:$0x1] %vm8, %v7
    %s10 = scalar_lea.vmem [#allocation1], 3
    %v11 = vld [vmem:[%s10] sm:$0x1]
    %12 = vrot.lane.b32.xlu0 %v11, 24
    %v13 = vpop.permute.xlu0 %12
    %vm14 = vcmask 261312
    %15 = vst.msk [vmem:[#allocation0] sm:$0x1] %vm14, %v13
    %s16 = scalar_lea.vmem [#allocation1], 2
    %v17 = vld [vmem:[%s16] sm:$0x1]
    %18 = vrot.lane.b32.xlu0 %v17, 16
    %v19 = vpop.permute.xlu0 %18
    %vm20 = vcmask 195712
    %21 = vst.msk [vmem:[#allocation0] sm:$0x1] %vm20, %v19
    %s22 = scalar_lea.vmem [#allocation1], 1
    %v23 = vld [vmem:[%s22] sm:$0x1]
    %24 = vrot.lane.b32.xlu0 %v23, 8
    %v25 = vpop.permute.xlu0 %24
    %vm26 = vcmask 130112
    %27 = vst.msk [vmem:[#allocation0] sm:$0x1] %vm26, %v25
    %s29 = sshll.u32 1, 1
    %s30 = ssub.s32 %s29, 1
    %v32 = vld [vmem:[#allocation0] sm:%s30]
    %s33 = sshll.u32 1, 1
    %s34 = ssub.s32 %s33, 1
    %35 = vst [vmem:[%s1] sm:%s34] %v32

// kernel: unet_v5_forward.30
$region0: #{unet_v5_forward.30}
  #allocation0 [shape = 'u32[]', space=smem, size = 0x4, offset = 0x4, fixed_abs, tag = 'smem constant byte address 0x4 - core index']
  #allocation1 [shape = 'u32[144,128]{1,0:T(1,128)}', space=vmem, size = 0x12000, scoped, tag = 'internal scratch']
  #allocation2 [shape = 'f32[16,128]{1,0:T(8,128)}', space=vmem, size = 0x2000, scoped, tag = 'scratch operand']
  %s0 = inlined_call_operand.vmem [shape: bf16[16,384], index: 0, kind: input, shape index: {}]
  %s1 = inlined_call_operand.vmem [shape: bf16[384,128], index: 1, kind: input, shape index: {}]
  %s2 = inlined_call_operand.vmem [shape: f32[1,128], index: 2, kind: input, shape index: {}]
  %s3 = inlined_call_operand.vmem [shape: bf16[16,128], index: 3, kind: output, shape index: {}]
  %s4 = sld [smem:[#allocation0]]
  $region30: #{unet_v5_forward.30} parent=0
    _
  %s6 = ssub.s32 1, %s4
  %s7 = scalar_select 0, %s6, %s4
  // Predicated region
  $region2: #{unet_v5_forward.30} parent=0 // pred_check
    _
  $region3: #{unet_v5_forward.30} parent=0 // pred_check_branch
    %9 = sbr.rel (0) target = $region5
  $region4: #{unet_v5_forward.30} parent=0 // pred_region
    _
  $region5: #{unet_v5_forward.30} parent=0 // pred_fallthru
    _
  // Predicated region
  $region6: #{unet_v5_forward.30} parent=0 // pred_check
    _
  $region7: #{unet_v5_forward.30} parent=0 // pred_check_branch
    %11 = sbr.rel (0) target = $region9
  $region8: #{unet_v5_forward.30} parent=0 // pred_region
    _
  $region9: #{unet_v5_forward.30} parent=0 // pred_fallthru
    _
  // Predicated region
  $region10: #{unet_v5_forward.30} parent=0 // pred_check
    _
  $region11: #{unet_v5_forward.30} parent=0 // pred_check_branch
    %13 = sbr.rel (0) target = $region13
  $region12: #{unet_v5_forward.30} parent=0 // pred_region
    _
  $region13: #{unet_v5_forward.30} parent=0 // pred_fallthru
    _
  %p15 = scmp.eq.s32.totalorder 0, 0
  // Predicated region
  $region14: #{unet_v5_forward.30} parent=0 // pred_check
    %p16 = pneg %p15
  $region15: #{unet_v5_forward.30} parent=0 // pred_check_branch
    %18 = sbr.rel (%p16) target = $region17
  $region16: #{unet_v5_forward.30} parent=0 // pred_region
    %19 = vst [vmem:[#allocation2] sm:$0xff] 0.0
    %20 = vst [vmem:[#allocation2 + $0x8] sm:$0xff] 0.0
  $region17: #{unet_v5_forward.30} parent=0 // pred_fallthru
    _
  %v21 = vld [vmem:[%s0] sm:$0xff]
  %v22 = vld [vmem:[%s0 + $0x8] sm:$0xf]
  %v23 = vld [vmem:[%s0 + $0xc] sm:$0xff]
  %v24 = vld [vmem:[%s0 + $0x14] sm:$0xf]
  %v25 = vmax.bf16 %v21, 0
  %v26 = vmax.bf16 %v22, 0
  %v27 = vmax.bf16 %v23, 0
  %v28 = vmax.bf16 %v24, 0
  %v29 = vld [vmem:[#allocation2] sm:$0xff]
  %v30 = vld [vmem:[#allocation2 + $0x8] sm:$0xff]
  %v31 = vld [vmem:[%s1] sm:$0xf]
  %v32 = vld [vmem:[%s1 + $0x4] sm:$0xf]
  %v33 = vld [vmem:[%s1 + $0x8] sm:$0xf]
  %v34 = vld [vmem:[%s1 + $0xc] sm:$0xf]
  %v35 = vld [vmem:[%s1 + $0x10] sm:$0xf]
  %v36 = vld [vmem:[%s1 + $0x14] sm:$0xf]
  %v37 = vld [vmem:[%s1 + $0x18] sm:$0xf]
  %v38 = vld [vmem:[%s1 + $0x1c] sm:$0xf]
  %v39 = vld [vmem:[%s1 + $0x20] sm:$0xf]
  %v40 = vld [vmem:[%s1 + $0x24] sm:$0xf]
  %v41 = vld [vmem:[%s1 + $0x28] sm:$0xf]
  %v42 = vld [vmem:[%s1 + $0x2c] sm:$0xf]
  %v43 = vld [vmem:[%s1 + $0x30] sm:$0xf]
  %v44 = vld [vmem:[%s1 + $0x34] sm:$0xf]
  %v45 = vld [vmem:[%s1 + $0x38] sm:$0xf]
  %v46 = vld [vmem:[%s1 + $0x3c] sm:$0xf]
  %v47 = vld [vmem:[%s1 + $0x40] sm:$0xf]
  %v48 = vld [vmem:[%s1 + $0x44] sm:$0xf]
  %v49 = vld [vmem:[%s1 + $0x48] sm:$0xf]
  %v50 = vld [vmem:[%s1 + $0x4c] sm:$0xf]
  %v51 = vld [vmem:[%s1 + $0x50] sm:$0xf]
  %v52 = vld [vmem:[%s1 + $0x54] sm:$0xf]
  %v53 = vld [vmem:[%s1 + $0x58] sm:$0xf]
  %v54 = vld [vmem:[%s1 + $0x5c] sm:$0xf]
  %v55 = vld [vmem:[%s1 + $0x60] sm:$0xf]
  %v56 = vld [vmem:[%s1 + $0x64] sm:$0xf]
  %v57 = vld [vmem:[%s1 + $0x68] sm:$0xf]
  %v58 = vld [vmem:[%s1 + $0x6c] sm:$0xf]
  %v59 = vld [vmem:[%s1 + $0x70] sm:$0xf]
  %v60 = vld [vmem:[%s1 + $0x74] sm:$0xf]
  %v61 = vld [vmem:[%s1 + $0x78] sm:$0xf]
  %v62 = vld [vmem:[%s1 + $0x7c] sm:$0xf]
  %v63 = vld [vmem:[%s1 + $0x80] sm:$0xf]
  %v64 = vld [vmem:[%s1 + $0x84] sm:$0xf]
  %v65 = vld [vmem:[%s1 + $0x88] sm:$0xf]
  %v66 = vld [vmem:[%s1 + $0x8c] sm:$0xf]
  %v67 = vld [vmem:[%s1 + $0x90] sm:$0xf]
  %v68 = vld [vmem:[%s1 + $0x94] sm:$0xf]
  %v69 = vld [vmem:[%s1 + $0x98] sm:$0xf]
  %v70 = vld [vmem:[%s1 + $0x9c] sm:$0xf]
  %v71 = vld [vmem:[%s1 + $0xa0] sm:$0xf]
  %v72 = vld [vmem:[%s1 + $0xa4] sm:$0xf]
  %v73 = vld [vmem:[%s1 + $0xa8] sm:$0xf]
  %v74 = vld [vmem:[%s1 + $0xac] sm:$0xf]
  %v75 = vld [vmem:[%s1 + $0xb0] sm:$0xf]
  %v76 = vld [vmem:[%s1 + $0xb4] sm:$0xf]
  %v77 = vld [vmem:[%s1 + $0xb8] sm:$0xf]
  %v78 = vld [vmem:[%s1 + $0xbc] sm:$0xf]
  %v83 = vunpack.c.l.b16 %v25
  %v84 = vunpack.c.h.b16 %v25
  %v85 = vunpack.c.l.b16 %v26
  %v86 = vunpack.c.l.b16 %v27
  %v87 = vunpack.c.h.b16 %v27
  %v88 = vunpack.c.l.b16 %v28
  %v89 = vpack.c.b16 %v86, %v83
  %v90 = vpack.c.b16 %v87, %v84
  %v91 = vpack.c.b16 %v88, %v85
  %v143 = vunpack.c.l.b16 %v31
  %v144 = vunpack.c.l.b16 %v32
  %v145 = vunpack.c.l.b16 %v33
  %v146 = vunpack.c.l.b16 %v34
  %v147 = vunpack.c.l.b16 %v35
  %v148 = vunpack.c.l.b16 %v36
  %v149 = vunpack.c.l.b16 %v37
  %v150 = vunpack.c.l.b16 %v38
  %v151 = vunpack.c.l.b16 %v39
  %v152 = vunpack.c.l.b16 %v40
  %v153 = vunpack.c.l.b16 %v41
  %v154 = vunpack.c.l.b16 %v42
  %v155 = vunpack.c.l.b16 %v43
  %v156 = vunpack.c.l.b16 %v44
  %v157 = vunpack.c.l.b16 %v45
  %v158 = vunpack.c.l.b16 %v46
  %v159 = vunpack.c.l.b16 %v47
  %v160 = vunpack.c.l.b16 %v48
  %v161 = vunpack.c.l.b16 %v49
  %v162 = vunpack.c.l.b16 %v50
  %v163 = vunpack.c.l.b16 %v51
  %v164 = vunpack.c.l.b16 %v52
  %v165 = vunpack.c.l.b16 %v53
  %v166 = vunpack.c.l.b16 %v54
  %v167 = vunpack.c.l.b16 %v55
  %v168 = vunpack.c.l.b16 %v56
  %v169 = vunpack.c.l.b16 %v57
  %v170 = vunpack.c.l.b16 %v58
  %v171 = vunpack.c.l.b16 %v59
  %v172 = vunpack.c.l.b16 %v60
  %v173 = vunpack.c.l.b16 %v61
  %v174 = vunpack.c.l.b16 %v62
  %v175 = vunpack.c.l.b16 %v63
  %v176 = vunpack.c.l.b16 %v64
  %v177 = vunpack.c.l.b16 %v65
  %v178 = vunpack.c.l.b16 %v66
  %v179 = vunpack.c.l.b16 %v67
  %v180 = vunpack.c.l.b16 %v68
  %v181 = vunpack.c.l.b16 %v69
  %v182 = vunpack.c.l.b16 %v70
  %v183 = vunpack.c.l.b16 %v71
  %v184 = vunpack.c.l.b16 %v72
  %v185 = vunpack.c.l.b16 %v73
  %v186 = vunpack.c.l.b16 %v74
  %v187 = vunpack.c.l.b16 %v75
  %v188 = vunpack.c.l.b16 %v76
  %v189 = vunpack.c.l.b16 %v77
  %v190 = vunpack.c.l.b16 %v78
  %v191 = vpack.c.b16 %v144, %v143
  %v192 = vpack.c.b16 %v146, %v145
  %v193 = vpack.c.b16 %v148, %v147
  %v194 = vpack.c.b16 %v150, %v149
  %v195 = vpack.c.b16 %v152, %v151
  %v196 = vpack.c.b16 %v154, %v153
  %v197 = vpack.c.b16 %v156, %v155
  %v198 = vpack.c.b16 %v158, %v157
  %v199 = vpack.c.b16 %v160, %v159
  %v200 = vpack.c.b16 %v162, %v161
  %v201 = vpack.c.b16 %v164, %v163
  %v202 = vpack.c.b16 %v166, %v165
  %v203 = vpack.c.b16 %v168, %v167
  %v204 = vpack.c.b16 %v170, %v169
  %v205 = vpack.c.b16 %v172, %v171
  %v206 = vpack.c.b16 %v174, %v173
  %v207 = vpack.c.b16 %v176, %v175
  %v208 = vpack.c.b16 %v178, %v177
  %v209 = vpack.c.b16 %v180, %v179
  %v210 = vpack.c.b16 %v182, %v181
  %v211 = vpack.c.b16 %v184, %v183
  %v212 = vpack.c.b16 %v186, %v185
  %v213 = vpack.c.b16 %v188, %v187
  %v214 = vpack.c.b16 %v190, %v189
  %239 = vmatprep.subr.bf16.mxu0 0
  %240 = vmatpush1.bf16.msra.mxu0 %v198
  %241 = vmatprep.subr.bf16.mxu0 0
  %242 = vmatpush1.bf16.msra.mxu0 %v197
  %243 = vmatprep.subr.bf16.mxu0 0
  %244 = vmatpush1.bf16.msra.mxu0 %v196
  %245 = vmatprep.subr.bf16.mxu0 0
  %246 = vmatpush1.bf16.msra.mxu0 %v195
  %247 = vmatprep.subr.bf16.mxu0 0
  %248 = vmatpush1.bf16.msra.mxu0 %v194
  %249 = vmatprep.subr.bf16.mxu0 0
  %250 = vmatpush1.bf16.msra.mxu0 %v193
  %251 = vmatprep.subr.bf16.mxu0 0
  %252 = vmatpush1.bf16.msra.mxu0 %v192
  %253 = vmatprep.subr.bf16.mxu0 0
  %254 = vmatpush1.bf16.msra.mxu0 %v191
  %255 = vmatprep.subr.bf16.mxu0 0
  %256 = vmatpush2.bf16.msra.mxu0 %v206
  %257 = vmatprep.subr.bf16.mxu0 0
  %258 = vmatpush2.bf16.msra.mxu0 %v205
  %259 = vmatprep.subr.bf16.mxu0 0
  %260 = vmatpush2.bf16.msra.mxu0 %v204
  %261 = vmatprep.subr.bf16.mxu0 0
  %262 = vmatpush2.bf16.msra.mxu0 %v203
  %263 = vmatprep.subr.bf16.mxu0 0
  %264 = vmatpush2.bf16.msra.mxu0 %v202
  %265 = vmatprep.subr.bf16.mxu0 0
  %266 = vmatpush2.bf16.msra.mxu0 %v201
  %267 = vmatprep.subr.bf16.mxu0 0
  %268 = vmatpush2.bf16.msra.mxu0 %v200
  %269 = vmatprep.subr.bf16.mxu0 0
  %270 = vmatpush2.bf16.msra.mxu0 %v199
  %271 = vmatprep.mubr.bf16.mxu0 %v90
  %272 = vmatmul.mubr.bf16.gmra.mxu0 %v89
  %v273 = vpop.f32.mrf.mxu0
  %v274 = vadd.f32 0.0, %v273
  %v275 = vpop.f32.mrf.mxu0
  %v276 = vpop.f32.mrf.mxu0
  %v277 = vadd.f32 0.0, %v276
  %v278 = vpop.f32.mrf.mxu0
  %279 = vdwg.mxu0
  %280 = vmatprep.subr.bf16.mxu0 0
  %281 = vmatpush1.bf16.msra.mxu0 %v214
  %282 = vmatprep.subr.bf16.mxu0 0
  %283 = vmatpush1.bf16.msra.mxu0 %v213
  %284 = vmatprep.subr.bf16.mxu0 0
  %285 = vmatpush1.bf16.msra.mxu0 %v212
  %286 = vmatprep.subr.bf16.mxu0 0
  %287 = vmatpush1.bf16.msra.mxu0 %v211
  %288 = vmatprep.subr.bf16.mxu0 0
  %289 = vmatpush1.bf16.msra.mxu0 %v210
  %290 = vmatprep.subr.bf16.mxu0 0
  %291 = vmatpush1.bf16.msra.mxu0 %v209
  %292 = vmatprep.subr.bf16.mxu0 0
  %293 = vmatpush1.bf16.msra.mxu0 %v208
  %294 = vmatprep.subr.bf16.mxu0 0
  %295 = vmatpush1.bf16.msra.mxu0 %v207
  %296 = vmatprep.subr.bf16.mxu0 0
  %297 = vmatpush2.bf16.msra.mxu0 0
  %298 = vmatprep.subr.bf16.mxu0 0
  %299 = vmatpush2.bf16.msra.mxu0 0
  %300 = vmatprep.subr.bf16.mxu0 0
  %301 = vmatpush2.bf16.msra.mxu0 0
  %302 = vmatprep.subr.bf16.mxu0 0
  %303 = vmatpush2.bf16.msra.mxu0 0
  %304 = vmatprep.subr.bf16.mxu0 0
  %305 = vmatpush2.bf16.msra.mxu0 0
  %306 = vmatprep.subr.bf16.mxu0 0
  %307 = vmatpush2.bf16.msra.mxu0 0
  %308 = vmatprep.subr.bf16.mxu0 0
  %309 = vmatpush2.bf16.msra.mxu0 0
  %310 = vmatprep.subr.bf16.mxu0 0
  %311 = vmatpush2.bf16.msra.mxu0 0
  %312 = vmatprep.mubr.bf16.mxu0 0
  %313 = vmatmul.mubr.bf16.gmra.mxu0 %v91
  %v314 = vpop.f32.mrf.mxu0
  %v315 = vadd.f32 %v274, %v314
  %v316 = vpop.f32.mrf.mxu0
  %v317 = vpop.f32.mrf.mxu0
  %v318 = vadd.f32 %v277, %v317
  %v319 = vpop.f32.mrf.mxu0
  %320 = vdwg.mxu0
  %v321 = vadd.f32 %v29, %v315
  %v322 = vadd.f32 %v30, %v318
  %323 = vst [vmem:[#allocation2] sm:$0xff] %v321
  %324 = vst [vmem:[#allocation2 + $0x8] sm:$0xff] %v322
  // Predicated region
  $region18: #{unet_v5_forward.30} parent=0 // pred_check
    %p325 = pneg %p15
  $region19: #{unet_v5_forward.30} parent=0 // pred_check_branch
    %327 = sbr.rel (%p325) target = $region21
  $region20: #{unet_v5_forward.30} parent=0 // pred_region
    %v328 = vld [vmem:[#allocation2] sm:$0xff]
    %v329 = vld [vmem:[#allocation2 + $0x8] sm:$0xff]
    %v330 = vld [vmem:[%s2] sm:$0x1]
    %v332 = vlaneseq
    %v333 = vshrl.u32 %v332, 7
    %v334 = vsub.s32 0, %v333
    %v335 = vrot.slane %v330, %v334
    %v337 = vadd.f32 %v328, %v335
    %v338 = vadd.f32 %v329, %v335
    %v339 = vpack.c.bf16 %v338, %v337
    %v341 = vunpack.c.l.b16 %v339
    %v342 = vunpack.c.h.b16 %v339
    %v343 = vpack.c.b16 %v341, %v341
    %v344 = vpack.c.b16 %v342, %v342
    %347 = vst [vmem:[%s3] sm:$0xf] %v343
    %348 = vst [vmem:[%s3 + $0x4] sm:$0xf] %v344
  $region21: #{unet_v5_forward.30} parent=0 // pred_fallthru
    _
  // Predicated region
  $region22: #{unet_v5_forward.30} parent=0 // pred_check
    _
  $region23: #{unet_v5_forward.30} parent=0 // pred_check_branch
    %350 = sbr.rel (0) target = $region25
  $region24: #{unet_v5_forward.30} parent=0 // pred_region
    _
  $region25: #{unet_v5_forward.30} parent=0 // pred_fallthru
    _
  // Predicated region
  $region26: #{unet_v5_forward.30} parent=0 // pred_check
    _
  $region27: #{unet_v5_forward.30} parent=0 // pred_check_branch
    %352 = sbr.rel (0) target = $region29
  $region28: #{unet_v5_forward.30} parent=0 // pred_region
    _
  $region29: #{unet_v5_forward.30} parent=0 // pred_fallthru
    _

// kernel: tile.143
$region0: #{tile.143}
  #allocation0 [shape = 's32[1]{0}', space=sflag, size = 0x4, scoped, tag = 'scoped memory for tile.143']
  %s0 = inlined_call_operand.vmem [shape: f32[4], index: 0, kind: input, shape index: {}]
  %s1 = inlined_call_operand.vmem [shape: f32[4,4], index: 1, kind: output, shape index: {}]
  // Predicated region
  $region2: #{tile.143} parent=0 // pred_check
    _
  $region3: #{tile.143} parent=0 // pred_check_branch
    %3 = sbr.rel (0) target = $region5
  $region4: #{tile.143} parent=0 // pred_region
    _
  $region5: #{tile.143} parent=0 // pred_fallthru
    _
  %v4 = vld [vmem:[%s0] ss:$0 sm:$0xff]
  %5 = vst [vmem:[%s1] sm:$0xf] %v4

// kernel: tile.144
$region0: #{tile.144}
  %s0 = inlined_call_operand.vmem [shape: f32[4,4], index: 0, kind: input, shape index: {}]
  %s1 = inlined_call_operand.vmem [shape: f32[16], index: 1, kind: output, shape index: {}]
  $region1: #{tile.144} parent=0
    #allocation0 [shape = 'u8[4096]{0}', space=vmem, size = 0x1000, scoped, tag = 'scoped mem for output reshape']
    #allocation1 [shape = 'u8[4096]{0}', space=vmem, size = 0x1000, scoped, tag = 'scoped mem for input reshape']
    %s3 = sshll.u32 1, 4
    %s4 = ssub.s32 %s3, 1
    %v5 = vld [vmem:[%s0] sm:%s4]
    %6 = vst [vmem:[#allocation1] sm:%s4] %v5
    %v7 = vld [vmem:[#allocation1] sm:$0x1]
    %vm8 = vcmask 31744
    %9 = vst.msk [vmem:[#allocation0] sm:$0x1] %vm8, %v7
    %s10 = scalar_lea.vmem [#allocation1], 3
    %v11 = vld [vmem:[%s10] sm:$0x1]
    %12 = vrot.lane.b32.xlu0 %v11, 12
    %v13 = vpop.permute.xlu0 %12
    %vm14 = vcmask 130144
    %15 = vst.msk [vmem:[#allocation0] sm:$0x1] %vm14, %v13
    %s16 = scalar_lea.vmem [#allocation1], 2
    %v17 = vld [vmem:[%s16] sm:$0x1]
    %18 = vrot.lane.b32.xlu0 %v17, 8
    %v19 = vpop.permute.xlu0 %18
    %vm20 = vcmask 97344
    %21 = vst.msk [vmem:[#allocation0] sm:$0x1] %vm20, %v19
    %s22 = scalar_lea.vmem [#allocation1], 1
    %v23 = vld [vmem:[%s22] sm:$0x1]
    %24 = vrot.lane.b32.xlu0 %v23, 4
    %v25 = vpop.permute.xlu0 %24
    %vm26 = vcmask 64544
    %27 = vst.msk [vmem:[#allocation0] sm:$0x1] %vm26, %v25
    %s29 = sshll.u32 1, 1
    %s30 = ssub.s32 %s29, 1
    %v32 = vld [vmem:[#allocation0] sm:%s30]
    %s33 = sshll.u32 1, 1
    %s34 = ssub.s32 %s33, 1
    %35 = vst [vmem:[%s1] sm:%s34] %v32

// kernel: tile.148
$region0: #{tile.148}
  #allocation0 [shape = 's32[1]{0}', space=sflag, size = 0x4, scoped, tag = 'scoped memory for tile.148']
  %s0 = inlined_call_operand.vmem [shape: f32[4], index: 0, kind: input, shape index: {}]
  %s1 = inlined_call_operand.vmem [shape: f32[32,4], index: 1, kind: output, shape index: {}]
  // Predicated region
  $region2: #{tile.148} parent=0 // pred_check
    _
  $region3: #{tile.148} parent=0 // pred_check_branch
    %3 = sbr.rel (0) target = $region5
  $region4: #{tile.148} parent=0 // pred_region
    _
  $region5: #{tile.148} parent=0 // pred_fallthru
    _
  %v4 = vld [vmem:[%s0] ss:$0 sm:$0xff]
  %5 = vst [vmem:[%s1] sm:$0xff] %v4
  %s6 = scalar_lea.vmem %s1, 8
  %7 = vst [vmem:[%s6] sm:$0xff] %v4
  %s8 = scalar_lea.vmem %s1, 16
  %9 = vst [vmem:[%s8] sm:$0xff] %v4
  %s10 = scalar_lea.vmem %s1, 24
  %11 = vst [vmem:[%s10] sm:$0xff] %v4

// kernel: tile.149
$region0: #{tile.149}
  %s0 = inlined_call_operand.vmem [shape: f32[32,4], index: 0, kind: input, shape index: {}]
  %s1 = inlined_call_operand.vmem [shape: f32[1,128], index: 1, kind: output, shape index: {}]
  $region1: #{tile.149} parent=0
    #allocation0 [shape = 'u8[4096]{0}', space=vmem, size = 0x1000, scoped, tag = 'scoped mem for output reshape']
    %v2 = vld [vmem:[%s0] sm:$0x1]
    %vm3 = vcmask 31744
    %4 = vst.msk [vmem:[#allocation0] sm:$0x1] %vm3, %v2
    %s5 = scalar_lea.vmem %s0, 31
    %v6 = vld [vmem:[%s5] sm:$0x1]
    %7 = vrot.lane.b32.xlu0 %v6, 124
    %v8 = vpop.permute.xlu0 %7
    %vm9 = vcmask 1048544
    %10 = vst.msk [vmem:[#allocation0] sm:$0x1] %vm9, %v8
    %s11 = scalar_lea.vmem %s0, 30
    %v12 = vld [vmem:[%s11] sm:$0x1]
    %13 = vrot.lane.b32.xlu0 %v12, 120
    %v14 = vpop.permute.xlu0 %13
    %vm15 = vcmask 1015744
    %16 = vst.msk [vmem:[#allocation0] sm:$0x1] %vm15, %v14
    %s17 = scalar_lea.vmem %s0, 29
    %v18 = vld [vmem:[%s17] sm:$0x1]
    %19 = vrot.lane.b32.xlu0 %v18, 116
    %v20 = vpop.permute.xlu0 %19
    %vm21 = vcmask 982944
    %22 = vst.msk [vmem:[#allocation0] sm:$0x1] %vm21, %v20
    %s23 = scalar_lea.vmem %s0, 28
    %v24 = vld [vmem:[%s23] sm:$0x1]
    %25 = vrot.lane.b32.xlu0 %v24, 112
    %v26 = vpop.permute.xlu0 %25
    %vm27 = vcmask 950144
    %28 = vst.msk [vmem:[#allocation0] sm:$0x1] %vm27, %v26
    %s29 = scalar_lea.vmem %s0, 27
    %v30 = vld [vmem:[%s29] sm:$0x1]
    %31 = vrot.lane.b32.xlu0 %v30, 108
    %v32 = vpop.permute.xlu0 %31
    %vm33 = vcmask 917344
    %34 = vst.msk [vmem:[#allocation0] sm:$0x1] %vm33, %v32
    %s35 = scalar_lea.vmem %s0, 26
    %v36 = vld [vmem:[%s35] sm:$0x1]
    %37 = vrot.lane.b32.xlu0 %v36, 104
    %v38 = vpop.permute.xlu0 %37
    %vm39 = vcmask 884544
    %40 = vst.msk [vmem:[#allocation0] sm:$0x1] %vm39, %v38
    %s41 = scalar_lea.vmem %s0, 25
    %v42 = vld [vmem:[%s41] sm:$0x1]
    %43 = vrot.lane.b32.xlu0 %v42, 100
    %v44 = vpop.permute.xlu0 %43
    %vm45 = vcmask 851744
    %46 = vst.msk [vmem:[#allocation0] sm:$0x1] %vm45, %v44
    %s47 = scalar_lea.vmem %s0, 24
    %v48 = vld [vmem:[%s47] sm:$0x1]
    %49 = vrot.lane.b32.xlu0 %v48, 96
    %v50 = vpop.permute.xlu0 %49
    %vm51 = vcmask 818944
    %52 = vst.msk [vmem:[#allocation0] sm:$0x1] %vm51, %v50
    %s53 = scalar_lea.vmem %s0, 23
    %v54 = vld [vmem:[%s53] sm:$0x1]
    %55 = vrot.lane.b32.xlu0 %v54, 92
    %v56 = vpop.permute.xlu0 %55
    %vm57 = vcmask 786144
    %58 = vst.msk [vmem:[#allocation0] sm:$0x1] %vm57, %v56
    %s59 = scalar_lea.vmem %s0, 22
    %v60 = vld [vmem:[%s59] sm:$0x1]
    %61 = vrot.lane.b32.xlu0 %v60, 88
    %v62 = vpop.permute.xlu0 %61
    %vm63 = vcmask 753344
    %64 = vst.msk [vmem:[#allocation0] sm:$0x1] %vm63, %v62
    %s65 = scalar_lea.vmem %s0, 21
    %v66 = vld [vmem:[%s65] sm:$0x1]
    %67 = vrot.lane.b32.xlu0 %v66, 84
    %v68 = vpop.permute.xlu0 %67
    %vm69 = vcmask 720544
    %70 = vst.msk [vmem:[#allocation0] sm:$0x1] %vm69, %v68
    %s71 = scalar_lea.vmem %s0, 20
    %v72 = vld [vmem:[%s71] sm:$0x1]
    %73 = vrot.lane.b32.xlu0 %v72, 80
    %v74 = vpop.permute.xlu0 %73
    %vm75 = vcmask 687744
    %76 = vst.msk [vmem:[#allocation0] sm:$0x1] %vm75, %v74
    %s77 = scalar_lea.vmem %s0, 19
    %v78 = vld [vmem:[%s77] sm:$0x1]
    %79 = vrot.lane.b32.xlu0 %v78, 76
    %v80 = vpop.permute.xlu0 %79
    %vm81 = vcmask 654944
    %82 = vst.msk [vmem:[#allocation0] sm:$0x1] %vm81, %v80
    %s83 = scalar_lea.vmem %s0, 18
    %v84 = vld [vmem:[%s83] sm:$0x1]
    %85 = vrot.lane.b32.xlu0 %v84, 72
    %v86 = vpop.permute.xlu0 %85
    %vm87 = vcmask 622144
    %88 = vst.msk [vmem:[#allocation0] sm:$0x1] %vm87, %v86
    %s89 = scalar_lea.vmem %s0, 17
    %v90 = vld [vmem:[%s89] sm:$0x1]
    %91 = vrot.lane.b32.xlu0 %v90, 68
    %v92 = vpop.permute.xlu0 %91
    %vm93 = vcmask 589344
    %94 = vst.msk [vmem:[#allocation0] sm:$0x1] %vm93, %v92
    %s95 = scalar_lea.vmem %s0, 16
    %v96 = vld [vmem:[%s95] sm:$0x1]
    %97 = vrot.lane.b32.xlu0 %v96, 64
    %v98 = vpop.permute.xlu0 %97
    %vm99 = vcmask 556544
    %100 = vst.msk [vmem:[#allocation0] sm:$0x1] %vm99, %v98
    %s101 = scalar_lea.vmem %s0, 15
    %v102 = vld [vmem:[%s101] sm:$0x1]
    %103 = vrot.lane.b32.xlu0 %v102, 60
    %v104 = vpop.permute.xlu0 %103
    %vm105 = vcmask 523744
    %106 = vst.msk [vmem:[#allocation0] sm:$0x1] %vm105, %v104
    %s107 = scalar_lea.vmem %s0, 14
    %v108 = vld [vmem:[%s107] sm:$0x1]
    %109 = vrot.lane.b32.xlu0 %v108, 56
    %v110 = vpop.permute.xlu0 %109
    %vm111 = vcmask 490944
    %112 = vst.msk [vmem:[#allocation0] sm:$0x1] %vm111, %v110
    %s113 = scalar_lea.vmem %s0, 13
    %v114 = vld [vmem:[%s113] sm:$0x1]
    %115 = vrot.lane.b32.xlu0 %v114, 52
    %v116 = vpop.permute.xlu0 %115
    %vm117 = vcmask 458144
    %118 = vst.msk [vmem:[#allocation0] sm:$0x1] %vm117, %v116
    %s119 = scalar_lea.vmem %s0, 12
    %v120 = vld [vmem:[%s119] sm:$0x1]
    %121 = vrot.lane.b32.xlu0 %v120, 48
    %v122 = vpop.permute.xlu0 %121
    %vm123 = vcmask 425344
    %124 = vst.msk [vmem:[#allocation0] sm:$0x1] %vm123, %v122
    %s125 = scalar_lea.vmem %s0, 11
    %v126 = vld [vmem:[%s125] sm:$0x1]
    %127 = vrot.lane.b32.xlu0 %v126, 44
    %v128 = vpop.permute.xlu0 %127
    %vm129 = vcmask 392544
    %130 = vst.msk [vmem:[#allocation0] sm:$0x1] %vm129, %v128
    %s131 = scalar_lea.vmem %s0, 10
    %v132 = vld [vmem:[%s131] sm:$0x1]
    %133 = vrot.lane.b32.xlu0 %v132, 40
    %v134 = vpop.permute.xlu0 %133
    %vm135 = vcmask 359744
    %136 = vst.msk [vmem:[#allocation0] sm:$0x1] %vm135, %v134
    %s137 = scalar_lea.vmem %s0, 9
    %v138 = vld [vmem:[%s137] sm:$0x1]
    %139 = vrot.lane.b32.xlu0 %v138, 36
    %v140 = vpop.permute.xlu0 %139
    %vm141 = vcmask 326944
    %142 = vst.msk [vmem:[#allocation0] sm:$0x1] %vm141, %v140
    %s143 = scalar_lea.vmem %s0, 8
    %v144 = vld [vmem:[%s143] sm:$0x1]
    %145 = vrot.lane.b32.xlu0 %v144, 32
    %v146 = vpop.permute.xlu0 %145
    %vm147 = vcmask 294144
    %148 = vst.msk [vmem:[#allocation0] sm:$0x1] %vm147, %v146
    %s149 = scalar_lea.vmem %s0, 7
    %v150 = vld [vmem:[%s149] sm:$0x1]
    %151 = vrot.lane.b32.xlu0 %v150, 28
    %v152 = vpop.permute.xlu0 %151
    %vm153 = vcmask 261344
    %154 = vst.msk [vmem:[#allocation0] sm:$0x1] %vm153, %v152
    %s155 = scalar_lea.vmem %s0, 6
    %v156 = vld [vmem:[%s155] sm:$0x1]
    %157 = vrot.lane.b32.xlu0 %v156, 24
    %v158 = vpop.permute.xlu0 %157
    %vm159 = vcmask 228544
    %160 = vst.msk [vmem:[#allocation0] sm:$0x1] %vm159, %v158
    %s161 = scalar_lea.vmem %s0, 5
    %v162 = vld [vmem:[%s161] sm:$0x1]
    %163 = vrot.lane.b32.xlu0 %v162, 20
    %v164 = vpop.permute.xlu0 %163
    %vm165 = vcmask 195744
    %166 = vst.msk [vmem:[#allocation0] sm:$0x1] %vm165, %v164
    %s167 = scalar_lea.vmem %s0, 4
    %v168 = vld [vmem:[%s167] sm:$0x1]
    %169 = vrot.lane.b32.xlu0 %v168, 16
    %v170 = vpop.permute.xlu0 %169
    %vm171 = vcmask 162944
    %172 = vst.msk [vmem:[#allocation0] sm:$0x1] %vm171, %v170
    %s173 = scalar_lea.vmem %s0, 3
    %v174 = vld [vmem:[%s173] sm:$0x1]
    %175 = vrot.lane.b32.xlu0 %v174, 12
    %v176 = vpop.permute.xlu0 %175
    %vm177 = vcmask 130144
    %178 = vst.msk [vmem:[#allocation0] sm:$0x1] %vm177, %v176
    %s179 = scalar_lea.vmem %s0, 2
    %v180 = vld [vmem:[%s179] sm:$0x1]
    %181 = vrot.lane.b32.xlu0 %v180, 8
    %v182 = vpop.permute.xlu0 %181
    %vm183 = vcmask 97344
    %184 = vst.msk [vmem:[#allocation0] sm:$0x1] %vm183, %v182
    %s185 = scalar_lea.vmem %s0, 1
    %v186 = vld [vmem:[%s185] sm:$0x1]
    %187 = vrot.lane.b32.xlu0 %v186, 4
    %v188 = vpop.permute.xlu0 %187
    %vm189 = vcmask 64544
    %190 = vst.msk [vmem:[#allocation0] sm:$0x1] %vm189, %v188
    %s192 = sshll.u32 1, 1
    %s193 = ssub.s32 %s192, 1
    %v195 = vld [vmem:[#allocation0] sm:%s193]
    %s196 = sshll.u32 1, 1
    %s197 = ssub.s32 %s196, 1
    %198 = vst [vmem:[%s1] sm:%s197] %v195

// kernel: unet_v5_forward.36
$region0: #{unet_v5_forward.36}
  #allocation0 [shape = 'u32[]', space=smem, size = 0x4, offset = 0x4, fixed_abs, tag = 'smem constant byte address 0x4 - core index']
  #allocation1 [shape = 'u32[144,128]{1,0:T(1,128)}', space=vmem, size = 0x12000, scoped, tag = 'internal scratch']
  #allocation2 [shape = 'f32[32,128]{1,0:T(8,128)}', space=vmem, size = 0x4000, scoped, tag = 'scratch operand']
  %s0 = inlined_call_operand.vmem [shape: bf16[32,256], index: 0, kind: input, shape index: {}]
  %s1 = inlined_call_operand.vmem [shape: bf16[256,128], index: 1, kind: input, shape index: {}]
  %s2 = inlined_call_operand.vmem [shape: f32[1,128], index: 2, kind: input, shape index: {}]
  %s3 = inlined_call_operand.vmem [shape: bf16[32,128], index: 3, kind: output, shape index: {}]
  %s4 = sld [smem:[#allocation0]]
  $region30: #{unet_v5_forward.36} parent=0
    _
  %s6 = ssub.s32 1, %s4
  %s7 = scalar_select 0, %s6, %s4
  // Predicated region
  $region2: #{unet_v5_forward.36} parent=0 // pred_check
    _
  $region3: #{unet_v5_forward.36} parent=0 // pred_check_branch
    %9 = sbr.rel (0) target = $region5
  $region4: #{unet_v5_forward.36} parent=0 // pred_region
    _
  $region5: #{unet_v5_forward.36} parent=0 // pred_fallthru
    _
  // Predicated region
  $region6: #{unet_v5_forward.36} parent=0 // pred_check
    _
  $region7: #{unet_v5_forward.36} parent=0 // pred_check_branch
    %11 = sbr.rel (0) target = $region9
  $region8: #{unet_v5_forward.36} parent=0 // pred_region
    _
  $region9: #{unet_v5_forward.36} parent=0 // pred_fallthru
    _
  // Predicated region
  $region10: #{unet_v5_forward.36} parent=0 // pred_check
    _
  $region11: #{unet_v5_forward.36} parent=0 // pred_check_branch
    %13 = sbr.rel (0) target = $region13
  $region12: #{unet_v5_forward.36} parent=0 // pred_region
    _
  $region13: #{unet_v5_forward.36} parent=0 // pred_fallthru
    _
  %p15 = scmp.eq.s32.totalorder 0, 0
  // Predicated region
  $region14: #{unet_v5_forward.36} parent=0 // pred_check
    %p16 = pneg %p15
  $region15: #{unet_v5_forward.36} parent=0 // pred_check_branch
    %18 = sbr.rel (%p16) target = $region17
  $region16: #{unet_v5_forward.36} parent=0 // pred_region
    %19 = vst [vmem:[#allocation2] sm:$0xff] 0.0
    %20 = vst [vmem:[#allocation2 + $0x8] sm:$0xff] 0.0
    %21 = vst [vmem:[#allocation2 + $0x10] sm:$0xff] 0.0
    %22 = vst [vmem:[#allocation2 + $0x18] sm:$0xff] 0.0
  $region17: #{unet_v5_forward.36} parent=0 // pred_fallthru
    _
  %v23 = vld [vmem:[%s0] sm:$0xff]
  %v24 = vld [vmem:[%s0 + $0x8] sm:$0xff]
  %v25 = vld [vmem:[%s0 + $0x10] sm:$0xff]
  %v26 = vld [vmem:[%s0 + $0x18] sm:$0xff]
  %v27 = vmax.bf16 %v23, 0
  %v28 = vmax.bf16 %v24, 0
  %v29 = vmax.bf16 %v25, 0
  %v30 = vmax.bf16 %v26, 0
  %v31 = vld [vmem:[#allocation2] sm:$0xff]
  %v32 = vld [vmem:[#allocation2 + $0x8] sm:$0xff]
  %v33 = vld [vmem:[#allocation2 + $0x10] sm:$0xff]
  %v34 = vld [vmem:[#allocation2 + $0x18] sm:$0xff]
  %v35 = vld [vmem:[%s1] sm:$0xf]
  %v36 = vld [vmem:[%s1 + $0x4] sm:$0xf]
  %v37 = vld [vmem:[%s1 + $0x8] sm:$0xf]
  %v38 = vld [vmem:[%s1 + $0xc] sm:$0xf]
  %v39 = vld [vmem:[%s1 + $0x10] sm:$0xf]
  %v40 = vld [vmem:[%s1 + $0x14] sm:$0xf]
  %v41 = vld [vmem:[%s1 + $0x18] sm:$0xf]
  %v42 = vld [vmem:[%s1 + $0x1c] sm:$0xf]
  %v43 = vld [vmem:[%s1 + $0x20] sm:$0xf]
  %v44 = vld [vmem:[%s1 + $0x24] sm:$0xf]
  %v45 = vld [vmem:[%s1 + $0x28] sm:$0xf]
  %v46 = vld [vmem:[%s1 + $0x2c] sm:$0xf]
  %v47 = vld [vmem:[%s1 + $0x30] sm:$0xf]
  %v48 = vld [vmem:[%s1 + $0x34] sm:$0xf]
  %v49 = vld [vmem:[%s1 + $0x38] sm:$0xf]
  %v50 = vld [vmem:[%s1 + $0x3c] sm:$0xf]
  %v51 = vld [vmem:[%s1 + $0x40] sm:$0xf]
  %v52 = vld [vmem:[%s1 + $0x44] sm:$0xf]
  %v53 = vld [vmem:[%s1 + $0x48] sm:$0xf]
  %v54 = vld [vmem:[%s1 + $0x4c] sm:$0xf]
  %v55 = vld [vmem:[%s1 + $0x50] sm:$0xf]
  %v56 = vld [vmem:[%s1 + $0x54] sm:$0xf]
  %v57 = vld [vmem:[%s1 + $0x58] sm:$0xf]
  %v58 = vld [vmem:[%s1 + $0x5c] sm:$0xf]
  %v59 = vld [vmem:[%s1 + $0x60] sm:$0xf]
  %v60 = vld [vmem:[%s1 + $0x64] sm:$0xf]
  %v61 = vld [vmem:[%s1 + $0x68] sm:$0xf]
  %v62 = vld [vmem:[%s1 + $0x6c] sm:$0xf]
  %v63 = vld [vmem:[%s1 + $0x70] sm:$0xf]
  %v64 = vld [vmem:[%s1 + $0x74] sm:$0xf]
  %v65 = vld [vmem:[%s1 + $0x78] sm:$0xf]
  %v66 = vld [vmem:[%s1 + $0x7c] sm:$0xf]
  %v71 = vunpack.c.l.b16 %v27
  %v72 = vunpack.c.h.b16 %v27
  %v73 = vunpack.c.l.b16 %v28
  %v74 = vunpack.c.h.b16 %v28
  %v75 = vunpack.c.l.b16 %v29
  %v76 = vunpack.c.h.b16 %v29
  %v77 = vunpack.c.l.b16 %v30
  %v78 = vunpack.c.h.b16 %v30
  %v79 = vpack.c.b16 %v73, %v71
  %v80 = vpack.c.b16 %v74, %v72
  %v81 = vpack.c.b16 %v77, %v75
  %v82 = vpack.c.b16 %v78, %v76
  %v119 = vunpack.c.l.b16 %v35
  %v120 = vunpack.c.l.b16 %v36
  %v121 = vunpack.c.l.b16 %v37
  %v122 = vunpack.c.l.b16 %v38
  %v123 = vunpack.c.l.b16 %v39
  %v124 = vunpack.c.l.b16 %v40
  %v125 = vunpack.c.l.b16 %v41
  %v126 = vunpack.c.l.b16 %v42
  %v127 = vunpack.c.l.b16 %v43
  %v128 = vunpack.c.l.b16 %v44
  %v129 = vunpack.c.l.b16 %v45
  %v130 = vunpack.c.l.b16 %v46
  %v131 = vunpack.c.l.b16 %v47
  %v132 = vunpack.c.l.b16 %v48
  %v133 = vunpack.c.l.b16 %v49
  %v134 = vunpack.c.l.b16 %v50
  %v135 = vunpack.c.l.b16 %v51
  %v136 = vunpack.c.l.b16 %v52
  %v137 = vunpack.c.l.b16 %v53
  %v138 = vunpack.c.l.b16 %v54
  %v139 = vunpack.c.l.b16 %v55
  %v140 = vunpack.c.l.b16 %v56
  %v141 = vunpack.c.l.b16 %v57
  %v142 = vunpack.c.l.b16 %v58
  %v143 = vunpack.c.l.b16 %v59
  %v144 = vunpack.c.l.b16 %v60
  %v145 = vunpack.c.l.b16 %v61
  %v146 = vunpack.c.l.b16 %v62
  %v147 = vunpack.c.l.b16 %v63
  %v148 = vunpack.c.l.b16 %v64
  %v149 = vunpack.c.l.b16 %v65
  %v150 = vunpack.c.l.b16 %v66
  %v151 = vpack.c.b16 %v120, %v119
  %v152 = vpack.c.b16 %v122, %v121
  %v153 = vpack.c.b16 %v124, %v123
  %v154 = vpack.c.b16 %v126, %v125
  %v155 = vpack.c.b16 %v128, %v127
  %v156 = vpack.c.b16 %v130, %v129
  %v157 = vpack.c.b16 %v132, %v131
  %v158 = vpack.c.b16 %v134, %v133
  %v159 = vpack.c.b16 %v136, %v135
  %v160 = vpack.c.b16 %v138, %v137
  %v161 = vpack.c.b16 %v140, %v139
  %v162 = vpack.c.b16 %v142, %v141
  %v163 = vpack.c.b16 %v144, %v143
  %v164 = vpack.c.b16 %v146, %v145
  %v165 = vpack.c.b16 %v148, %v147
  %v166 = vpack.c.b16 %v150, %v149
  %183 = vmatprep.subr.bf16.mxu0 0
  %184 = vmatpush1.bf16.msra.mxu0 %v158
  %185 = vmatprep.subr.bf16.mxu0 0
  %186 = vmatpush1.bf16.msra.mxu0 %v157
  %187 = vmatprep.subr.bf16.mxu0 0
  %188 = vmatpush1.bf16.msra.mxu0 %v156
  %189 = vmatprep.subr.bf16.mxu0 0
  %190 = vmatpush1.bf16.msra.mxu0 %v155
  %191 = vmatprep.subr.bf16.mxu0 0
  %192 = vmatpush1.bf16.msra.mxu0 %v154
  %193 = vmatprep.subr.bf16.mxu0 0
  %194 = vmatpush1.bf16.msra.mxu0 %v153
  %195 = vmatprep.subr.bf16.mxu0 0
  %196 = vmatpush1.bf16.msra.mxu0 %v152
  %197 = vmatprep.subr.bf16.mxu0 0
  %198 = vmatpush1.bf16.msra.mxu0 %v151
  %199 = vmatprep.subr.bf16.mxu0 0
  %200 = vmatpush2.bf16.msra.mxu0 %v166
  %201 = vmatprep.subr.bf16.mxu0 0
  %202 = vmatpush2.bf16.msra.mxu0 %v165
  %203 = vmatprep.subr.bf16.mxu0 0
  %204 = vmatpush2.bf16.msra.mxu0 %v164
  %205 = vmatprep.subr.bf16.mxu0 0
  %206 = vmatpush2.bf16.msra.mxu0 %v163
  %207 = vmatprep.subr.bf16.mxu0 0
  %208 = vmatpush2.bf16.msra.mxu0 %v162
  %209 = vmatprep.subr.bf16.mxu0 0
  %210 = vmatpush2.bf16.msra.mxu0 %v161
  %211 = vmatprep.subr.bf16.mxu0 0
  %212 = vmatpush2.bf16.msra.mxu0 %v160
  %213 = vmatprep.subr.bf16.mxu0 0
  %214 = vmatpush2.bf16.msra.mxu0 %v159
  %215 = vmatprep.mubr.bf16.mxu0 %v80
  %216 = vmatmul.mubr.bf16.gmra.mxu0 %v79
  %v217 = vpop.f32.mrf.mxu0
  %v218 = vadd.f32 0.0, %v217
  %v219 = vpop.f32.mrf.mxu0
  %v220 = vpop.f32.mrf.mxu0
  %v221 = vadd.f32 0.0, %v220
  %v222 = vpop.f32.mrf.mxu0
  %223 = vmatprep.mubr.bf16.mxu0 %v82
  %224 = vmatmul.mubr.bf16.gmra.mxu0 %v81
  %v225 = vpop.f32.mrf.mxu0
  %v226 = vadd.f32 0.0, %v225
  %v227 = vpop.f32.mrf.mxu0
  %v228 = vpop.f32.mrf.mxu0
  %v229 = vadd.f32 0.0, %v228
  %v230 = vpop.f32.mrf.mxu0
  %231 = vdwg.mxu0
  %v232 = vadd.f32 %v31, %v218
  %v233 = vadd.f32 %v32, %v221
  %v234 = vadd.f32 %v33, %v226
  %v235 = vadd.f32 %v34, %v229
  %236 = vst [vmem:[#allocation2] sm:$0xff] %v232
  %237 = vst [vmem:[#allocation2 + $0x8] sm:$0xff] %v233
  %238 = vst [vmem:[#allocation2 + $0x10] sm:$0xff] %v234
  %239 = vst [vmem:[#allocation2 + $0x18] sm:$0xff] %v235
  // Predicated region
  $region18: #{unet_v5_forward.36} parent=0 // pred_check
    %p240 = pneg %p15
  $region19: #{unet_v5_forward.36} parent=0 // pred_check_branch
    %242 = sbr.rel (%p240) target = $region21
  $region20: #{unet_v5_forward.36} parent=0 // pred_region
    %v243 = vld [vmem:[#allocation2] sm:$0xff]
    %v244 = vld [vmem:[#allocation2 + $0x8] sm:$0xff]
    %v245 = vld [vmem:[#allocation2 + $0x10] sm:$0xff]
    %v246 = vld [vmem:[#allocation2 + $0x18] sm:$0xff]
    %v247 = vld [vmem:[%s2] sm:$0x1]
    %v249 = vlaneseq
    %v250 = vshrl.u32 %v249, 7
    %v251 = vsub.s32 0, %v250
    %v252 = vrot.slane %v247, %v251
    %v254 = vadd.f32 %v243, %v252
    %v255 = vadd.f32 %v244, %v252
    %v256 = vadd.f32 %v245, %v252
    %v257 = vadd.f32 %v246, %v252
    %v258 = vpack.c.bf16 %v255, %v254
    %v259 = vpack.c.bf16 %v257, %v256
    %v262 = vunpack.c.l.b16 %v258
    %v263 = vunpack.c.h.b16 %v258
    %v264 = vunpack.c.l.b16 %v259
    %v265 = vunpack.c.h.b16 %v259
    %v266 = vpack.c.b16 %v262, %v262
    %v267 = vpack.c.b16 %v263, %v263
    %v268 = vpack.c.b16 %v264, %v264
    %v269 = vpack.c.b16 %v265, %v265
    %274 = vst [vmem:[%s3] sm:$0xf] %v266
    %275 = vst [vmem:[%s3 + $0x4] sm:$0xf] %v267
    %276 = vst [vmem:[%s3 + $0x8] sm:$0xf] %v268
    %277 = vst [vmem:[%s3 + $0xc] sm:$0xf] %v269
  $region21: #{unet_v5_forward.36} parent=0 // pred_fallthru
    _
  // Predicated region
  $region22: #{unet_v5_forward.36} parent=0 // pred_check
    _
  $region23: #{unet_v5_forward.36} parent=0 // pred_check_branch
    %279 = sbr.rel (0) target = $region25
  $region24: #{unet_v5_forward.36} parent=0 // pred_region
    _
  $region25: #{unet_v5_forward.36} parent=0 // pred_fallthru
    _
  // Predicated region
  $region26: #{unet_v5_forward.36} parent=0 // pred_check
    _
  $region27: #{unet_v5_forward.36} parent=0 // pred_check_branch
    %281 = sbr.rel (0) target = $region29
  $region28: #{unet_v5_forward.36} parent=0 // pred_region
    _
  $region29: #{unet_v5_forward.36} parent=0 // pred_fallthru
    _

// kernel: tile.158
$region0: #{tile.158}
  #allocation0 [shape = 's32[1]{0}', space=sflag, size = 0x4, scoped, tag = 'scoped memory for tile.158']
  %s0 = inlined_call_operand.vmem [shape: f32[3], index: 0, kind: input, shape index: {}]
  %s1 = inlined_call_operand.vmem [shape: f32[4,3], index: 1, kind: output, shape index: {}]
  // Predicated region
  $region2: #{tile.158} parent=0 // pred_check
    _
  $region3: #{tile.158} parent=0 // pred_check_branch
    %3 = sbr.rel (0) target = $region5
  $region4: #{tile.158} parent=0 // pred_region
    _
  $region5: #{tile.158} parent=0 // pred_fallthru
    _
  %v4 = vld [vmem:[%s0] ss:$0 sm:$0xff]
  %5 = vst [vmem:[%s1] sm:$0xf] %v4

// kernel: tile.159
$region0: #{tile.159}
  %s0 = inlined_call_operand.vmem [shape: f32[4,3], index: 0, kind: input, shape index: {}]
  %s1 = inlined_call_operand.vmem [shape: f32[12], index: 1, kind: output, shape index: {}]
  $region1: #{tile.159} parent=0
    #allocation0 [shape = 'u8[4096]{0}', space=vmem, size = 0x1000, scoped, tag = 'scoped mem for output reshape']
    #allocation1 [shape = 'u8[4096]{0}', space=vmem, size = 0x1000, scoped, tag = 'scoped mem for input reshape']
    %s3 = sshll.u32 1, 4
    %s4 = ssub.s32 %s3, 1
    %v5 = vld [vmem:[%s0] sm:%s4]
    %6 = vst [vmem:[#allocation1] sm:%s4] %v5
    %v7 = vld [vmem:[#allocation1] sm:$0x1]
    %vm8 = vcmask 23552
    %9 = vst.msk [vmem:[#allocation0] sm:$0x1] %vm8, %v7
    %s10 = scalar_lea.vmem [#allocation1], 3
    %v11 = vld [vmem:[%s10] sm:$0x1]
    %12 = vrot.lane.b32.xlu0 %v11, 9
    %v13 = vpop.permute.xlu0 %12
    %vm14 = vcmask 97352
    %15 = vst.msk [vmem:[#allocation0] sm:$0x1] %vm14, %v13
    %s16 = scalar_lea.vmem [#allocation1], 2
    %v17 = vld [vmem:[%s16] sm:$0x1]
    %18 = vrot.lane.b32.xlu0 %v17, 6
    %v19 = vpop.permute.xlu0 %18
    %vm20 = vcmask 72752
    %21 = vst.msk [vmem:[#allocation0] sm:$0x1] %vm20, %v19
    %s22 = scalar_lea.vmem [#allocation1], 1
    %v23 = vld [vmem:[%s22] sm:$0x1]
    %24 = vrot.lane.b32.xlu0 %v23, 3
    %v25 = vpop.permute.xlu0 %24
    %vm26 = vcmask 48152
    %27 = vst.msk [vmem:[#allocation0] sm:$0x1] %vm26, %v25
    %s29 = sshll.u32 1, 1
    %s30 = ssub.s32 %s29, 1
    %v32 = vld [vmem:[#allocation0] sm:%s30]
    %s33 = sshll.u32 1, 1
    %s34 = ssub.s32 %s33, 1
    %35 = vst [vmem:[%s1] sm:%s34] %v32

// kernel: unet_v5_forward.39
$region0: #{unet_v5_forward.39}
  #allocation0 [shape = 'u32[]', space=smem, size = 0x4, offset = 0x4, fixed_abs, tag = 'smem constant byte address 0x4 - core index']
  #allocation1 [shape = 'u32[144,128]{1,0:T(1,128)}', space=vmem, size = 0x12000, scoped, tag = 'internal scratch']
  #allocation2 [shape = 'f32[128,128]{1,0:T(8,128)}', space=vmem, size = 0x10000, scoped, tag = 'scratch operand']
  %s0 = inlined_call_operand.vmem [shape: bf16[128,128], index: 0, kind: input, shape index: {}]
  %s1 = inlined_call_operand.vmem [shape: bf16[128,128], index: 1, kind: input, shape index: {}]
  %s2 = inlined_call_operand.vmem [shape: f32[1,128], index: 2, kind: input, shape index: {}]
  %s3 = inlined_call_operand.vmem [shape: f32[128,128], index: 3, kind: output, shape index: {}]
  %s4 = sld [smem:[#allocation0]]
  $region30: #{unet_v5_forward.39} parent=0
    _
  %s6 = ssub.s32 1, %s4
  %s7 = scalar_select 0, %s6, %s4
  // Predicated region
  $region2: #{unet_v5_forward.39} parent=0 // pred_check
    _
  $region3: #{unet_v5_forward.39} parent=0 // pred_check_branch
    %9 = sbr.rel (0) target = $region5
  $region4: #{unet_v5_forward.39} parent=0 // pred_region
    _
  $region5: #{unet_v5_forward.39} parent=0 // pred_fallthru
    _
  // Predicated region
  $region6: #{unet_v5_forward.39} parent=0 // pred_check
    _
  $region7: #{unet_v5_forward.39} parent=0 // pred_check_branch
    %11 = sbr.rel (0) target = $region9
  $region8: #{unet_v5_forward.39} parent=0 // pred_region
    _
  $region9: #{unet_v5_forward.39} parent=0 // pred_fallthru
    _
  // Predicated region
  $region10: #{unet_v5_forward.39} parent=0 // pred_check
    _
  $region11: #{unet_v5_forward.39} parent=0 // pred_check_branch
    %13 = sbr.rel (0) target = $region13
  $region12: #{unet_v5_forward.39} parent=0 // pred_region
    _
  $region13: #{unet_v5_forward.39} parent=0 // pred_fallthru
    _
  %p15 = scmp.eq.s32.totalorder 0, 0
  // Predicated region
  $region14: #{unet_v5_forward.39} parent=0 // pred_check
    %p16 = pneg %p15
  $region15: #{unet_v5_forward.39} parent=0 // pred_check_branch
    %18 = sbr.rel (%p16) target = $region17
  $region16: #{unet_v5_forward.39} parent=0 // pred_region
    %19 = vst [vmem:[#allocation2] sm:$0xff] 0.0
    %20 = vst [vmem:[#allocation2 + $0x8] sm:$0xff] 0.0
    %21 = vst [vmem:[#allocation2 + $0x10] sm:$0xff] 0.0
    %22 = vst [vmem:[#allocation2 + $0x18] sm:$0xff] 0.0
    %23 = vst [vmem:[#allocation2 + $0x20] sm:$0xff] 0.0
    %24 = vst [vmem:[#allocation2 + $0x28] sm:$0xff] 0.0
    %25 = vst [vmem:[#allocation2 + $0x30] sm:$0xff] 0.0
    %26 = vst [vmem:[#allocation2 + $0x38] sm:$0xff] 0.0
    %27 = vst [vmem:[#allocation2 + $0x40] sm:$0xff] 0.0
    %28 = vst [vmem:[#allocation2 + $0x48] sm:$0xff] 0.0
    %29 = vst [vmem:[#allocation2 + $0x50] sm:$0xff] 0.0
    %30 = vst [vmem:[#allocation2 + $0x58] sm:$0xff] 0.0
    %31 = vst [vmem:[#allocation2 + $0x60] sm:$0xff] 0.0
    %32 = vst [vmem:[#allocation2 + $0x68] sm:$0xff] 0.0
    %33 = vst [vmem:[#allocation2 + $0x70] sm:$0xff] 0.0
    %34 = vst [vmem:[#allocation2 + $0x78] sm:$0xff] 0.0
  $region17: #{unet_v5_forward.39} parent=0 // pred_fallthru
    _
  %v35 = vld [vmem:[%s0] sm:$0xf]
  %v36 = vld [vmem:[%s0 + $0x4] sm:$0xf]
  %v37 = vld [vmem:[%s0 + $0x8] sm:$0xf]
  %v38 = vld [vmem:[%s0 + $0xc] sm:$0xf]
  %v39 = vld [vmem:[%s0 + $0x10] sm:$0xf]
  %v40 = vld [vmem:[%s0 + $0x14] sm:$0xf]
  %v41 = vld [vmem:[%s0 + $0x18] sm:$0xf]
  %v42 = vld [vmem:[%s0 + $0x1c] sm:$0xf]
  %v43 = vld [vmem:[%s0 + $0x20] sm:$0xf]
  %v44 = vld [vmem:[%s0 + $0x24] sm:$0xf]
  %v45 = vld [vmem:[%s0 + $0x28] sm:$0xf]
  %v46 = vld [vmem:[%s0 + $0x2c] sm:$0xf]
  %v47 = vld [vmem:[%s0 + $0x30] sm:$0xf]
  %v48 = vld [vmem:[%s0 + $0x34] sm:$0xf]
  %v49 = vld [vmem:[%s0 + $0x38] sm:$0xf]
  %v50 = vld [vmem:[%s0 + $0x3c] sm:$0xf]
  %v51 = vmax.bf16 %v35, 0
  %v52 = vmax.bf16 %v36, 0
  %v53 = vmax.bf16 %v37, 0
  %v54 = vmax.bf16 %v38, 0
  %v55 = vmax.bf16 %v39, 0
  %v56 = vmax.bf16 %v40, 0
  %v57 = vmax.bf16 %v41, 0
  %v58 = vmax.bf16 %v42, 0
  %v59 = vmax.bf16 %v43, 0
  %v60 = vmax.bf16 %v44, 0
  %v61 = vmax.bf16 %v45, 0
  %v62 = vmax.bf16 %v46, 0
  %v63 = vmax.bf16 %v47, 0
  %v64 = vmax.bf16 %v48, 0
  %v65 = vmax.bf16 %v49, 0
  %v66 = vmax.bf16 %v50, 0
  %v67 = vld [vmem:[#allocation2] sm:$0xff]
  %v68 = vld [vmem:[#allocation2 + $0x8] sm:$0xff]
  %v69 = vld [vmem:[#allocation2 + $0x10] sm:$0xff]
  %v70 = vld [vmem:[#allocation2 + $0x18] sm:$0xff]
  %v71 = vld [vmem:[#allocation2 + $0x20] sm:$0xff]
  %v72 = vld [vmem:[#allocation2 + $0x28] sm:$0xff]
  %v73 = vld [vmem:[#allocation2 + $0x30] sm:$0xff]
  %v74 = vld [vmem:[#allocation2 + $0x38] sm:$0xff]
  %v75 = vld [vmem:[#allocation2 + $0x40] sm:$0xff]
  %v76 = vld [vmem:[#allocation2 + $0x48] sm:$0xff]
  %v77 = vld [vmem:[#allocation2 + $0x50] sm:$0xff]
  %v78 = vld [vmem:[#allocation2 + $0x58] sm:$0xff]
  %v79 = vld [vmem:[#allocation2 + $0x60] sm:$0xff]
  %v80 = vld [vmem:[#allocation2 + $0x68] sm:$0xff]
  %v81 = vld [vmem:[#allocation2 + $0x70] sm:$0xff]
  %v82 = vld [vmem:[#allocation2 + $0x78] sm:$0xff]
  %v83 = vld [vmem:[%s1] sm:$0xf]
  %v84 = vld [vmem:[%s1 + $0x4] sm:$0xf]
  %v85 = vld [vmem:[%s1 + $0x8] sm:$0xf]
  %v86 = vld [vmem:[%s1 + $0xc] sm:$0xf]
  %v87 = vld [vmem:[%s1 + $0x10] sm:$0xf]
  %v88 = vld [vmem:[%s1 + $0x14] sm:$0xf]
  %v89 = vld [vmem:[%s1 + $0x18] sm:$0xf]
  %v90 = vld [vmem:[%s1 + $0x1c] sm:$0xf]
  %v91 = vld [vmem:[%s1 + $0x20] sm:$0xf]
  %v92 = vld [vmem:[%s1 + $0x24] sm:$0xf]
  %v93 = vld [vmem:[%s1 + $0x28] sm:$0xf]
  %v94 = vld [vmem:[%s1 + $0x2c] sm:$0xf]
  %v95 = vld [vmem:[%s1 + $0x30] sm:$0xf]
  %v96 = vld [vmem:[%s1 + $0x34] sm:$0xf]
  %v97 = vld [vmem:[%s1 + $0x38] sm:$0xf]
  %v98 = vld [vmem:[%s1 + $0x3c] sm:$0xf]
  %v115 = vunpack.c.l.b16 %v51
  %v116 = vunpack.c.l.b16 %v52
  %v117 = vunpack.c.l.b16 %v53
  %v118 = vunpack.c.l.b16 %v54
  %v119 = vunpack.c.l.b16 %v55
  %v120 = vunpack.c.l.b16 %v56
  %v121 = vunpack.c.l.b16 %v57
  %v122 = vunpack.c.l.b16 %v58
  %v123 = vunpack.c.l.b16 %v59
  %v124 = vunpack.c.l.b16 %v60
  %v125 = vunpack.c.l.b16 %v61
  %v126 = vunpack.c.l.b16 %v62
  %v127 = vunpack.c.l.b16 %v63
  %v128 = vunpack.c.l.b16 %v64
  %v129 = vunpack.c.l.b16 %v65
  %v130 = vunpack.c.l.b16 %v66
  %v131 = vpack.c.b16 %v116, %v115
  %v132 = vpack.c.b16 %v118, %v117
  %v133 = vpack.c.b16 %v120, %v119
  %v134 = vpack.c.b16 %v122, %v121
  %v135 = vpack.c.b16 %v124, %v123
  %v136 = vpack.c.b16 %v126, %v125
  %v137 = vpack.c.b16 %v128, %v127
  %v138 = vpack.c.b16 %v130, %v129
  %v163 = vunpack.c.l.b16 %v83
  %v164 = vunpack.c.l.b16 %v84
  %v165 = vunpack.c.l.b16 %v85
  %v166 = vunpack.c.l.b16 %v86
  %v167 = vunpack.c.l.b16 %v87
  %v168 = vunpack.c.l.b16 %v88
  %v169 = vunpack.c.l.b16 %v89
  %v170 = vunpack.c.l.b16 %v90
  %v171 = vunpack.c.l.b16 %v91
  %v172 = vunpack.c.l.b16 %v92
  %v173 = vunpack.c.l.b16 %v93
  %v174 = vunpack.c.l.b16 %v94
  %v175 = vunpack.c.l.b16 %v95
  %v176 = vunpack.c.l.b16 %v96
  %v177 = vunpack.c.l.b16 %v97
  %v178 = vunpack.c.l.b16 %v98
  %v179 = vpack.c.b16 %v164, %v163
  %v180 = vpack.c.b16 %v166, %v165
  %v181 = vpack.c.b16 %v168, %v167
  %v182 = vpack.c.b16 %v170, %v169
  %v183 = vpack.c.b16 %v172, %v171
  %v184 = vpack.c.b16 %v174, %v173
  %v185 = vpack.c.b16 %v176, %v175
  %v186 = vpack.c.b16 %v178, %v177
  %195 = vmatprep.subr.bf16.mxu0 0
  %196 = vmatpush1.bf16.msra.mxu0 %v186
  %197 = vmatprep.subr.bf16.mxu0 0
  %198 = vmatpush1.bf16.msra.mxu0 %v185
  %199 = vmatprep.subr.bf16.mxu0 0
  %200 = vmatpush1.bf16.msra.mxu0 %v184
  %201 = vmatprep.subr.bf16.mxu0 0
  %202 = vmatpush1.bf16.msra.mxu0 %v183
  %203 = vmatprep.subr.bf16.mxu0 0
  %204 = vmatpush1.bf16.msra.mxu0 %v182
  %205 = vmatprep.subr.bf16.mxu0 0
  %206 = vmatpush1.bf16.msra.mxu0 %v181
  %207 = vmatprep.subr.bf16.mxu0 0
  %208 = vmatpush1.bf16.msra.mxu0 %v180
  %209 = vmatprep.subr.bf16.mxu0 0
  %210 = vmatpush1.bf16.msra.mxu0 %v179
  %211 = vmatprep.subr.bf16.mxu0 0
  %212 = vmatpush2.bf16.msra.mxu0 0
  %213 = vmatprep.subr.bf16.mxu0 0
  %214 = vmatpush2.bf16.msra.mxu0 0
  %215 = vmatprep.subr.bf16.mxu0 0
  %216 = vmatpush2.bf16.msra.mxu0 0
  %217 = vmatprep.subr.bf16.mxu0 0
  %218 = vmatpush2.bf16.msra.mxu0 0
  %219 = vmatprep.subr.bf16.mxu0 0
  %220 = vmatpush2.bf16.msra.mxu0 0
  %221 = vmatprep.subr.bf16.mxu0 0
  %222 = vmatpush2.bf16.msra.mxu0 0
  %223 = vmatprep.subr.bf16.mxu0 0
  %224 = vmatpush2.bf16.msra.mxu0 0
  %225 = vmatprep.subr.bf16.mxu0 0
  %226 = vmatpush2.bf16.msra.mxu0 0
  %227 = vmatprep.mubr.bf16.mxu0 0
  %228 = vmatmul.mubr.bf16.gmra.mxu0 %v131
  %v229 = vpop.f32.mrf.mxu0
  %v230 = vadd.f32 0.0, %v229
  %v231 = vpop.f32.mrf.mxu0
  %v232 = vpop.f32.mrf.mxu0
  %v233 = vadd.f32 0.0, %v232
  %v234 = vpop.f32.mrf.mxu0
  %235 = vmatprep.mubr.bf16.mxu0 0
  %236 = vmatmul.mubr.bf16.gmra.mxu0 %v132
  %v237 = vpop.f32.mrf.mxu0
  %v238 = vadd.f32 0.0, %v237
  %v239 = vpop.f32.mrf.mxu0
  %v240 = vpop.f32.mrf.mxu0
  %v241 = vadd.f32 0.0, %v240
  %v242 = vpop.f32.mrf.mxu0
  %243 = vmatprep.mubr.bf16.mxu0 0
  %244 = vmatmul.mubr.bf16.gmra.mxu0 %v133
  %v245 = vpop.f32.mrf.mxu0
  %v246 = vadd.f32 0.0, %v245
  %v247 = vpop.f32.mrf.mxu0
  %v248 = vpop.f32.mrf.mxu0
  %v249 = vadd.f32 0.0, %v248
  %v250 = vpop.f32.mrf.mxu0
  %251 = vmatprep.mubr.bf16.mxu0 0
  %252 = vmatmul.mubr.bf16.gmra.mxu0 %v134
  %v253 = vpop.f32.mrf.mxu0
  %v254 = vadd.f32 0.0, %v253
  %v255 = vpop.f32.mrf.mxu0
  %v256 = vpop.f32.mrf.mxu0
  %v257 = vadd.f32 0.0, %v256
  %v258 = vpop.f32.mrf.mxu0
  %259 = vmatprep.mubr.bf16.mxu0 0
  %260 = vmatmul.mubr.bf16.gmra.mxu0 %v135
  %v261 = vpop.f32.mrf.mxu0
  %v262 = vadd.f32 0.0, %v261
  %v263 = vpop.f32.mrf.mxu0
  %v264 = vpop.f32.mrf.mxu0
  %v265 = vadd.f32 0.0, %v264
  %v266 = vpop.f32.mrf.mxu0
  %267 = vmatprep.mubr.bf16.mxu0 0
  %268 = vmatmul.mubr.bf16.gmra.mxu0 %v136
  %v269 = vpop.f32.mrf.mxu0
  %v270 = vadd.f32 0.0, %v269
  %v271 = vpop.f32.mrf.mxu0
  %v272 = vpop.f32.mrf.mxu0
  %v273 = vadd.f32 0.0, %v272
  %v274 = vpop.f32.mrf.mxu0
  %275 = vmatprep.mubr.bf16.mxu0 0
  %276 = vmatmul.mubr.bf16.gmra.mxu0 %v137
  %v277 = vpop.f32.mrf.mxu0
  %v278 = vadd.f32 0.0, %v277
  %v279 = vpop.f32.mrf.mxu0
  %v280 = vpop.f32.mrf.mxu0
  %v281 = vadd.f32 0.0, %v280
  %v282 = vpop.f32.mrf.mxu0
  %283 = vmatprep.mubr.bf16.mxu0 0
  %284 = vmatmul.mubr.bf16.gmra.mxu0 %v138
  %v285 = vpop.f32.mrf.mxu0
  %v286 = vadd.f32 0.0, %v285
  %v287 = vpop.f32.mrf.mxu0
  %v288 = vpop.f32.mrf.mxu0
  %v289 = vadd.f32 0.0, %v288
  %v290 = vpop.f32.mrf.mxu0
  %291 = vdwg.mxu0
  %v292 = vadd.f32 %v67, %v230
  %v293 = vadd.f32 %v68, %v233
  %v294 = vadd.f32 %v69, %v238
  %v295 = vadd.f32 %v70, %v241
  %v296 = vadd.f32 %v71, %v246
  %v297 = vadd.f32 %v72, %v249
  %v298 = vadd.f32 %v73, %v254
  %v299 = vadd.f32 %v74, %v257
  %v300 = vadd.f32 %v75, %v262
  %v301 = vadd.f32 %v76, %v265
  %v302 = vadd.f32 %v77, %v270
  %v303 = vadd.f32 %v78, %v273
  %v304 = vadd.f32 %v79, %v278
  %v305 = vadd.f32 %v80, %v281
  %v306 = vadd.f32 %v81, %v286
  %v307 = vadd.f32 %v82, %v289
  %308 = vst [vmem:[#allocation2] sm:$0xff] %v292
  %309 = vst [vmem:[#allocation2 + $0x8] sm:$0xff] %v293
  %310 = vst [vmem:[#allocation2 + $0x10] sm:$0xff] %v294
  %311 = vst [vmem:[#allocation2 + $0x18] sm:$0xff] %v295
  %312 = vst [vmem:[#allocation2 + $0x20] sm:$0xff] %v296
  %313 = vst [vmem:[#allocation2 + $0x28] sm:$0xff] %v297
  %314 = vst [vmem:[#allocation2 + $0x30] sm:$0xff] %v298
  %315 = vst [vmem:[#allocation2 + $0x38] sm:$0xff] %v299
  %316 = vst [vmem:[#allocation2 + $0x40] sm:$0xff] %v300
  %317 = vst [vmem:[#allocation2 + $0x48] sm:$0xff] %v301
  %318 = vst [vmem:[#allocation2 + $0x50] sm:$0xff] %v302
  %319 = vst [vmem:[#allocation2 + $0x58] sm:$0xff] %v303
  %320 = vst [vmem:[#allocation2 + $0x60] sm:$0xff] %v304
  %321 = vst [vmem:[#allocation2 + $0x68] sm:$0xff] %v305
  %322 = vst [vmem:[#allocation2 + $0x70] sm:$0xff] %v306
  %323 = vst [vmem:[#allocation2 + $0x78] sm:$0xff] %v307
  // Predicated region
  $region18: #{unet_v5_forward.39} parent=0 // pred_check
    %p324 = pneg %p15
  $region19: #{unet_v5_forward.39} parent=0 // pred_check_branch
    %326 = sbr.rel (%p324) target = $region21
  $region20: #{unet_v5_forward.39} parent=0 // pred_region
    %v327 = vld [vmem:[#allocation2] sm:$0xff]
    %v328 = vld [vmem:[#allocation2 + $0x8] sm:$0xff]
    %v329 = vld [vmem:[#allocation2 + $0x10] sm:$0xff]
    %v330 = vld [vmem:[#allocation2 + $0x18] sm:$0xff]
    %v331 = vld [vmem:[#allocation2 + $0x20] sm:$0xff]
    %v332 = vld [vmem:[#allocation2 + $0x28] sm:$0xff]
    %v333 = vld [vmem:[#allocation2 + $0x30] sm:$0xff]
    %v334 = vld [vmem:[#allocation2 + $0x38] sm:$0xff]
    %v335 = vld [vmem:[#allocation2 + $0x40] sm:$0xff]
    %v336 = vld [vmem:[#allocation2 + $0x48] sm:$0xff]
    %v337 = vld [vmem:[#allocation2 + $0x50] sm:$0xff]
    %v338 = vld [vmem:[#allocation2 + $0x58] sm:$0xff]
    %v339 = vld [vmem:[#allocation2 + $0x60] sm:$0xff]
    %v340 = vld [vmem:[#allocation2 + $0x68] sm:$0xff]
    %v341 = vld [vmem:[#allocation2 + $0x70] sm:$0xff]
    %v342 = vld [vmem:[#allocation2 + $0x78] sm:$0xff]
    %v343 = vld [vmem:[%s2] sm:$0x1]
    %v345 = vlaneseq
    %v346 = vshrl.u32 %v345, 7
    %v347 = vsub.s32 0, %v346
    %v348 = vrot.slane %v343, %v347
    %v350 = vadd.f32 %v327, %v348
    %v351 = vadd.f32 %v328, %v348
    %v352 = vadd.f32 %v329, %v348
    %v353 = vadd.f32 %v330, %v348
    %v354 = vadd.f32 %v331, %v348
    %v355 = vadd.f32 %v332, %v348
    %v356 = vadd.f32 %v333, %v348
    %v357 = vadd.f32 %v334, %v348
    %v358 = vadd.f32 %v335, %v348
    %v359 = vadd.f32 %v336, %v348
    %v360 = vadd.f32 %v337, %v348
    %v361 = vadd.f32 %v338, %v348
    %v362 = vadd.f32 %v339, %v348
    %v363 = vadd.f32 %v340, %v348
    %v364 = vadd.f32 %v341, %v348
    %v365 = vadd.f32 %v342, %v348
    %v366 = vtanh.pop %v350
    %v367 = vtanh.pop %v351
    %v368 = vtanh.pop %v352
    %v369 = vtanh.pop %v353
    %v370 = vtanh.pop %v354
    %v371 = vtanh.pop %v355
    %v372 = vtanh.pop %v356
    %v373 = vtanh.pop %v357
    %v374 = vtanh.pop %v358
    %v375 = vtanh.pop %v359
    %v376 = vtanh.pop %v360
    %v377 = vtanh.pop %v361
    %v378 = vtanh.pop %v362
    %v379 = vtanh.pop %v363
    %v380 = vtanh.pop %v364
    %v381 = vtanh.pop %v365
    %382 = vst [vmem:[%s3] sm:$0xff] %v366
    %383 = vst [vmem:[%s3 + $0x8] sm:$0xff] %v367
    %384 = vst [vmem:[%s3 + $0x10] sm:$0xff] %v368
    %385 = vst [vmem:[%s3 + $0x18] sm:$0xff] %v369
    %386 = vst [vmem:[%s3 + $0x20] sm:$0xff] %v370
    %387 = vst [vmem:[%s3 + $0x28] sm:$0xff] %v371
    %388 = vst [vmem:[%s3 + $0x30] sm:$0xff] %v372
    %389 = vst [vmem:[%s3 + $0x38] sm:$0xff] %v373
    %390 = vst [vmem:[%s3 + $0x40] sm:$0xff] %v374
    %391 = vst [vmem:[%s3 + $0x48] sm:$0xff] %v375
    %392 = vst [vmem:[%s3 + $0x50] sm:$0xff] %v376
    %393 = vst [vmem:[%s3 + $0x58] sm:$0xff] %v377
    %394 = vst [vmem:[%s3 + $0x60] sm:$0xff] %v378
    %395 = vst [vmem:[%s3 + $0x68] sm:$0xff] %v379
    %396 = vst [vmem:[%s3 + $0x70] sm:$0xff] %v380
    %397 = vst [vmem:[%s3 + $0x78] sm:$0xff] %v381
  $region21: #{unet_v5_forward.39} parent=0 // pred_fallthru
    _
  // Predicated region
  $region22: #{unet_v5_forward.39} parent=0 // pred_check
    _
  $region23: #{unet_v5_forward.39} parent=0 // pred_check_branch
    %399 = sbr.rel (0) target = $region25
  $region24: #{unet_v5_forward.39} parent=0 // pred_region
    _
  $region25: #{unet_v5_forward.39} parent=0 // pred_fallthru
    _
  // Predicated region
  $region26: #{unet_v5_forward.39} parent=0 // pred_check
    _
  $region27: #{unet_v5_forward.39} parent=0 // pred_check_branch
    %401 = sbr.rel (0) target = $region29
  $region28: #{unet_v5_forward.39} parent=0 // pred_region
    _
  $region29: #{unet_v5_forward.39} parent=0 // pred_fallthru
    _

</llo_original>
